<compile_context>
chip_gen: v7x
topology: tpu7x:2x2x1
jax: 0.10.0
libtpu: 0.0.40
codegen_flags: <defaults>
</compile_context>

<pallas_src>
import jax
import jax.numpy as jnp
from jax.experimental import pallas as pl
from jax.experimental.pallas import tpu as pltpu

# ---------------------------------------------------------------------------- config
CIN = 2          # input rhythm channels
L_IN = 200       # input length
K = 5            # kernel size (both convs)
PAD = 2          # padding (both convs)
S1, S2 = 4, 5    # strides
C1 = 64          # conv1 output channels
C2 = 128         # conv2 output channels
L1 = (L_IN + 2 * PAD - K) // S1 + 1     # 50
L2 = (L1 + 2 * PAD - K) // S2 + 1       # 10
D_OUT = 32
D_PAD = 128      # Dense output padded to a full lane tile
MAX_BT = 512     # batch rows per grid step (VMEM-bounded, v7x-safe)


def _round_up(x, m):
    return (x + m - 1) // m * m


# ---------------------------------------------------------------------------- kernel
def _fused_kernel(cols1_ref, w1_ref, b1_ref, w2_ref, b2_ref, wd_ref, bd_ref, o_ref):
    w1 = w1_ref[...]                       # (50, 320)  bf16, kron(I5, W1) block-diagonal
    w2 = w2_ref[...]                       # (320, 128) bf16
    b1 = b1_ref[...]                       # (1, 320)   f32
    b2 = b2_ref[...]                       # (1, 128)   f32

    # Dense bias folded into the accumulator init (output padded to 128 lanes).
    acc = jnp.broadcast_to(bd_ref[...], o_ref.shape).astype(jnp.float32)

    col = jax.lax.broadcasted_iota(jnp.int32, (1, K * C1), 1)

    for t in range(L2):                    # static unroll: 10 timesteps, no HBM traffic
        # conv1 + ReLU as a block-diagonal GEMM -> conv2's im2col tile for t2 == t
        z = jnp.dot(cols1_ref[t], w1, preferred_element_type=jnp.float32)
        z = jnp.maximum(z + b1, 0.0)                              # (Bt, 320) f32
        if t == 0:
            # conv2 left zero-padding: taps k2 in {0, 1} read h1[t1 < 0] == 0
            z = jnp.where(col < 2 * C1, 0.0, z)

        # conv2 + ReLU: (Bt, 320) @ (320, 128); h2 kept in bf16
        h2 = jnp.dot(z.astype(w2.dtype), w2, preferred_element_type=jnp.float32)
        h2 = jnp.maximum(h2 + b2, 0.0).astype(wd_ref.dtype)       # (Bt, 128) bf16

        # Dense contribution of timestep t (weights pre-permuted to (t2, c2, ·) order)
        acc = acc + jnp.dot(h2, wd_ref[t], preferred_element_type=jnp.float32)

    o_ref[...] = acc


def fused_forward(cols1, prep, bt):
    """cols1: (L2, Bp, K*K*CIN) bf16, (t2, b)-major im2col rows; Bp % bt == 0."""
    _, bp, _ = cols1.shape
    nb = bp // bt
    flops = 2 * bp * L2 * (K * K * CIN * K * C1 + K * C1 * C2 + C2 * D_PAD)
    bytes_accessed = (cols1.size * cols1.dtype.itemsize
                      + sum(int(v.size) * v.dtype.itemsize for v in prep.values())
                      + bp * D_PAD * 4)
    return pl.pallas_call(
        _fused_kernel,
        out_shape=jax.ShapeDtypeStruct((bp, D_PAD), jnp.float32),
        grid=(nb,),
        in_specs=[
            pl.BlockSpec((L2, bt, K * K * CIN), lambda i: (0, i, 0)),
            pl.BlockSpec(prep["w1_big"].shape, lambda i: (0, 0)),
            pl.BlockSpec(prep["b1"].shape, lambda i: (0, 0)),
            pl.BlockSpec(prep["w2"].shape, lambda i: (0, 0)),
            pl.BlockSpec(prep["b2"].shape, lambda i: (0, 0)),
            pl.BlockSpec(prep["wd"].shape, lambda i: (0, 0, 0)),
            pl.BlockSpec(prep["bd"].shape, lambda i: (0, 0)),
        ],
        out_specs=pl.BlockSpec((bt, D_PAD), lambda i: (i, 0)),
        compiler_params=pltpu.CompilerParams(dimension_semantics=("parallel",)),
        cost_estimate=pl.CostEstimate(flops=int(flops), transcendentals=0,
                                      bytes_accessed=int(bytes_accessed)),
    )(cols1, prep["w1_big"], prep["b1"], prep["w2"], prep["b2"],
      prep["wd"], prep["bd"])


# ---------------------------------------------------------------------------- wrapper
@jax.jit
def music_rhythm_embedding(x_ncw, prep):
    """x_ncw: (B, 2, 200) float32 — same NCW layout as the PyTorch Conv1d input."""
    B = x_ncw.shape[0]
    bt = min(MAX_BT, _round_up(B, 8))      # batch rows per grid step (multiple of 8)
    bp = _round_up(B, bt)                  # padded batch

    x_nlc = jnp.transpose(x_ncw, (0, 2, 1))                       # (B, 200, 2)
    xp = jnp.pad(x_nlc, ((0, 0), (PAD, PAD), (0, 0)))             # (B, 204, 2)
    # conv1 im2col via static strided slices (no gather): (B, L1, K*CIN)
    taps = [xp[:, k:k + S1 * (L1 - 1) + 1:S1, :] for k in range(K)]
    cols1 = jnp.stack(taps, axis=2).reshape(B, L1, K * CIN)       # (B, 50, 10), (k1, ci)
    # prepend conv2's left zero-pad rows (t1 = -2, -1); conv2 reads padded rows
    # t1_pad = 5*t2 + k2 <= 49, so keep the first L2*K rows (right pad never read).
    cols1 = jnp.pad(cols1, ((0, 0), (PAD, 0), (0, 0)))[:, :L2 * K, :]
    cols1 = cols1.reshape(B, L2, K * K * CIN)                     # (B, 10, 50), (k2, k1, ci)
    # (t2, b)-major so each grid step reads one contiguous lane-dense (L2, Bt, 50) tile
    cols1 = jnp.transpose(cols1, (1, 0, 2))                       # (10, B, 50)
    if bp != B:
        cols1 = jnp.pad(cols1, ((0, 0), (0, bp - B), (0, 0)))

    out = fused_forward(cols1.astype(jnp.bfloat16), prep, bt)     # (bp, 128)
    return out[:B, :D_OUT]


# ---------------------------------------------------------------------------- params
def init_params(key):
    k1, k2, k3, k4, k5, k6 = jax.random.split(key, 6)
    scale = 0.02
    return {
        "w1": scale * jax.random.normal(k1, (C1, CIN, K), jnp.float32),      # torch Conv1d
        "b1": scale * jax.random.normal(k2, (C1,), jnp.float32),
        "w2": scale * jax.random.normal(k3, (C2, C1, K), jnp.float32),
        "b2": scale * jax.random.normal(k4, (C2,), jnp.float32),
        "wd": scale * jax.random.normal(k5, (D_OUT, C2 * L2), jnp.float32),  # torch Linear
        "bd": scale * jax.random.normal(k6, (D_OUT,), jnp.float32),
    }


def prepare_params(params):
    """One-time repack of torch-layout weights into fused-GEMM layouts."""
    # conv1: (C1, CIN, K) -> (K*CIN, C1), then block-diagonal over conv2 taps
    w1g = jnp.transpose(params["w1"], (2, 1, 0)).reshape(K * CIN, C1)        # (10, 64)
    w1_big = jnp.kron(jnp.eye(K, dtype=w1g.dtype), w1g)                      # (50, 320)
    # conv2: (C2, C1, K) -> (K*C1, C2)
    w2g = jnp.transpose(params["w2"], (2, 1, 0)).reshape(K * C1, C2)         # (320, 128)
    # Dense: torch flatten of (B, C2, L2) is (c2, t2)-major; regroup per timestep and
    # pad the 32 output lanes to a full 128-lane tile (lane-dense stores / MXU columns).
    wdg = jnp.transpose(params["wd"].reshape(D_OUT, C2, L2), (2, 1, 0))      # (L2, C2, 32)
    wdg = jnp.pad(wdg, ((0, 0), (0, 0), (0, D_PAD - D_OUT)))                 # (L2, C2, 128)
    bdg = jnp.pad(params["bd"], ((0, D_PAD - D_OUT),)).reshape(1, D_PAD)
    return {
        "w1_big": w1_big.astype(jnp.bfloat16),
        "b1": jnp.tile(params["b1"], K).reshape(1, K * C1).astype(jnp.float32),
        "w2": w2g.astype(jnp.bfloat16),
        "b2": params["b2"].reshape(1, C2).astype(jnp.float32),
        "wd": wdg.astype(jnp.bfloat16),
        "bd": bdg.astype(jnp.float32),
    }


# ---------------------------------------------------------------------------- reference
def reference_forward(x_ncw, params):
    """Plain-JAX f32 reference (independent code path) matching the PyTorch module."""
    def conv1d_relu(x, w, b, stride):
        y = jax.lax.conv_general_dilated(
            x, w, window_strides=(stride,), padding=[(PAD, PAD)],
            dimension_numbers=("NCH", "OIH", "NCH"))
        return jax.nn.relu(y + b[None, :, None])
    h1 = conv1d_relu(x_ncw, params["w1"], params["b1"], S1)   # (B, 64, 50)
    h2 = conv1d_relu(h1, params["w2"], params["b2"], S2)      # (B, 128, 10)
    feat = h2.reshape(x_ncw.shape[0], -1)                     # torch .reshape(B, -1)
    return feat @ params["wd"].T + params["bd"]


if __name__ == "__main__":
    key = jax.random.PRNGKey(0)
    pkey, xkey = jax.random.split(key)
    params = init_params(pkey)
    prep = prepare_params(params)          # weight repacking hoisted out of the call path

    x = jax.random.normal(xkey, (2, CIN, L_IN), jnp.float32)

    out = jax.block_until_ready(music_rhythm_embedding(x, prep))
    assert out.shape == (2, D_OUT), out.shape
    assert bool(jnp.all(jnp.isfinite(out)))

    # correctness check vs. independent f32 reference (bf16 GEMM noise ~1e-4 here)
    ref = reference_forward(x, params)
    max_err = float(jnp.max(jnp.abs(out - ref)))
    assert jnp.allclose(out, ref, rtol=0.05, atol=5e-3), max_err

    print("KERNEL_OK")
</pallas_src>

<mosaic_0001>
module attributes {stable_mosaic.version = 11 : i64} {
  func.func @_fused_kernel(%arg0: i32, %arg1: memref<10x8x50xbf16, #tpu.memory_space<vmem>>, %arg2: memref<50x320xbf16, #tpu.memory_space<vmem>>, %arg3: memref<1x320xf32, #tpu.memory_space<vmem>>, %arg4: memref<320x128xbf16, #tpu.memory_space<vmem>>, %arg5: memref<1x128xf32, #tpu.memory_space<vmem>>, %arg6: memref<10x128x128xbf16, #tpu.memory_space<vmem>>, %arg7: memref<1x128xf32, #tpu.memory_space<vmem>>, %arg8: memref<8x128xf32, #tpu.memory_space<vmem>>) attributes {dimension_semantics = [#tpu.dimension_semantics<parallel>], iteration_bounds = array<i64: 1>, scalar_prefetch = 0 : i64, scratch_operands = 0 : i64, tpu.core_type = #tpu.core_type<tc>, window_params = [{transform_indices = @transform_0, window_bounds = array<i64: 10, 8, 50>}, {pipeline_mode = #tpu.pipeline_mode<synchronous>, transform_indices = @transform_1, window_bounds = array<i64: 50, 320>}, {pipeline_mode = #tpu.pipeline_mode<synchronous>, transform_indices = @transform_2, window_bounds = array<i64: 1, 320>}, {pipeline_mode = #tpu.pipeline_mode<synchronous>, transform_indices = @transform_3, window_bounds = array<i64: 320, 128>}, {pipeline_mode = #tpu.pipeline_mode<synchronous>, transform_indices = @transform_4, window_bounds = array<i64: 1, 128>}, {pipeline_mode = #tpu.pipeline_mode<synchronous>, transform_indices = @transform_5, window_bounds = array<i64: 10, 128, 128>}, {pipeline_mode = #tpu.pipeline_mode<synchronous>, transform_indices = @transform_6, window_bounds = array<i64: 1, 128>}, {transform_indices = @transform_7, window_bounds = array<i64: 8, 128>}]} {
    %c0 = arith.constant 0 : index
    %c0_0 = arith.constant 0 : index
    %0 = vector.load %arg2[%c0, %c0_0] : memref<50x320xbf16, #tpu.memory_space<vmem>>, vector<50x320xbf16>
    %c0_1 = arith.constant 0 : index
    %c0_2 = arith.constant 0 : index
    %1 = vector.load %arg4[%c0_1, %c0_2] : memref<320x128xbf16, #tpu.memory_space<vmem>>, vector<320x128xbf16>
    %c0_3 = arith.constant 0 : index
    %c0_4 = arith.constant 0 : index
    %2 = vector.load %arg3[%c0_3, %c0_4] : memref<1x320xf32, #tpu.memory_space<vmem>>, vector<1x320xf32>
    %c0_5 = arith.constant 0 : index
    %c0_6 = arith.constant 0 : index
    %3 = vector.load %arg5[%c0_5, %c0_6] : memref<1x128xf32, #tpu.memory_space<vmem>>, vector<1x128xf32>
    %c0_7 = arith.constant 0 : index
    %c0_8 = arith.constant 0 : index
    %4 = vector.load %arg7[%c0_7, %c0_8] : memref<1x128xf32, #tpu.memory_space<vmem>>, vector<1x128xf32>
    %5 = vector.shape_cast %4 : vector<1x128xf32> to vector<1x128xf32>
    %6 = vector.broadcast %5 : vector<1x128xf32> to vector<8x128xf32>
    %7 = tpu.iota {dimensions = array<i32: 1>} : vector<1x320xi32>
    %c0_9 = arith.constant 0 : index
    %c0_10 = arith.constant 0 : index
    %c0_11 = arith.constant 0 : index
    %8 = vector.load %arg1[%c0_9, %c0_10, %c0_11] : memref<10x8x50xbf16, #tpu.memory_space<vmem>>, vector<1x8x50xbf16>
    %9 = vector.shape_cast %8 : vector<1x8x50xbf16> to vector<8x50xbf16>
    %cst = arith.constant dense<0.000000e+00> : vector<8x320xf32>
    %10 = tpu.matmul %9, %0, %cst {dimension_numbers = #tpu.dot_dimension_numbers<[1], [0], [0], [1], [0, 0, 1, 1], [], []>} : vector<8x50xbf16>, vector<50x320xbf16>, vector<8x320xf32> -> vector<8x320xf32>
    %11 = vector.broadcast %2 : vector<1x320xf32> to vector<8x320xf32>
    %12 = arith.addf %10, %11 : vector<8x320xf32>
    %cst_12 = arith.constant 0.000000e+00 : f32
    %13 = vector.broadcast %cst_12 : f32 to vector<8x320xf32>
    %14 = arith.maximumf %12, %13 : vector<8x320xf32>
    %c128_i32 = arith.constant 128 : i32
    %15 = vector.broadcast %c128_i32 : i32 to vector<1x320xi32>
    %16 = arith.cmpi slt, %7, %15 : vector<1x320xi32>
    %cst_13 = arith.constant 0.000000e+00 : f32
    %17 = vector.shape_cast %16 : vector<1x320xi1> to vector<1x320xi1>
    %18 = vector.broadcast %17 : vector<1x320xi1> to vector<8x320xi1>
    %19 = vector.broadcast %cst_13 : f32 to vector<8x320xf32>
    %20 = arith.select %18, %19, %14 : vector<8x320xi1>, vector<8x320xf32>
    %21 = arith.truncf %20 : vector<8x320xf32> to vector<8x320xbf16>
    %cst_14 = arith.constant dense<0.000000e+00> : vector<8x128xf32>
    %22 = tpu.matmul %21, %1, %cst_14 {dimension_numbers = #tpu.dot_dimension_numbers<[1], [0], [0], [1], [0, 0, 1, 1], [], []>} : vector<8x320xbf16>, vector<320x128xbf16>, vector<8x128xf32> -> vector<8x128xf32>
    %23 = vector.broadcast %3 : vector<1x128xf32> to vector<8x128xf32>
    %24 = arith.addf %22, %23 : vector<8x128xf32>
    %cst_15 = arith.constant 0.000000e+00 : f32
    %25 = vector.broadcast %cst_15 : f32 to vector<8x128xf32>
    %26 = arith.maximumf %24, %25 : vector<8x128xf32>
    %27 = arith.truncf %26 : vector<8x128xf32> to vector<8x128xbf16>
    %c0_16 = arith.constant 0 : index
    %c0_17 = arith.constant 0 : index
    %c0_18 = arith.constant 0 : index
    %28 = vector.load %arg6[%c0_16, %c0_17, %c0_18] : memref<10x128x128xbf16, #tpu.memory_space<vmem>>, vector<1x128x128xbf16>
    %29 = vector.shape_cast %28 : vector<1x128x128xbf16> to vector<128x128xbf16>
    %cst_19 = arith.constant dense<0.000000e+00> : vector<8x128xf32>
    %30 = tpu.matmul %27, %29, %cst_19 {dimension_numbers = #tpu.dot_dimension_numbers<[1], [0], [0], [1], [0, 0, 1, 1], [], []>} : vector<8x128xbf16>, vector<128x128xbf16>, vector<8x128xf32> -> vector<8x128xf32>
    %31 = arith.addf %6, %30 : vector<8x128xf32>
    %c1 = arith.constant 1 : index
    %c0_20 = arith.constant 0 : index
    %c0_21 = arith.constant 0 : index
    %32 = vector.load %arg1[%c1, %c0_20, %c0_21] : memref<10x8x50xbf16, #tpu.memory_space<vmem>>, vector<1x8x50xbf16>
    %33 = vector.shape_cast %32 : vector<1x8x50xbf16> to vector<8x50xbf16>
    %cst_22 = arith.constant dense<0.000000e+00> : vector<8x320xf32>
    %34 = tpu.matmul %33, %0, %cst_22 {dimension_numbers = #tpu.dot_dimension_numbers<[1], [0], [0], [1], [0, 0, 1, 1], [], []>} : vector<8x50xbf16>, vector<50x320xbf16>, vector<8x320xf32> -> vector<8x320xf32>
    %35 = vector.broadcast %2 : vector<1x320xf32> to vector<8x320xf32>
    %36 = arith.addf %34, %35 : vector<8x320xf32>
    %cst_23 = arith.constant 0.000000e+00 : f32
    %37 = vector.broadcast %cst_23 : f32 to vector<8x320xf32>
    %38 = arith.maximumf %36, %37 : vector<8x320xf32>
    %39 = arith.truncf %38 : vector<8x320xf32> to vector<8x320xbf16>
    %cst_24 = arith.constant dense<0.000000e+00> : vector<8x128xf32>
    %40 = tpu.matmul %39, %1, %cst_24 {dimension_numbers = #tpu.dot_dimension_numbers<[1], [0], [0], [1], [0, 0, 1, 1], [], []>} : vector<8x320xbf16>, vector<320x128xbf16>, vector<8x128xf32> -> vector<8x128xf32>
    %41 = vector.broadcast %3 : vector<1x128xf32> to vector<8x128xf32>
    %42 = arith.addf %40, %41 : vector<8x128xf32>
    %cst_25 = arith.constant 0.000000e+00 : f32
    %43 = vector.broadcast %cst_25 : f32 to vector<8x128xf32>
    %44 = arith.maximumf %42, %43 : vector<8x128xf32>
    %45 = arith.truncf %44 : vector<8x128xf32> to vector<8x128xbf16>
    %c1_26 = arith.constant 1 : index
    %c0_27 = arith.constant 0 : index
    %c0_28 = arith.constant 0 : index
    %46 = vector.load %arg6[%c1_26, %c0_27, %c0_28] : memref<10x128x128xbf16, #tpu.memory_space<vmem>>, vector<1x128x128xbf16>
    %47 = vector.shape_cast %46 : vector<1x128x128xbf16> to vector<128x128xbf16>
    %cst_29 = arith.constant dense<0.000000e+00> : vector<8x128xf32>
    %48 = tpu.matmul %45, %47, %cst_29 {dimension_numbers = #tpu.dot_dimension_numbers<[1], [0], [0], [1], [0, 0, 1, 1], [], []>} : vector<8x128xbf16>, vector<128x128xbf16>, vector<8x128xf32> -> vector<8x128xf32>
    %49 = arith.addf %31, %48 : vector<8x128xf32>
    %c2 = arith.constant 2 : index
    %c0_30 = arith.constant 0 : index
    %c0_31 = arith.constant 0 : index
    %50 = vector.load %arg1[%c2, %c0_30, %c0_31] : memref<10x8x50xbf16, #tpu.memory_space<vmem>>, vector<1x8x50xbf16>
    %51 = vector.shape_cast %50 : vector<1x8x50xbf16> to vector<8x50xbf16>
    %cst_32 = arith.constant dense<0.000000e+00> : vector<8x320xf32>
    %52 = tpu.matmul %51, %0, %cst_32 {dimension_numbers = #tpu.dot_dimension_numbers<[1], [0], [0], [1], [0, 0, 1, 1], [], []>} : vector<8x50xbf16>, vector<50x320xbf16>, vector<8x320xf32> -> vector<8x320xf32>
    %53 = vector.broadcast %2 : vector<1x320xf32> to vector<8x320xf32>
    %54 = arith.addf %52, %53 : vector<8x320xf32>
    %cst_33 = arith.constant 0.000000e+00 : f32
    %55 = vector.broadcast %cst_33 : f32 to vector<8x320xf32>
    %56 = arith.maximumf %54, %55 : vector<8x320xf32>
    %57 = arith.truncf %56 : vector<8x320xf32> to vector<8x320xbf16>
    %cst_34 = arith.constant dense<0.000000e+00> : vector<8x128xf32>
    %58 = tpu.matmul %57, %1, %cst_34 {dimension_numbers = #tpu.dot_dimension_numbers<[1], [0], [0], [1], [0, 0, 1, 1], [], []>} : vector<8x320xbf16>, vector<320x128xbf16>, vector<8x128xf32> -> vector<8x128xf32>
    %59 = vector.broadcast %3 : vector<1x128xf32> to vector<8x128xf32>
    %60 = arith.addf %58, %59 : vector<8x128xf32>
    %cst_35 = arith.constant 0.000000e+00 : f32
    %61 = vector.broadcast %cst_35 : f32 to vector<8x128xf32>
    %62 = arith.maximumf %60, %61 : vector<8x128xf32>
    %63 = arith.truncf %62 : vector<8x128xf32> to vector<8x128xbf16>
    %c2_36 = arith.constant 2 : index
    %c0_37 = arith.constant 0 : index
    %c0_38 = arith.constant 0 : index
    %64 = vector.load %arg6[%c2_36, %c0_37, %c0_38] : memref<10x128x128xbf16, #tpu.memory_space<vmem>>, vector<1x128x128xbf16>
    %65 = vector.shape_cast %64 : vector<1x128x128xbf16> to vector<128x128xbf16>
    %cst_39 = arith.constant dense<0.000000e+00> : vector<8x128xf32>
    %66 = tpu.matmul %63, %65, %cst_39 {dimension_numbers = #tpu.dot_dimension_numbers<[1], [0], [0], [1], [0, 0, 1, 1], [], []>} : vector<8x128xbf16>, vector<128x128xbf16>, vector<8x128xf32> -> vector<8x128xf32>
    %67 = arith.addf %49, %66 : vector<8x128xf32>
    %c3 = arith.constant 3 : index
    %c0_40 = arith.constant 0 : index
    %c0_41 = arith.constant 0 : index
    %68 = vector.load %arg1[%c3, %c0_40, %c0_41] : memref<10x8x50xbf16, #tpu.memory_space<vmem>>, vector<1x8x50xbf16>
    %69 = vector.shape_cast %68 : vector<1x8x50xbf16> to vector<8x50xbf16>
    %cst_42 = arith.constant dense<0.000000e+00> : vector<8x320xf32>
    %70 = tpu.matmul %69, %0, %cst_42 {dimension_numbers = #tpu.dot_dimension_numbers<[1], [0], [0], [1], [0, 0, 1, 1], [], []>} : vector<8x50xbf16>, vector<50x320xbf16>, vector<8x320xf32> -> vector<8x320xf32>
    %71 = vector.broadcast %2 : vector<1x320xf32> to vector<8x320xf32>
    %72 = arith.addf %70, %71 : vector<8x320xf32>
    %cst_43 = arith.constant 0.000000e+00 : f32
    %73 = vector.broadcast %cst_43 : f32 to vector<8x320xf32>
    %74 = arith.maximumf %72, %73 : vector<8x320xf32>
    %75 = arith.truncf %74 : vector<8x320xf32> to vector<8x320xbf16>
    %cst_44 = arith.constant dense<0.000000e+00> : vector<8x128xf32>
    %76 = tpu.matmul %75, %1, %cst_44 {dimension_numbers = #tpu.dot_dimension_numbers<[1], [0], [0], [1], [0, 0, 1, 1], [], []>} : vector<8x320xbf16>, vector<320x128xbf16>, vector<8x128xf32> -> vector<8x128xf32>
    %77 = vector.broadcast %3 : vector<1x128xf32> to vector<8x128xf32>
    %78 = arith.addf %76, %77 : vector<8x128xf32>
    %cst_45 = arith.constant 0.000000e+00 : f32
    %79 = vector.broadcast %cst_45 : f32 to vector<8x128xf32>
    %80 = arith.maximumf %78, %79 : vector<8x128xf32>
    %81 = arith.truncf %80 : vector<8x128xf32> to vector<8x128xbf16>
    %c3_46 = arith.constant 3 : index
    %c0_47 = arith.constant 0 : index
    %c0_48 = arith.constant 0 : index
    %82 = vector.load %arg6[%c3_46, %c0_47, %c0_48] : memref<10x128x128xbf16, #tpu.memory_space<vmem>>, vector<1x128x128xbf16>
    %83 = vector.shape_cast %82 : vector<1x128x128xbf16> to vector<128x128xbf16>
    %cst_49 = arith.constant dense<0.000000e+00> : vector<8x128xf32>
    %84 = tpu.matmul %81, %83, %cst_49 {dimension_numbers = #tpu.dot_dimension_numbers<[1], [0], [0], [1], [0, 0, 1, 1], [], []>} : vector<8x128xbf16>, vector<128x128xbf16>, vector<8x128xf32> -> vector<8x128xf32>
    %85 = arith.addf %67, %84 : vector<8x128xf32>
    %c4 = arith.constant 4 : index
    %c0_50 = arith.constant 0 : index
    %c0_51 = arith.constant 0 : index
    %86 = vector.load %arg1[%c4, %c0_50, %c0_51] : memref<10x8x50xbf16, #tpu.memory_space<vmem>>, vector<1x8x50xbf16>
    %87 = vector.shape_cast %86 : vector<1x8x50xbf16> to vector<8x50xbf16>
    %cst_52 = arith.constant dense<0.000000e+00> : vector<8x320xf32>
    %88 = tpu.matmul %87, %0, %cst_52 {dimension_numbers = #tpu.dot_dimension_numbers<[1], [0], [0], [1], [0, 0, 1, 1], [], []>} : vector<8x50xbf16>, vector<50x320xbf16>, vector<8x320xf32> -> vector<8x320xf32>
    %89 = vector.broadcast %2 : vector<1x320xf32> to vector<8x320xf32>
    %90 = arith.addf %88, %89 : vector<8x320xf32>
    %cst_53 = arith.constant 0.000000e+00 : f32
    %91 = vector.broadcast %cst_53 : f32 to vector<8x320xf32>
    %92 = arith.maximumf %90, %91 : vector<8x320xf32>
    %93 = arith.truncf %92 : vector<8x320xf32> to vector<8x320xbf16>
    %cst_54 = arith.constant dense<0.000000e+00> : vector<8x128xf32>
    %94 = tpu.matmul %93, %1, %cst_54 {dimension_numbers = #tpu.dot_dimension_numbers<[1], [0], [0], [1], [0, 0, 1, 1], [], []>} : vector<8x320xbf16>, vector<320x128xbf16>, vector<8x128xf32> -> vector<8x128xf32>
    %95 = vector.broadcast %3 : vector<1x128xf32> to vector<8x128xf32>
    %96 = arith.addf %94, %95 : vector<8x128xf32>
    %cst_55 = arith.constant 0.000000e+00 : f32
    %97 = vector.broadcast %cst_55 : f32 to vector<8x128xf32>
    %98 = arith.maximumf %96, %97 : vector<8x128xf32>
    %99 = arith.truncf %98 : vector<8x128xf32> to vector<8x128xbf16>
    %c4_56 = arith.constant 4 : index
    %c0_57 = arith.constant 0 : index
    %c0_58 = arith.constant 0 : index
    %100 = vector.load %arg6[%c4_56, %c0_57, %c0_58] : memref<10x128x128xbf16, #tpu.memory_space<vmem>>, vector<1x128x128xbf16>
    %101 = vector.shape_cast %100 : vector<1x128x128xbf16> to vector<128x128xbf16>
    %cst_59 = arith.constant dense<0.000000e+00> : vector<8x128xf32>
    %102 = tpu.matmul %99, %101, %cst_59 {dimension_numbers = #tpu.dot_dimension_numbers<[1], [0], [0], [1], [0, 0, 1, 1], [], []>} : vector<8x128xbf16>, vector<128x128xbf16>, vector<8x128xf32> -> vector<8x128xf32>
    %103 = arith.addf %85, %102 : vector<8x128xf32>
    %c5 = arith.constant 5 : index
    %c0_60 = arith.constant 0 : index
    %c0_61 = arith.constant 0 : index
    %104 = vector.load %arg1[%c5, %c0_60, %c0_61] : memref<10x8x50xbf16, #tpu.memory_space<vmem>>, vector<1x8x50xbf16>
    %105 = vector.shape_cast %104 : vector<1x8x50xbf16> to vector<8x50xbf16>
    %cst_62 = arith.constant dense<0.000000e+00> : vector<8x320xf32>
    %106 = tpu.matmul %105, %0, %cst_62 {dimension_numbers = #tpu.dot_dimension_numbers<[1], [0], [0], [1], [0, 0, 1, 1], [], []>} : vector<8x50xbf16>, vector<50x320xbf16>, vector<8x320xf32> -> vector<8x320xf32>
    %107 = vector.broadcast %2 : vector<1x320xf32> to vector<8x320xf32>
    %108 = arith.addf %106, %107 : vector<8x320xf32>
    %cst_63 = arith.constant 0.000000e+00 : f32
    %109 = vector.broadcast %cst_63 : f32 to vector<8x320xf32>
    %110 = arith.maximumf %108, %109 : vector<8x320xf32>
    %111 = arith.truncf %110 : vector<8x320xf32> to vector<8x320xbf16>
    %cst_64 = arith.constant dense<0.000000e+00> : vector<8x128xf32>
    %112 = tpu.matmul %111, %1, %cst_64 {dimension_numbers = #tpu.dot_dimension_numbers<[1], [0], [0], [1], [0, 0, 1, 1], [], []>} : vector<8x320xbf16>, vector<320x128xbf16>, vector<8x128xf32> -> vector<8x128xf32>
    %113 = vector.broadcast %3 : vector<1x128xf32> to vector<8x128xf32>
    %114 = arith.addf %112, %113 : vector<8x128xf32>
    %cst_65 = arith.constant 0.000000e+00 : f32
    %115 = vector.broadcast %cst_65 : f32 to vector<8x128xf32>
    %116 = arith.maximumf %114, %115 : vector<8x128xf32>
    %117 = arith.truncf %116 : vector<8x128xf32> to vector<8x128xbf16>
    %c5_66 = arith.constant 5 : index
    %c0_67 = arith.constant 0 : index
    %c0_68 = arith.constant 0 : index
    %118 = vector.load %arg6[%c5_66, %c0_67, %c0_68] : memref<10x128x128xbf16, #tpu.memory_space<vmem>>, vector<1x128x128xbf16>
    %119 = vector.shape_cast %118 : vector<1x128x128xbf16> to vector<128x128xbf16>
    %cst_69 = arith.constant dense<0.000000e+00> : vector<8x128xf32>
    %120 = tpu.matmul %117, %119, %cst_69 {dimension_numbers = #tpu.dot_dimension_numbers<[1], [0], [0], [1], [0, 0, 1, 1], [], []>} : vector<8x128xbf16>, vector<128x128xbf16>, vector<8x128xf32> -> vector<8x128xf32>
    %121 = arith.addf %103, %120 : vector<8x128xf32>
    %c6 = arith.constant 6 : index
    %c0_70 = arith.constant 0 : index
    %c0_71 = arith.constant 0 : index
    %122 = vector.load %arg1[%c6, %c0_70, %c0_71] : memref<10x8x50xbf16, #tpu.memory_space<vmem>>, vector<1x8x50xbf16>
    %123 = vector.shape_cast %122 : vector<1x8x50xbf16> to vector<8x50xbf16>
    %cst_72 = arith.constant dense<0.000000e+00> : vector<8x320xf32>
    %124 = tpu.matmul %123, %0, %cst_72 {dimension_numbers = #tpu.dot_dimension_numbers<[1], [0], [0], [1], [0, 0, 1, 1], [], []>} : vector<8x50xbf16>, vector<50x320xbf16>, vector<8x320xf32> -> vector<8x320xf32>
    %125 = vector.broadcast %2 : vector<1x320xf32> to vector<8x320xf32>
    %126 = arith.addf %124, %125 : vector<8x320xf32>
    %cst_73 = arith.constant 0.000000e+00 : f32
    %127 = vector.broadcast %cst_73 : f32 to vector<8x320xf32>
    %128 = arith.maximumf %126, %127 : vector<8x320xf32>
    %129 = arith.truncf %128 : vector<8x320xf32> to vector<8x320xbf16>
    %cst_74 = arith.constant dense<0.000000e+00> : vector<8x128xf32>
    %130 = tpu.matmul %129, %1, %cst_74 {dimension_numbers = #tpu.dot_dimension_numbers<[1], [0], [0], [1], [0, 0, 1, 1], [], []>} : vector<8x320xbf16>, vector<320x128xbf16>, vector<8x128xf32> -> vector<8x128xf32>
    %131 = vector.broadcast %3 : vector<1x128xf32> to vector<8x128xf32>
    %132 = arith.addf %130, %131 : vector<8x128xf32>
    %cst_75 = arith.constant 0.000000e+00 : f32
    %133 = vector.broadcast %cst_75 : f32 to vector<8x128xf32>
    %134 = arith.maximumf %132, %133 : vector<8x128xf32>
    %135 = arith.truncf %134 : vector<8x128xf32> to vector<8x128xbf16>
    %c6_76 = arith.constant 6 : index
    %c0_77 = arith.constant 0 : index
    %c0_78 = arith.constant 0 : index
    %136 = vector.load %arg6[%c6_76, %c0_77, %c0_78] : memref<10x128x128xbf16, #tpu.memory_space<vmem>>, vector<1x128x128xbf16>
    %137 = vector.shape_cast %136 : vector<1x128x128xbf16> to vector<128x128xbf16>
    %cst_79 = arith.constant dense<0.000000e+00> : vector<8x128xf32>
    %138 = tpu.matmul %135, %137, %cst_79 {dimension_numbers = #tpu.dot_dimension_numbers<[1], [0], [0], [1], [0, 0, 1, 1], [], []>} : vector<8x128xbf16>, vector<128x128xbf16>, vector<8x128xf32> -> vector<8x128xf32>
    %139 = arith.addf %121, %138 : vector<8x128xf32>
    %c7 = arith.constant 7 : index
    %c0_80 = arith.constant 0 : index
    %c0_81 = arith.constant 0 : index
    %140 = vector.load %arg1[%c7, %c0_80, %c0_81] : memref<10x8x50xbf16, #tpu.memory_space<vmem>>, vector<1x8x50xbf16>
    %141 = vector.shape_cast %140 : vector<1x8x50xbf16> to vector<8x50xbf16>
    %cst_82 = arith.constant dense<0.000000e+00> : vector<8x320xf32>
    %142 = tpu.matmul %141, %0, %cst_82 {dimension_numbers = #tpu.dot_dimension_numbers<[1], [0], [0], [1], [0, 0, 1, 1], [], []>} : vector<8x50xbf16>, vector<50x320xbf16>, vector<8x320xf32> -> vector<8x320xf32>
    %143 = vector.broadcast %2 : vector<1x320xf32> to vector<8x320xf32>
    %144 = arith.addf %142, %143 : vector<8x320xf32>
    %cst_83 = arith.constant 0.000000e+00 : f32
    %145 = vector.broadcast %cst_83 : f32 to vector<8x320xf32>
    %146 = arith.maximumf %144, %145 : vector<8x320xf32>
    %147 = arith.truncf %146 : vector<8x320xf32> to vector<8x320xbf16>
    %cst_84 = arith.constant dense<0.000000e+00> : vector<8x128xf32>
    %148 = tpu.matmul %147, %1, %cst_84 {dimension_numbers = #tpu.dot_dimension_numbers<[1], [0], [0], [1], [0, 0, 1, 1], [], []>} : vector<8x320xbf16>, vector<320x128xbf16>, vector<8x128xf32> -> vector<8x128xf32>
    %149 = vector.broadcast %3 : vector<1x128xf32> to vector<8x128xf32>
    %150 = arith.addf %148, %149 : vector<8x128xf32>
    %cst_85 = arith.constant 0.000000e+00 : f32
    %151 = vector.broadcast %cst_85 : f32 to vector<8x128xf32>
    %152 = arith.maximumf %150, %151 : vector<8x128xf32>
    %153 = arith.truncf %152 : vector<8x128xf32> to vector<8x128xbf16>
    %c7_86 = arith.constant 7 : index
    %c0_87 = arith.constant 0 : index
    %c0_88 = arith.constant 0 : index
    %154 = vector.load %arg6[%c7_86, %c0_87, %c0_88] : memref<10x128x128xbf16, #tpu.memory_space<vmem>>, vector<1x128x128xbf16>
    %155 = vector.shape_cast %154 : vector<1x128x128xbf16> to vector<128x128xbf16>
    %cst_89 = arith.constant dense<0.000000e+00> : vector<8x128xf32>
    %156 = tpu.matmul %153, %155, %cst_89 {dimension_numbers = #tpu.dot_dimension_numbers<[1], [0], [0], [1], [0, 0, 1, 1], [], []>} : vector<8x128xbf16>, vector<128x128xbf16>, vector<8x128xf32> -> vector<8x128xf32>
    %157 = arith.addf %139, %156 : vector<8x128xf32>
    %c8 = arith.constant 8 : index
    %c0_90 = arith.constant 0 : index
    %c0_91 = arith.constant 0 : index
    %158 = vector.load %arg1[%c8, %c0_90, %c0_91] : memref<10x8x50xbf16, #tpu.memory_space<vmem>>, vector<1x8x50xbf16>
    %159 = vector.shape_cast %158 : vector<1x8x50xbf16> to vector<8x50xbf16>
    %cst_92 = arith.constant dense<0.000000e+00> : vector<8x320xf32>
    %160 = tpu.matmul %159, %0, %cst_92 {dimension_numbers = #tpu.dot_dimension_numbers<[1], [0], [0], [1], [0, 0, 1, 1], [], []>} : vector<8x50xbf16>, vector<50x320xbf16>, vector<8x320xf32> -> vector<8x320xf32>
    %161 = vector.broadcast %2 : vector<1x320xf32> to vector<8x320xf32>
    %162 = arith.addf %160, %161 : vector<8x320xf32>
    %cst_93 = arith.constant 0.000000e+00 : f32
    %163 = vector.broadcast %cst_93 : f32 to vector<8x320xf32>
    %164 = arith.maximumf %162, %163 : vector<8x320xf32>
    %165 = arith.truncf %164 : vector<8x320xf32> to vector<8x320xbf16>
    %cst_94 = arith.constant dense<0.000000e+00> : vector<8x128xf32>
    %166 = tpu.matmul %165, %1, %cst_94 {dimension_numbers = #tpu.dot_dimension_numbers<[1], [0], [0], [1], [0, 0, 1, 1], [], []>} : vector<8x320xbf16>, vector<320x128xbf16>, vector<8x128xf32> -> vector<8x128xf32>
    %167 = vector.broadcast %3 : vector<1x128xf32> to vector<8x128xf32>
    %168 = arith.addf %166, %167 : vector<8x128xf32>
    %cst_95 = arith.constant 0.000000e+00 : f32
    %169 = vector.broadcast %cst_95 : f32 to vector<8x128xf32>
    %170 = arith.maximumf %168, %169 : vector<8x128xf32>
    %171 = arith.truncf %170 : vector<8x128xf32> to vector<8x128xbf16>
    %c8_96 = arith.constant 8 : index
    %c0_97 = arith.constant 0 : index
    %c0_98 = arith.constant 0 : index
    %172 = vector.load %arg6[%c8_96, %c0_97, %c0_98] : memref<10x128x128xbf16, #tpu.memory_space<vmem>>, vector<1x128x128xbf16>
    %173 = vector.shape_cast %172 : vector<1x128x128xbf16> to vector<128x128xbf16>
    %cst_99 = arith.constant dense<0.000000e+00> : vector<8x128xf32>
    %174 = tpu.matmul %171, %173, %cst_99 {dimension_numbers = #tpu.dot_dimension_numbers<[1], [0], [0], [1], [0, 0, 1, 1], [], []>} : vector<8x128xbf16>, vector<128x128xbf16>, vector<8x128xf32> -> vector<8x128xf32>
    %175 = arith.addf %157, %174 : vector<8x128xf32>
    %c9 = arith.constant 9 : index
    %c0_100 = arith.constant 0 : index
    %c0_101 = arith.constant 0 : index
    %176 = vector.load %arg1[%c9, %c0_100, %c0_101] : memref<10x8x50xbf16, #tpu.memory_space<vmem>>, vector<1x8x50xbf16>
    %177 = vector.shape_cast %176 : vector<1x8x50xbf16> to vector<8x50xbf16>
    %cst_102 = arith.constant dense<0.000000e+00> : vector<8x320xf32>
    %178 = tpu.matmul %177, %0, %cst_102 {dimension_numbers = #tpu.dot_dimension_numbers<[1], [0], [0], [1], [0, 0, 1, 1], [], []>} : vector<8x50xbf16>, vector<50x320xbf16>, vector<8x320xf32> -> vector<8x320xf32>
    %179 = vector.broadcast %2 : vector<1x320xf32> to vector<8x320xf32>
    %180 = arith.addf %178, %179 : vector<8x320xf32>
    %cst_103 = arith.constant 0.000000e+00 : f32
    %181 = vector.broadcast %cst_103 : f32 to vector<8x320xf32>
    %182 = arith.maximumf %180, %181 : vector<8x320xf32>
    %183 = arith.truncf %182 : vector<8x320xf32> to vector<8x320xbf16>
    %cst_104 = arith.constant dense<0.000000e+00> : vector<8x128xf32>
    %184 = tpu.matmul %183, %1, %cst_104 {dimension_numbers = #tpu.dot_dimension_numbers<[1], [0], [0], [1], [0, 0, 1, 1], [], []>} : vector<8x320xbf16>, vector<320x128xbf16>, vector<8x128xf32> -> vector<8x128xf32>
    %185 = vector.broadcast %3 : vector<1x128xf32> to vector<8x128xf32>
    %186 = arith.addf %184, %185 : vector<8x128xf32>
    %cst_105 = arith.constant 0.000000e+00 : f32
    %187 = vector.broadcast %cst_105 : f32 to vector<8x128xf32>
    %188 = arith.maximumf %186, %187 : vector<8x128xf32>
    %189 = arith.truncf %188 : vector<8x128xf32> to vector<8x128xbf16>
    %c9_106 = arith.constant 9 : index
    %c0_107 = arith.constant 0 : index
    %c0_108 = arith.constant 0 : index
    %190 = vector.load %arg6[%c9_106, %c0_107, %c0_108] : memref<10x128x128xbf16, #tpu.memory_space<vmem>>, vector<1x128x128xbf16>
    %191 = vector.shape_cast %190 : vector<1x128x128xbf16> to vector<128x128xbf16>
    %cst_109 = arith.constant dense<0.000000e+00> : vector<8x128xf32>
    %192 = tpu.matmul %189, %191, %cst_109 {dimension_numbers = #tpu.dot_dimension_numbers<[1], [0], [0], [1], [0, 0, 1, 1], [], []>} : vector<8x128xbf16>, vector<128x128xbf16>, vector<8x128xf32> -> vector<8x128xf32>
    %193 = arith.addf %175, %192 : vector<8x128xf32>
    %c0_110 = arith.constant 0 : index
    %c0_111 = arith.constant 0 : index
    %194 = vector.load %arg8[%c0_110, %c0_111] : memref<8x128xf32, #tpu.memory_space<vmem>>, vector<8x128xf32>
    tpu.vector_store %arg8[%c0_110, %c0_111], %193 {strides = array<i32>} : memref<8x128xf32, #tpu.memory_space<vmem>>, vector<8x128xf32>,
    return
  }
  func.func @transform_0(%arg0: i32) -> (i32, i32, i32) {
    %c0_i32 = arith.constant 0 : i32
    %c0_i32_0 = arith.constant 0 : i32
    %c0_i32_1 = arith.constant 0 : i32
    return %c0_i32, %arg0, %c0_i32_0 : i32, i32, i32
  }
  func.func @transform_1(%arg0: i32) -> (i32, i32) {
    %c0_i32 = arith.constant 0 : i32
    %c0_i32_0 = arith.constant 0 : i32
    %c0_i32_1 = arith.constant 0 : i32
    return %c0_i32, %c0_i32_0 : i32, i32
  }
  func.func @transform_2(%arg0: i32) -> (i32, i32) {
    %c0_i32 = arith.constant 0 : i32
    %c0_i32_0 = arith.constant 0 : i32
    %c0_i32_1 = arith.constant 0 : i32
    return %c0_i32, %c0_i32_0 : i32, i32
  }
  func.func @transform_3(%arg0: i32) -> (i32, i32) {
    %c0_i32 = arith.constant 0 : i32
    %c0_i32_0 = arith.constant 0 : i32
    %c0_i32_1 = arith.constant 0 : i32
    return %c0_i32, %c0_i32_0 : i32, i32
  }
  func.func @transform_4(%arg0: i32) -> (i32, i32) {
    %c0_i32 = arith.constant 0 : i32
    %c0_i32_0 = arith.constant 0 : i32
    %c0_i32_1 = arith.constant 0 : i32
    return %c0_i32, %c0_i32_0 : i32, i32
  }
  func.func @transform_5(%arg0: i32) -> (i32, i32, i32) {
    %c0_i32 = arith.constant 0 : i32
    %c0_i32_0 = arith.constant 0 : i32
    %c0_i32_1 = arith.constant 0 : i32
    %c0_i32_2 = arith.constant 0 : i32
    return %c0_i32, %c0_i32_0, %c0_i32_1 : i32, i32, i32
  }
  func.func @transform_6(%arg0: i32) -> (i32, i32) {
    %c0_i32 = arith.constant 0 : i32
    %c0_i32_0 = arith.constant 0 : i32
    %c0_i32_1 = arith.constant 0 : i32
    return %c0_i32, %c0_i32_0 : i32, i32
  }
  func.func @transform_7(%arg0: i32) -> (i32, i32) {
    %c0_i32 = arith.constant 0 : i32
    %c0_i32_0 = arith.constant 0 : i32
    return %arg0, %c0_i32 : i32, i32
  }
}

</mosaic_0001>

<llo_original>
// kernel: music_rhythm_embedding.1
$region0: #{music_rhythm_embedding.1}
  #allocation0 [shape = 'u32[]', space=smem, size = 0x4, offset = 0x4, fixed_abs, tag = 'smem constant byte address 0x4 - core index']
  #allocation1 [shape = 'u32[144,128]{1,0:T(1,128)}', space=vmem, size = 0x12000, scoped, tag = 'internal scratch']
  %s0 = inlined_call_operand.vmem [shape: bf16[10,8,50], index: 0, kind: input, shape index: {}]
  %s1 = inlined_call_operand.vmem [shape: bf16[50,320], index: 1, kind: input, shape index: {}]
  %s2 = inlined_call_operand.vmem [shape: f32[1,320], index: 2, kind: input, shape index: {}]
  %s3 = inlined_call_operand.vmem [shape: bf16[320,128], index: 3, kind: input, shape index: {}]
  %s4 = inlined_call_operand.vmem [shape: f32[1,128], index: 4, kind: input, shape index: {}]
  %s5 = inlined_call_operand.hbm [shape: bf16[10,128,128], index: 5, kind: input, shape index: {}]
  %s6 = inlined_call_operand.vmem [shape: f32[1,128], index: 6, kind: input, shape index: {}]
  %s7 = inlined_call_operand.vmem [shape: f32[8,128], index: 7, kind: output, shape index: {}]
  %s8 = sld [smem:[#allocation0]]
  $region42: #{music_rhythm_embedding.1} parent=0
    _
  %s10 = ssub.s32 1, %s8
  %s11 = scalar_select 0, %s10, %s8
  $region1: #{music_rhythm_embedding.1} parent=0
    #allocation2 [shape = 'u8[327680]{0}', space=vmem, size = 0x50000, scoped, tag = 'input window, operand 5, single buffered']
    #allocation3 [shape = 's32[1]{0}', space=sflag, size = 0x4, scoped, tag = 'scoped memory for music_rhythm_embedding.1']
    %12 = vsyncpa [#allocation3], 0
    // Predicated region
    $region2: #{music_rhythm_embedding.1} parent=1 // pred_check
      _
    $region3: #{music_rhythm_embedding.1} parent=1 // pred_check_branch
      %14 = sbr.rel (0) target = $region5
    $region4: #{music_rhythm_embedding.1} parent=1 // pred_region
      _
    $region5: #{music_rhythm_embedding.1} parent=1 // pred_fallthru
      _
    // Predicated region
    $region6: #{music_rhythm_embedding.1} parent=1 // pred_check
      _
    $region7: #{music_rhythm_embedding.1} parent=1 // pred_check_branch
      %16 = sbr.rel (0) target = $region9
    $region8: #{music_rhythm_embedding.1} parent=1 // pred_region
      _
    $region9: #{music_rhythm_embedding.1} parent=1 // pred_fallthru
      _
    // Predicated region
    $region10: #{music_rhythm_embedding.1} parent=1 // pred_check
      _
    $region11: #{music_rhythm_embedding.1} parent=1 // pred_check_branch
      %18 = sbr.rel (0) target = $region13
    $region12: #{music_rhythm_embedding.1} parent=1 // pred_region
      _
    $region13: #{music_rhythm_embedding.1} parent=1 // pred_fallthru
      _
    // Predicated region
    $region14: #{music_rhythm_embedding.1} parent=1 // pred_check
      _
    $region15: #{music_rhythm_embedding.1} parent=1 // pred_check_branch
      %20 = sbr.rel (0) target = $region17
    $region16: #{music_rhythm_embedding.1} parent=1 // pred_region
      _
    $region17: #{music_rhythm_embedding.1} parent=1 // pred_fallthru
      _
    // Predicated region
    $region18: #{music_rhythm_embedding.1} parent=1 // pred_check
      _
    $region19: #{music_rhythm_embedding.1} parent=1 // pred_check_branch
      %22 = sbr.rel (0) target = $region21
    $region20: #{music_rhythm_embedding.1} parent=1 // pred_region
      _
    $region21: #{music_rhythm_embedding.1} parent=1 // pred_fallthru
      _
    // Predicated region
    $region22: #{music_rhythm_embedding.1} parent=1 // pred_check
      _
    $region23: #{music_rhythm_embedding.1} parent=1 // pred_check_branch
      %24 = sbr.rel (0) target = $region25
    $region24: #{music_rhythm_embedding.1} parent=1 // pred_region
      %s26 = ssub.s32 10240, 10240
      %27 = vsyncadd [#allocation3], %s26
      %s28 = sshll.u32 [#allocation2], 4
      %s29 = int_to_ptr.vmem [resolvable:$true] %s28
      %34 = dma.hbm_to_vmem [thread:$0]  %s5, 10240, %s29, [#allocation3], 64, 64, 4
    $region25: #{music_rhythm_embedding.1} parent=1 // pred_fallthru
      _
    // Predicated region
    $region26: #{music_rhythm_embedding.1} parent=1 // pred_check
      _
    $region27: #{music_rhythm_embedding.1} parent=1 // pred_check_branch
      %36 = sbr.rel (0) target = $region29
    $region28: #{music_rhythm_embedding.1} parent=1 // pred_region
      _
    $region29: #{music_rhythm_embedding.1} parent=1 // pred_fallthru
      _
    // Predicated region
    $region30: #{music_rhythm_embedding.1} parent=1 // pred_check
      _
    $region31: #{music_rhythm_embedding.1} parent=1 // pred_check_branch
      %38 = sbr.rel (0) target = $region33
    $region32: #{music_rhythm_embedding.1} parent=1 // pred_region
      %39 = dma.done [#allocation3], 10240
    $region33: #{music_rhythm_embedding.1} parent=1 // pred_fallthru
      _
    %v41 = vld [vmem:[%s1] sm:$0xff]
    %v42 = vld [vmem:[%s1 + $0x8] sm:$0xf]
    %v43 = vld [vmem:[%s1 + $0xc] sm:$0xff]
    %v44 = vld [vmem:[%s1 + $0x14] sm:$0xf]
    %v45 = vld [vmem:[%s1 + $0x18] sm:$0xff]
    %v46 = vld [vmem:[%s1 + $0x20] sm:$0xf]
    %v47 = vld [vmem:[%s1 + $0x24] sm:$0xff]
    %v48 = vld [vmem:[%s1 + $0x2c] sm:$0xf]
    %v49 = vld [vmem:[%s1 + $0x30] sm:$0xff]
    %v50 = vld [vmem:[%s1 + $0x38] sm:$0xf]
    %v51 = vld [vmem:[%s1 + $0x3c] sm:$0xff]
    %v52 = vld [vmem:[%s1 + $0x44] sm:$0xf]
    %v53 = vld [vmem:[%s1 + $0x48] sm:$0x11]
    %v54 = vld [vmem:[%s1 + $0x50] sm:$0x1]
    %v55 = vld [vmem:[%s3] sm:$0xf]
    %v56 = vld [vmem:[%s3 + $0x4] sm:$0xf]
    %v57 = vld [vmem:[%s3 + $0x8] sm:$0xf]
    %v58 = vld [vmem:[%s3 + $0xc] sm:$0xf]
    %v59 = vld [vmem:[%s3 + $0x10] sm:$0xf]
    %v60 = vld [vmem:[%s3 + $0x14] sm:$0xf]
    %v61 = vld [vmem:[%s3 + $0x18] sm:$0xf]
    %v62 = vld [vmem:[%s3 + $0x1c] sm:$0xf]
    %v63 = vld [vmem:[%s3 + $0x20] sm:$0xf]
    %v64 = vld [vmem:[%s3 + $0x24] sm:$0xf]
    %v65 = vld [vmem:[%s3 + $0x28] sm:$0xf]
    %v66 = vld [vmem:[%s3 + $0x2c] sm:$0xf]
    %v67 = vld [vmem:[%s3 + $0x30] sm:$0xf]
    %v68 = vld [vmem:[%s3 + $0x34] sm:$0xf]
    %v69 = vld [vmem:[%s3 + $0x38] sm:$0xf]
    %v70 = vld [vmem:[%s3 + $0x3c] sm:$0xf]
    %v71 = vld [vmem:[%s3 + $0x40] sm:$0xf]
    %v72 = vld [vmem:[%s3 + $0x44] sm:$0xf]
    %v73 = vld [vmem:[%s3 + $0x48] sm:$0xf]
    %v74 = vld [vmem:[%s3 + $0x4c] sm:$0xf]
    %v75 = vld [vmem:[%s3 + $0x50] sm:$0xf]
    %v76 = vld [vmem:[%s3 + $0x54] sm:$0xf]
    %v77 = vld [vmem:[%s3 + $0x58] sm:$0xf]
    %v78 = vld [vmem:[%s3 + $0x5c] sm:$0xf]
    %v79 = vld [vmem:[%s3 + $0x60] sm:$0xf]
    %v80 = vld [vmem:[%s3 + $0x64] sm:$0xf]
    %v81 = vld [vmem:[%s3 + $0x68] sm:$0xf]
    %v82 = vld [vmem:[%s3 + $0x6c] sm:$0xf]
    %v83 = vld [vmem:[%s3 + $0x70] sm:$0xf]
    %v84 = vld [vmem:[%s3 + $0x74] sm:$0xf]
    %v85 = vld [vmem:[%s3 + $0x78] sm:$0xf]
    %v86 = vld [vmem:[%s3 + $0x7c] sm:$0xf]
    %v87 = vld [vmem:[%s3 + $0x80] sm:$0xf]
    %v88 = vld [vmem:[%s3 + $0x84] sm:$0xf]
    %v89 = vld [vmem:[%s3 + $0x88] sm:$0xf]
    %v90 = vld [vmem:[%s3 + $0x8c] sm:$0xf]
    %v91 = vld [vmem:[%s3 + $0x90] sm:$0xf]
    %v92 = vld [vmem:[%s3 + $0x94] sm:$0xf]
    %v93 = vld [vmem:[%s3 + $0x98] sm:$0xf]
    %v94 = vld [vmem:[%s3 + $0x9c] sm:$0xf]
    %v95 = vld [vmem:[%s2] sm:$0x7]
    %v96 = vld [vmem:[%s4] sm:$0x1]
    %v97 = vld [vmem:[%s6] sm:$0x1]
    %v99 = vlaneseq
    %v100 = vshrl.u32 %v99, 7
    %v101 = vsub.s32 0, %v100
    %v102 = vrot.slane %v97, %v101
    %v104 = vlaneseq
    %v105 = vand.u32 %v104, 127
    %v106 = vadd.s32 %v105, 128
    %v107 = vadd.s32 %v105, 256
    %v108 = vld [vmem:[%s0] sm:$0xf]
    %v110 = vlaneseq
    %v111 = vshrl.u32 %v110, 7
    %v112 = vsub.s32 0, %v111
    %v113 = vrot.slane %v95, %v112
    %v114 = vlaneseq
    %v115 = vshrl.u32 %v114, 7
    %v116 = vsub.s32 1, %v115
    %v117 = vrot.slane %v95, %v116
    %v118 = vlaneseq
    %v119 = vshrl.u32 %v118, 7
    %v120 = vsub.s32 2, %v119
    %v121 = vrot.slane %v95, %v120
    %v139 = vunpack.c.l.b16 %v41
    %v140 = vunpack.c.h.b16 %v41
    %v141 = vunpack.c.l.b16 %v42
    %v142 = vunpack.c.l.b16 %v43
    %v143 = vunpack.c.h.b16 %v43
    %v144 = vunpack.c.l.b16 %v44
    %v145 = vunpack.c.l.b16 %v45
    %v146 = vunpack.c.h.b16 %v45
    %v147 = vunpack.c.l.b16 %v46
    %v148 = vunpack.c.l.b16 %v47
    %v149 = vunpack.c.h.b16 %v47
    %v150 = vunpack.c.l.b16 %v48
    %v151 = vunpack.c.l.b16 %v49
    %v152 = vunpack.c.h.b16 %v49
    %v153 = vunpack.c.l.b16 %v50
    %v154 = vunpack.c.l.b16 %v51
    %v155 = vunpack.c.h.b16 %v51
    %v156 = vunpack.c.l.b16 %v52
    %v157 = vunpack.c.l.b16 %v53
    %v158 = vunpack.c.h.b16 %v53
    %v159 = vunpack.c.l.b16 %v54
    %v160 = vpack.c.b16 %v142, %v139
    %v161 = vpack.c.b16 %v143, %v140
    %v162 = vpack.c.b16 %v144, %v141
    %v163 = vpack.c.b16 %v148, %v145
    %v164 = vpack.c.b16 %v149, %v146
    %v165 = vpack.c.b16 %v150, %v147
    %v166 = vpack.c.b16 %v154, %v151
    %v167 = vpack.c.b16 %v155, %v152
    %v168 = vpack.c.b16 %v156, %v153
    %v169 = vpack.c.b16 %v157, %v157
    %v170 = vpack.c.b16 %v158, %v158
    %v171 = vpack.c.b16 %v159, %v159
    %vm181 = vcmask 408576
    %v183 = vsel %vm181, %v108, 0
    %vm185 = vcmask 1040384
    %v187 = vsel %vm185, %v169, 0
    %v190 = vsel %vm185, %v170, 0
    %v193 = vsel %vm185, %v171, 0
    %195 = vmatprep.subr.bf16.mxu0 %v161
    %196 = vmatpush1.bf16.msra.mxu0 %v160
    %197 = vmatprep.subr.bf16.mxu0 %v164
    %198 = vmatpush1.bf16.msra.mxu0 %v163
    %199 = vmatprep.subr.bf16.mxu0 %v167
    %200 = vmatpush1.bf16.msra.mxu0 %v166
    %201 = vmatprep.subr.bf16.mxu0 %v190
    %202 = vmatpush1.bf16.msra.mxu0 %v187
    %203 = vmatprep.subr.bf16.mxu0 0
    %204 = vmatpush1.bf16.msra.mxu0 0
    %205 = vmatprep.subr.bf16.mxu0 0
    %206 = vmatpush1.bf16.msra.mxu0 0
    %207 = vmatprep.subr.bf16.mxu0 0
    %208 = vmatpush1.bf16.msra.mxu0 0
    %209 = vmatprep.subr.bf16.mxu0 0
    %210 = vmatpush1.bf16.msra.mxu0 0
    %211 = vmatprep.subr.bf16.mxu0 0
    %212 = vmatpush1.bf16.msra.mxu0 0
    %213 = vmatprep.subr.bf16.mxu0 0
    %214 = vmatpush1.bf16.msra.mxu0 0
    %215 = vmatprep.subr.bf16.mxu0 0
    %216 = vmatpush1.bf16.msra.mxu0 0
    %217 = vmatprep.subr.bf16.mxu0 0
    %218 = vmatpush1.bf16.msra.mxu0 0
    %219 = vmatprep.subr.bf16.mxu0 0
    %220 = vmatpush1.bf16.msra.mxu0 0
    %221 = vmatprep.subr.bf16.mxu0 0
    %222 = vmatpush1.bf16.msra.mxu0 0
    %223 = vmatprep.subr.bf16.mxu0 0
    %224 = vmatpush1.bf16.msra.mxu0 0
    %225 = vmatprep.subr.bf16.mxu0 0
    %226 = vmatpush1.bf16.msra.mxu0 0
    %227 = vmatprep.mubr.bf16.mxu0 0
    %228 = vmatmul.mubr.bf16.gmra.mrb[0].mxu0 %v183
    %v229 = vpop.f32.mrb[0].mxu0
    %v230 = vadd.f32 %v113, %v229
    %v231 = vpop.f32.mrb[0].mxu0
    %v232 = vadd.f32 %v117, %v231
    %v233 = vpop.f32.mrb[0].mxu0
    %v234 = vpop.f32.mrb[0].mxu0
    %235 = vdwg.mxu0
    %236 = vmatprep.subr.bf16.mxu0 0
    %237 = vmatpush1.bf16.msra.mxu0 %v162
    %238 = vmatprep.subr.bf16.mxu0 0
    %239 = vmatpush1.bf16.msra.mxu0 %v165
    %240 = vmatprep.subr.bf16.mxu0 0
    %241 = vmatpush1.bf16.msra.mxu0 %v168
    %242 = vmatprep.subr.bf16.mxu0 0
    %243 = vmatpush1.bf16.msra.mxu0 %v193
    %244 = vmatprep.subr.bf16.mxu0 0
    %245 = vmatpush1.bf16.msra.mxu0 0
    %246 = vmatprep.subr.bf16.mxu0 0
    %247 = vmatpush1.bf16.msra.mxu0 0
    %248 = vmatprep.subr.bf16.mxu0 0
    %249 = vmatpush1.bf16.msra.mxu0 0
    %250 = vmatprep.subr.bf16.mxu0 0
    %251 = vmatpush1.bf16.msra.mxu0 0
    %252 = vmatprep.subr.bf16.mxu0 0
    %253 = vmatpush1.bf16.msra.mxu0 0
    %254 = vmatprep.subr.bf16.mxu0 0
    %255 = vmatpush1.bf16.msra.mxu0 0
    %256 = vmatprep.subr.bf16.mxu0 0
    %257 = vmatpush1.bf16.msra.mxu0 0
    %258 = vmatprep.subr.bf16.mxu0 0
    %259 = vmatpush1.bf16.msra.mxu0 0
    %260 = vmatprep.subr.bf16.mxu0 0
    %261 = vmatpush1.bf16.msra.mxu0 0
    %262 = vmatprep.subr.bf16.mxu0 0
    %263 = vmatpush1.bf16.msra.mxu0 0
    %264 = vmatprep.subr.bf16.mxu0 0
    %265 = vmatpush1.bf16.msra.mxu0 0
    %266 = vmatprep.subr.bf16.mxu0 0
    %267 = vmatpush1.bf16.msra.mxu0 0
    %268 = vmatprep.mubr.bf16.mxu0 0
    %269 = vmatmul.mubr.bf16.gmra.mrb[0].mxu0 %v183
    %v270 = vpop.f32.mrb[0].mxu0
    %v271 = vadd.f32 %v121, %v270
    %v272 = vpop.f32.mrb[0].mxu0
    %v273 = vpop.f32.mrb[0].mxu0
    %v274 = vpop.f32.mrb[0].mxu0
    %275 = vdwg.mxu0
    %v276 = vmax.f32 %v230, 0.0
    %v277 = vmax.f32 %v232, 0.0
    %v278 = vmax.f32 %v271, 0.0
    %vm279 = vcmp.lt.s32.totalorder %v105, 128
    %vm280 = vcmp.lt.s32.totalorder %v106, 128
    %vm281 = vcmp.lt.s32.totalorder %v107, 128
    %v282 = vsel %vm279, 1, 0
    %v283 = vsel %vm280, 1, 0
    %v284 = vsel %vm281, 1, 0
    %vm285 = vcmp.eq.s32.totalorder %v282, 1
    %vm286 = vcmp.eq.s32.totalorder %v283, 1
    %vm287 = vcmp.eq.s32.totalorder %v284, 1
    %v288 = vsel %vm285, 0.0, %v276
    %v289 = vsel %vm286, 0.0, %v277
    %v290 = vsel %vm287, 0.0, %v278
    %v291 = vpack.c.bf16 %v288, %v288
    %v292 = vpack.c.bf16 %v289, %v289
    %v293 = vpack.c.bf16 %v290, %v290
    %v295 = vlaneseq
    %v296 = vshrl.u32 %v295, 7
    %v297 = vsub.s32 0, %v296
    %v298 = vrot.slane %v96, %v297
    %v340 = vunpack.c.l.b16 %v55
    %v341 = vunpack.c.l.b16 %v56
    %v342 = vunpack.c.l.b16 %v57
    %v343 = vunpack.c.l.b16 %v58
    %v344 = vunpack.c.l.b16 %v59
    %v345 = vunpack.c.l.b16 %v60
    %v346 = vunpack.c.l.b16 %v61
    %v347 = vunpack.c.l.b16 %v62
    %v348 = vunpack.c.l.b16 %v63
    %v349 = vunpack.c.l.b16 %v64
    %v350 = vunpack.c.l.b16 %v65
    %v351 = vunpack.c.l.b16 %v66
    %v352 = vunpack.c.l.b16 %v67
    %v353 = vunpack.c.l.b16 %v68
    %v354 = vunpack.c.l.b16 %v69
    %v355 = vunpack.c.l.b16 %v70
    %v356 = vunpack.c.l.b16 %v71
    %v357 = vunpack.c.l.b16 %v72
    %v358 = vunpack.c.l.b16 %v73
    %v359 = vunpack.c.l.b16 %v74
    %v360 = vunpack.c.l.b16 %v75
    %v361 = vunpack.c.l.b16 %v76
    %v362 = vunpack.c.l.b16 %v77
    %v363 = vunpack.c.l.b16 %v78
    %v364 = vunpack.c.l.b16 %v79
    %v365 = vunpack.c.l.b16 %v80
    %v366 = vunpack.c.l.b16 %v81
    %v367 = vunpack.c.l.b16 %v82
    %v368 = vunpack.c.l.b16 %v83
    %v369 = vunpack.c.l.b16 %v84
    %v370 = vunpack.c.l.b16 %v85
    %v371 = vunpack.c.l.b16 %v86
    %v372 = vunpack.c.l.b16 %v87
    %v373 = vunpack.c.l.b16 %v88
    %v374 = vunpack.c.l.b16 %v89
    %v375 = vunpack.c.l.b16 %v90
    %v376 = vunpack.c.l.b16 %v91
    %v377 = vunpack.c.l.b16 %v92
    %v378 = vunpack.c.l.b16 %v93
    %v379 = vunpack.c.l.b16 %v94
    %v380 = vpack.c.b16 %v341, %v340
    %v381 = vpack.c.b16 %v343, %v342
    %v382 = vpack.c.b16 %v345, %v344
    %v383 = vpack.c.b16 %v347, %v346
    %v384 = vpack.c.b16 %v349, %v348
    %v385 = vpack.c.b16 %v351, %v350
    %v386 = vpack.c.b16 %v353, %v352
    %v387 = vpack.c.b16 %v355, %v354
    %v388 = vpack.c.b16 %v357, %v356
    %v389 = vpack.c.b16 %v359, %v358
    %v390 = vpack.c.b16 %v361, %v360
    %v391 = vpack.c.b16 %v363, %v362
    %v392 = vpack.c.b16 %v365, %v364
    %v393 = vpack.c.b16 %v367, %v366
    %v394 = vpack.c.b16 %v369, %v368
    %v395 = vpack.c.b16 %v371, %v370
    %v396 = vpack.c.b16 %v373, %v372
    %v397 = vpack.c.b16 %v375, %v374
    %v398 = vpack.c.b16 %v377, %v376
    %v399 = vpack.c.b16 %v379, %v378
    %vm420 = vcmask 523264
    %v422 = vsel %vm420, %v293, 0
    %424 = vmatprep.subr.bf16.mxu0 0
    %425 = vmatpush1.bf16.msra.mxu0 %v380
    %426 = vmatprep.subr.bf16.mxu0 0
    %427 = vmatpush1.bf16.msra.mxu0 %v381
    %428 = vmatprep.subr.bf16.mxu0 0
    %429 = vmatpush1.bf16.msra.mxu0 %v382
    %430 = vmatprep.subr.bf16.mxu0 0
    %431 = vmatpush1.bf16.msra.mxu0 %v383
    %432 = vmatprep.subr.bf16.mxu0 0
    %433 = vmatpush1.bf16.msra.mxu0 %v384
    %434 = vmatprep.subr.bf16.mxu0 0
    %435 = vmatpush1.bf16.msra.mxu0 %v385
    %436 = vmatprep.subr.bf16.mxu0 0
    %437 = vmatpush1.bf16.msra.mxu0 %v386
    %438 = vmatprep.subr.bf16.mxu0 0
    %439 = vmatpush1.bf16.msra.mxu0 %v387
    %440 = vmatprep.subr.bf16.mxu0 0
    %441 = vmatpush1.bf16.msra.mxu0 %v388
    %442 = vmatprep.subr.bf16.mxu0 0
    %443 = vmatpush1.bf16.msra.mxu0 %v389
    %444 = vmatprep.subr.bf16.mxu0 0
    %445 = vmatpush1.bf16.msra.mxu0 %v390
    %446 = vmatprep.subr.bf16.mxu0 0
    %447 = vmatpush1.bf16.msra.mxu0 %v391
    %448 = vmatprep.subr.bf16.mxu0 0
    %449 = vmatpush1.bf16.msra.mxu0 %v392
    %450 = vmatprep.subr.bf16.mxu0 0
    %451 = vmatpush1.bf16.msra.mxu0 %v393
    %452 = vmatprep.subr.bf16.mxu0 0
    %453 = vmatpush1.bf16.msra.mxu0 %v394
    %454 = vmatprep.subr.bf16.mxu0 0
    %455 = vmatpush1.bf16.msra.mxu0 %v395
    %456 = vmatprep.mubr.bf16.mxu0 %v292
    %457 = vmatmul.mubr.bf16.gmra.mrb[0].mxu0 %v291
    %v458 = vpop.f32.mrb[0].mxu0
    %v459 = vadd.f32 %v298, %v458
    %v460 = vpop.f32.mrb[0].mxu0
    %v461 = vpop.f32.mrb[0].mxu0
    %v462 = vpop.f32.mrb[0].mxu0
    %463 = vdwg.mxu0
    %464 = vmatprep.subr.bf16.mxu0 0
    %465 = vmatpush1.bf16.msra.mxu0 %v396
    %466 = vmatprep.subr.bf16.mxu0 0
    %467 = vmatpush1.bf16.msra.mxu0 %v397
    %468 = vmatprep.subr.bf16.mxu0 0
    %469 = vmatpush1.bf16.msra.mxu0 %v398
    %470 = vmatprep.subr.bf16.mxu0 0
    %471 = vmatpush1.bf16.msra.mxu0 %v399
    %472 = vmatprep.subr.bf16.mxu0 0
    %473 = vmatpush1.bf16.msra.mxu0 0
    %474 = vmatprep.subr.bf16.mxu0 0
    %475 = vmatpush1.bf16.msra.mxu0 0
    %476 = vmatprep.subr.bf16.mxu0 0
    %477 = vmatpush1.bf16.msra.mxu0 0
    %478 = vmatprep.subr.bf16.mxu0 0
    %479 = vmatpush1.bf16.msra.mxu0 0
    %480 = vmatprep.subr.bf16.mxu0 0
    %481 = vmatpush1.bf16.msra.mxu0 0
    %482 = vmatprep.subr.bf16.mxu0 0
    %483 = vmatpush1.bf16.msra.mxu0 0
    %484 = vmatprep.subr.bf16.mxu0 0
    %485 = vmatpush1.bf16.msra.mxu0 0
    %486 = vmatprep.subr.bf16.mxu0 0
    %487 = vmatpush1.bf16.msra.mxu0 0
    %488 = vmatprep.subr.bf16.mxu0 0
    %489 = vmatpush1.bf16.msra.mxu0 0
    %490 = vmatprep.subr.bf16.mxu0 0
    %491 = vmatpush1.bf16.msra.mxu0 0
    %492 = vmatprep.subr.bf16.mxu0 0
    %493 = vmatpush1.bf16.msra.mxu0 0
    %494 = vmatprep.subr.bf16.mxu0 0
    %495 = vmatpush1.bf16.msra.mxu0 0
    %496 = vmatprep.mubr.bf16.mxu0 0
    %497 = vmatmul.mubr.bf16.gmra.mrb[0].mxu0 %v422
    %v498 = vpop.f32.mrb[0].mxu0
    %v499 = vadd.f32 %v459, %v498
    %v500 = vpop.f32.mrb[0].mxu0
    %v501 = vpop.f32.mrb[0].mxu0
    %v502 = vpop.f32.mrb[0].mxu0
    %503 = vdwg.mxu0
    %v504 = vmax.f32 %v499, 0.0
    %v505 = vpack.c.bf16 %v504, %v504
    %v506 = vld [vmem:[#allocation2] sm:$0xf]
    %v507 = vld [vmem:[#allocation2 + $0x4] sm:$0xf]
    %v508 = vld [vmem:[#allocation2 + $0x8] sm:$0xf]
    %v509 = vld [vmem:[#allocation2 + $0xc] sm:$0xf]
    %v510 = vld [vmem:[#allocation2 + $0x10] sm:$0xf]
    %v511 = vld [vmem:[#allocation2 + $0x14] sm:$0xf]
    %v512 = vld [vmem:[#allocation2 + $0x18] sm:$0xf]
    %v513 = vld [vmem:[#allocation2 + $0x1c] sm:$0xf]
    %v514 = vld [vmem:[#allocation2 + $0x20] sm:$0xf]
    %v515 = vld [vmem:[#allocation2 + $0x24] sm:$0xf]
    %v516 = vld [vmem:[#allocation2 + $0x28] sm:$0xf]
    %v517 = vld [vmem:[#allocation2 + $0x2c] sm:$0xf]
    %v518 = vld [vmem:[#allocation2 + $0x30] sm:$0xf]
    %v519 = vld [vmem:[#allocation2 + $0x34] sm:$0xf]
    %v520 = vld [vmem:[#allocation2 + $0x38] sm:$0xf]
    %v521 = vld [vmem:[#allocation2 + $0x3c] sm:$0xf]
    %v538 = vunpack.c.l.b16 %v506
    %v539 = vunpack.c.l.b16 %v507
    %v540 = vunpack.c.l.b16 %v508
    %v541 = vunpack.c.l.b16 %v509
    %v542 = vunpack.c.l.b16 %v510
    %v543 = vunpack.c.l.b16 %v511
    %v544 = vunpack.c.l.b16 %v512
    %v545 = vunpack.c.l.b16 %v513
    %v546 = vunpack.c.l.b16 %v514
    %v547 = vunpack.c.l.b16 %v515
    %v548 = vunpack.c.l.b16 %v516
    %v549 = vunpack.c.l.b16 %v517
    %v550 = vunpack.c.l.b16 %v518
    %v551 = vunpack.c.l.b16 %v519
    %v552 = vunpack.c.l.b16 %v520
    %v553 = vunpack.c.l.b16 %v521
    %v554 = vpack.c.b16 %v539, %v538
    %v555 = vpack.c.b16 %v541, %v540
    %v556 = vpack.c.b16 %v543, %v542
    %v557 = vpack.c.b16 %v545, %v544
    %v558 = vpack.c.b16 %v547, %v546
    %v559 = vpack.c.b16 %v549, %v548
    %v560 = vpack.c.b16 %v551, %v550
    %v561 = vpack.c.b16 %v553, %v552
    %570 = vmatprep.subr.bf16.mxu0 0
    %571 = vmatpush1.bf16.msra.mxu0 %v554
    %572 = vmatprep.subr.bf16.mxu0 0
    %573 = vmatpush1.bf16.msra.mxu0 %v555
    %574 = vmatprep.subr.bf16.mxu0 0
    %575 = vmatpush1.bf16.msra.mxu0 %v556
    %576 = vmatprep.subr.bf16.mxu0 0
    %577 = vmatpush1.bf16.msra.mxu0 %v557
    %578 = vmatprep.subr.bf16.mxu0 0
    %579 = vmatpush1.bf16.msra.mxu0 %v558
    %580 = vmatprep.subr.bf16.mxu0 0
    %581 = vmatpush1.bf16.msra.mxu0 %v559
    %582 = vmatprep.subr.bf16.mxu0 0
    %583 = vmatpush1.bf16.msra.mxu0 %v560
    %584 = vmatprep.subr.bf16.mxu0 0
    %585 = vmatpush1.bf16.msra.mxu0 %v561
    %586 = vmatprep.subr.bf16.mxu0 0
    %587 = vmatpush1.bf16.msra.mxu0 0
    %588 = vmatprep.subr.bf16.mxu0 0
    %589 = vmatpush1.bf16.msra.mxu0 0
    %590 = vmatprep.subr.bf16.mxu0 0
    %591 = vmatpush1.bf16.msra.mxu0 0
    %592 = vmatprep.subr.bf16.mxu0 0
    %593 = vmatpush1.bf16.msra.mxu0 0
    %594 = vmatprep.subr.bf16.mxu0 0
    %595 = vmatpush1.bf16.msra.mxu0 0
    %596 = vmatprep.subr.bf16.mxu0 0
    %597 = vmatpush1.bf16.msra.mxu0 0
    %598 = vmatprep.subr.bf16.mxu0 0
    %599 = vmatpush1.bf16.msra.mxu0 0
    %600 = vmatprep.subr.bf16.mxu0 0
    %601 = vmatpush1.bf16.msra.mxu0 0
    %602 = vmatprep.mubr.bf16.mxu0 0
    %603 = vmatmul.mubr.bf16.gmra.mrb[0].mxu0 %v505
    %v604 = vpop.f32.mrb[0].mxu0
    %v605 = vadd.f32 0.0, %v604
    %v606 = vpop.f32.mrb[0].mxu0
    %v607 = vpop.f32.mrb[0].mxu0
    %v608 = vpop.f32.mrb[0].mxu0
    %609 = vdwg.mxu0
    %v610 = vadd.f32 %v102, %v605
    %s611 = scalar_lea.vmem %s0, 4
    %v612 = vld [vmem:[%s611] sm:$0xf]
    %v614 = vsel %vm181, %v612, 0
    %616 = vmatprep.subr.bf16.mxu0 %v161
    %617 = vmatpush1.bf16.msra.mxu0 %v160
    %618 = vmatprep.subr.bf16.mxu0 %v164
    %619 = vmatpush1.bf16.msra.mxu0 %v163
    %620 = vmatprep.subr.bf16.mxu0 %v167
    %621 = vmatpush1.bf16.msra.mxu0 %v166
    %622 = vmatprep.subr.bf16.mxu0 %v190
    %623 = vmatpush1.bf16.msra.mxu0 %v187
    %624 = vmatprep.subr.bf16.mxu0 0
    %625 = vmatpush1.bf16.msra.mxu0 0
    %626 = vmatprep.subr.bf16.mxu0 0
    %627 = vmatpush1.bf16.msra.mxu0 0
    %628 = vmatprep.subr.bf16.mxu0 0
    %629 = vmatpush1.bf16.msra.mxu0 0
    %630 = vmatprep.subr.bf16.mxu0 0
    %631 = vmatpush1.bf16.msra.mxu0 0
    %632 = vmatprep.subr.bf16.mxu0 0
    %633 = vmatpush1.bf16.msra.mxu0 0
    %634 = vmatprep.subr.bf16.mxu0 0
    %635 = vmatpush1.bf16.msra.mxu0 0
    %636 = vmatprep.subr.bf16.mxu0 0
    %637 = vmatpush1.bf16.msra.mxu0 0
    %638 = vmatprep.subr.bf16.mxu0 0
    %639 = vmatpush1.bf16.msra.mxu0 0
    %640 = vmatprep.subr.bf16.mxu0 0
    %641 = vmatpush1.bf16.msra.mxu0 0
    %642 = vmatprep.subr.bf16.mxu0 0
    %643 = vmatpush1.bf16.msra.mxu0 0
    %644 = vmatprep.subr.bf16.mxu0 0
    %645 = vmatpush1.bf16.msra.mxu0 0
    %646 = vmatprep.subr.bf16.mxu0 0
    %647 = vmatpush1.bf16.msra.mxu0 0
    %648 = vmatprep.mubr.bf16.mxu0 0
    %649 = vmatmul.mubr.bf16.gmra.mrb[0].mxu0 %v614
    %v650 = vpop.f32.mrb[0].mxu0
    %v651 = vadd.f32 %v113, %v650
    %v652 = vpop.f32.mrb[0].mxu0
    %v653 = vadd.f32 %v117, %v652
    %v654 = vpop.f32.mrb[0].mxu0
    %v655 = vpop.f32.mrb[0].mxu0
    %656 = vdwg.mxu0
    %657 = vmatprep.subr.bf16.mxu0 0
    %658 = vmatpush1.bf16.msra.mxu0 %v162
    %659 = vmatprep.subr.bf16.mxu0 0
    %660 = vmatpush1.bf16.msra.mxu0 %v165
    %661 = vmatprep.subr.bf16.mxu0 0
    %662 = vmatpush1.bf16.msra.mxu0 %v168
    %663 = vmatprep.subr.bf16.mxu0 0
    %664 = vmatpush1.bf16.msra.mxu0 %v193
    %665 = vmatprep.subr.bf16.mxu0 0
    %666 = vmatpush1.bf16.msra.mxu0 0
    %667 = vmatprep.subr.bf16.mxu0 0
    %668 = vmatpush1.bf16.msra.mxu0 0
    %669 = vmatprep.subr.bf16.mxu0 0
    %670 = vmatpush1.bf16.msra.mxu0 0
    %671 = vmatprep.subr.bf16.mxu0 0
    %672 = vmatpush1.bf16.msra.mxu0 0
    %673 = vmatprep.subr.bf16.mxu0 0
    %674 = vmatpush1.bf16.msra.mxu0 0
    %675 = vmatprep.subr.bf16.mxu0 0
    %676 = vmatpush1.bf16.msra.mxu0 0
    %677 = vmatprep.subr.bf16.mxu0 0
    %678 = vmatpush1.bf16.msra.mxu0 0
    %679 = vmatprep.subr.bf16.mxu0 0
    %680 = vmatpush1.bf16.msra.mxu0 0
    %681 = vmatprep.subr.bf16.mxu0 0
    %682 = vmatpush1.bf16.msra.mxu0 0
    %683 = vmatprep.subr.bf16.mxu0 0
    %684 = vmatpush1.bf16.msra.mxu0 0
    %685 = vmatprep.subr.bf16.mxu0 0
    %686 = vmatpush1.bf16.msra.mxu0 0
    %687 = vmatprep.subr.bf16.mxu0 0
    %688 = vmatpush1.bf16.msra.mxu0 0
    %689 = vmatprep.mubr.bf16.mxu0 0
    %690 = vmatmul.mubr.bf16.gmra.mrb[0].mxu0 %v614
    %v691 = vpop.f32.mrb[0].mxu0
    %v692 = vadd.f32 %v121, %v691
    %v693 = vpop.f32.mrb[0].mxu0
    %v694 = vpop.f32.mrb[0].mxu0
    %v695 = vpop.f32.mrb[0].mxu0
    %696 = vdwg.mxu0
    %v697 = vmax.f32 %v651, 0.0
    %v698 = vmax.f32 %v653, 0.0
    %v699 = vmax.f32 %v692, 0.0
    %v700 = vpack.c.bf16 %v697, %v697
    %v701 = vpack.c.bf16 %v698, %v698
    %v702 = vpack.c.bf16 %v699, %v699
    %v704 = vsel %vm420, %v702, 0
    %706 = vmatprep.subr.bf16.mxu0 0
    %707 = vmatpush1.bf16.msra.mxu0 %v380
    %708 = vmatprep.subr.bf16.mxu0 0
    %709 = vmatpush1.bf16.msra.mxu0 %v381
    %710 = vmatprep.subr.bf16.mxu0 0
    %711 = vmatpush1.bf16.msra.mxu0 %v382
    %712 = vmatprep.subr.bf16.mxu0 0
    %713 = vmatpush1.bf16.msra.mxu0 %v383
    %714 = vmatprep.subr.bf16.mxu0 0
    %715 = vmatpush1.bf16.msra.mxu0 %v384
    %716 = vmatprep.subr.bf16.mxu0 0
    %717 = vmatpush1.bf16.msra.mxu0 %v385
    %718 = vmatprep.subr.bf16.mxu0 0
    %719 = vmatpush1.bf16.msra.mxu0 %v386
    %720 = vmatprep.subr.bf16.mxu0 0
    %721 = vmatpush1.bf16.msra.mxu0 %v387
    %722 = vmatprep.subr.bf16.mxu0 0
    %723 = vmatpush1.bf16.msra.mxu0 %v388
    %724 = vmatprep.subr.bf16.mxu0 0
    %725 = vmatpush1.bf16.msra.mxu0 %v389
    %726 = vmatprep.subr.bf16.mxu0 0
    %727 = vmatpush1.bf16.msra.mxu0 %v390
    %728 = vmatprep.subr.bf16.mxu0 0
    %729 = vmatpush1.bf16.msra.mxu0 %v391
    %730 = vmatprep.subr.bf16.mxu0 0
    %731 = vmatpush1.bf16.msra.mxu0 %v392
    %732 = vmatprep.subr.bf16.mxu0 0
    %733 = vmatpush1.bf16.msra.mxu0 %v393
    %734 = vmatprep.subr.bf16.mxu0 0
    %735 = vmatpush1.bf16.msra.mxu0 %v394
    %736 = vmatprep.subr.bf16.mxu0 0
    %737 = vmatpush1.bf16.msra.mxu0 %v395
    %738 = vmatprep.mubr.bf16.mxu0 %v701
    %739 = vmatmul.mubr.bf16.gmra.mrb[0].mxu0 %v700
    %v740 = vpop.f32.mrb[0].mxu0
    %v741 = vadd.f32 %v298, %v740
    %v742 = vpop.f32.mrb[0].mxu0
    %v743 = vpop.f32.mrb[0].mxu0
    %v744 = vpop.f32.mrb[0].mxu0
    %745 = vdwg.mxu0
    %746 = vmatprep.subr.bf16.mxu0 0
    %747 = vmatpush1.bf16.msra.mxu0 %v396
    %748 = vmatprep.subr.bf16.mxu0 0
    %749 = vmatpush1.bf16.msra.mxu0 %v397
    %750 = vmatprep.subr.bf16.mxu0 0
    %751 = vmatpush1.bf16.msra.mxu0 %v398
    %752 = vmatprep.subr.bf16.mxu0 0
    %753 = vmatpush1.bf16.msra.mxu0 %v399
    %754 = vmatprep.subr.bf16.mxu0 0
    %755 = vmatpush1.bf16.msra.mxu0 0
    %756 = vmatprep.subr.bf16.mxu0 0
    %757 = vmatpush1.bf16.msra.mxu0 0
    %758 = vmatprep.subr.bf16.mxu0 0
    %759 = vmatpush1.bf16.msra.mxu0 0
    %760 = vmatprep.subr.bf16.mxu0 0
    %761 = vmatpush1.bf16.msra.mxu0 0
    %762 = vmatprep.subr.bf16.mxu0 0
    %763 = vmatpush1.bf16.msra.mxu0 0
    %764 = vmatprep.subr.bf16.mxu0 0
    %765 = vmatpush1.bf16.msra.mxu0 0
    %766 = vmatprep.subr.bf16.mxu0 0
    %767 = vmatpush1.bf16.msra.mxu0 0
    %768 = vmatprep.subr.bf16.mxu0 0
    %769 = vmatpush1.bf16.msra.mxu0 0
    %770 = vmatprep.subr.bf16.mxu0 0
    %771 = vmatpush1.bf16.msra.mxu0 0
    %772 = vmatprep.subr.bf16.mxu0 0
    %773 = vmatpush1.bf16.msra.mxu0 0
    %774 = vmatprep.subr.bf16.mxu0 0
    %775 = vmatpush1.bf16.msra.mxu0 0
    %776 = vmatprep.subr.bf16.mxu0 0
    %777 = vmatpush1.bf16.msra.mxu0 0
    %778 = vmatprep.mubr.bf16.mxu0 0
    %779 = vmatmul.mubr.bf16.gmra.mrb[0].mxu0 %v704
    %v780 = vpop.f32.mrb[0].mxu0
    %v781 = vadd.f32 %v741, %v780
    %v782 = vpop.f32.mrb[0].mxu0
    %v783 = vpop.f32.mrb[0].mxu0
    %v784 = vpop.f32.mrb[0].mxu0
    %785 = vdwg.mxu0
    %v786 = vmax.f32 %v781, 0.0
    %v787 = vpack.c.bf16 %v786, %v786
    %s788 = scalar_lea.vmem [#allocation2], 64
    %v789 = vld [vmem:[%s788] sm:$0xf]
    %v790 = vld [vmem:[%s788 + $0x4] sm:$0xf]
    %v791 = vld [vmem:[%s788 + $0x8] sm:$0xf]
    %v792 = vld [vmem:[%s788 + $0xc] sm:$0xf]
    %v793 = vld [vmem:[%s788 + $0x10] sm:$0xf]
    %v794 = vld [vmem:[%s788 + $0x14] sm:$0xf]
    %v795 = vld [vmem:[%s788 + $0x18] sm:$0xf]
    %v796 = vld [vmem:[%s788 + $0x1c] sm:$0xf]
    %v797 = vld [vmem:[%s788 + $0x20] sm:$0xf]
    %v798 = vld [vmem:[%s788 + $0x24] sm:$0xf]
    %v799 = vld [vmem:[%s788 + $0x28] sm:$0xf]
    %v800 = vld [vmem:[%s788 + $0x2c] sm:$0xf]
    %v801 = vld [vmem:[%s788 + $0x30] sm:$0xf]
    %v802 = vld [vmem:[%s788 + $0x34] sm:$0xf]
    %v803 = vld [vmem:[%s788 + $0x38] sm:$0xf]
    %v804 = vld [vmem:[%s788 + $0x3c] sm:$0xf]
    %v821 = vunpack.c.l.b16 %v789
    %v822 = vunpack.c.l.b16 %v790
    %v823 = vunpack.c.l.b16 %v791
    %v824 = vunpack.c.l.b16 %v792
    %v825 = vunpack.c.l.b16 %v793
    %v826 = vunpack.c.l.b16 %v794
    %v827 = vunpack.c.l.b16 %v795
    %v828 = vunpack.c.l.b16 %v796
    %v829 = vunpack.c.l.b16 %v797
    %v830 = vunpack.c.l.b16 %v798
    %v831 = vunpack.c.l.b16 %v799
    %v832 = vunpack.c.l.b16 %v800
    %v833 = vunpack.c.l.b16 %v801
    %v834 = vunpack.c.l.b16 %v802
    %v835 = vunpack.c.l.b16 %v803
    %v836 = vunpack.c.l.b16 %v804
    %v837 = vpack.c.b16 %v822, %v821
    %v838 = vpack.c.b16 %v824, %v823
    %v839 = vpack.c.b16 %v826, %v825
    %v840 = vpack.c.b16 %v828, %v827
    %v841 = vpack.c.b16 %v830, %v829
    %v842 = vpack.c.b16 %v832, %v831
    %v843 = vpack.c.b16 %v834, %v833
    %v844 = vpack.c.b16 %v836, %v835
    %853 = vmatprep.subr.bf16.mxu0 0
    %854 = vmatpush1.bf16.msra.mxu0 %v837
    %855 = vmatprep.subr.bf16.mxu0 0
    %856 = vmatpush1.bf16.msra.mxu0 %v838
    %857 = vmatprep.subr.bf16.mxu0 0
    %858 = vmatpush1.bf16.msra.mxu0 %v839
    %859 = vmatprep.subr.bf16.mxu0 0
    %860 = vmatpush1.bf16.msra.mxu0 %v840
    %861 = vmatprep.subr.bf16.mxu0 0
    %862 = vmatpush1.bf16.msra.mxu0 %v841
    %863 = vmatprep.subr.bf16.mxu0 0
    %864 = vmatpush1.bf16.msra.mxu0 %v842
    %865 = vmatprep.subr.bf16.mxu0 0
    %866 = vmatpush1.bf16.msra.mxu0 %v843
    %867 = vmatprep.subr.bf16.mxu0 0
    %868 = vmatpush1.bf16.msra.mxu0 %v844
    %869 = vmatprep.subr.bf16.mxu0 0
    %870 = vmatpush1.bf16.msra.mxu0 0
    %871 = vmatprep.subr.bf16.mxu0 0
    %872 = vmatpush1.bf16.msra.mxu0 0
    %873 = vmatprep.subr.bf16.mxu0 0
    %874 = vmatpush1.bf16.msra.mxu0 0
    %875 = vmatprep.subr.bf16.mxu0 0
    %876 = vmatpush1.bf16.msra.mxu0 0
    %877 = vmatprep.subr.bf16.mxu0 0
    %878 = vmatpush1.bf16.msra.mxu0 0
    %879 = vmatprep.subr.bf16.mxu0 0
    %880 = vmatpush1.bf16.msra.mxu0 0
    %881 = vmatprep.subr.bf16.mxu0 0
    %882 = vmatpush1.bf16.msra.mxu0 0
    %883 = vmatprep.subr.bf16.mxu0 0
    %884 = vmatpush1.bf16.msra.mxu0 0
    %885 = vmatprep.mubr.bf16.mxu0 0
    %886 = vmatmul.mubr.bf16.gmra.mrb[0].mxu0 %v787
    %v887 = vpop.f32.mrb[0].mxu0
    %v888 = vadd.f32 0.0, %v887
    %v889 = vpop.f32.mrb[0].mxu0
    %v890 = vpop.f32.mrb[0].mxu0
    %v891 = vpop.f32.mrb[0].mxu0
    %892 = vdwg.mxu0
    %v893 = vadd.f32 %v610, %v888
    %s894 = scalar_lea.vmem %s0, 8
    %v895 = vld [vmem:[%s894] sm:$0xf]
    %v897 = vsel %vm181, %v895, 0
    %899 = vmatprep.subr.bf16.mxu0 %v161
    %900 = vmatpush1.bf16.msra.mxu0 %v160
    %901 = vmatprep.subr.bf16.mxu0 %v164
    %902 = vmatpush1.bf16.msra.mxu0 %v163
    %903 = vmatprep.subr.bf16.mxu0 %v167
    %904 = vmatpush1.bf16.msra.mxu0 %v166
    %905 = vmatprep.subr.bf16.mxu0 %v190
    %906 = vmatpush1.bf16.msra.mxu0 %v187
    %907 = vmatprep.subr.bf16.mxu0 0
    %908 = vmatpush1.bf16.msra.mxu0 0
    %909 = vmatprep.subr.bf16.mxu0 0
    %910 = vmatpush1.bf16.msra.mxu0 0
    %911 = vmatprep.subr.bf16.mxu0 0
    %912 = vmatpush1.bf16.msra.mxu0 0
    %913 = vmatprep.subr.bf16.mxu0 0
    %914 = vmatpush1.bf16.msra.mxu0 0
    %915 = vmatprep.subr.bf16.mxu0 0
    %916 = vmatpush1.bf16.msra.mxu0 0
    %917 = vmatprep.subr.bf16.mxu0 0
    %918 = vmatpush1.bf16.msra.mxu0 0
    %919 = vmatprep.subr.bf16.mxu0 0
    %920 = vmatpush1.bf16.msra.mxu0 0
    %921 = vmatprep.subr.bf16.mxu0 0
    %922 = vmatpush1.bf16.msra.mxu0 0
    %923 = vmatprep.subr.bf16.mxu0 0
    %924 = vmatpush1.bf16.msra.mxu0 0
    %925 = vmatprep.subr.bf16.mxu0 0
    %926 = vmatpush1.bf16.msra.mxu0 0
    %927 = vmatprep.subr.bf16.mxu0 0
    %928 = vmatpush1.bf16.msra.mxu0 0
    %929 = vmatprep.subr.bf16.mxu0 0
    %930 = vmatpush1.bf16.msra.mxu0 0
    %931 = vmatprep.mubr.bf16.mxu0 0
    %932 = vmatmul.mubr.bf16.gmra.mrb[0].mxu0 %v897
    %v933 = vpop.f32.mrb[0].mxu0
    %v934 = vadd.f32 %v113, %v933
    %v935 = vpop.f32.mrb[0].mxu0
    %v936 = vadd.f32 %v117, %v935
    %v937 = vpop.f32.mrb[0].mxu0
    %v938 = vpop.f32.mrb[0].mxu0
    %939 = vdwg.mxu0
    %940 = vmatprep.subr.bf16.mxu0 0
    %941 = vmatpush1.bf16.msra.mxu0 %v162
    %942 = vmatprep.subr.bf16.mxu0 0
    %943 = vmatpush1.bf16.msra.mxu0 %v165
    %944 = vmatprep.subr.bf16.mxu0 0
    %945 = vmatpush1.bf16.msra.mxu0 %v168
    %946 = vmatprep.subr.bf16.mxu0 0
    %947 = vmatpush1.bf16.msra.mxu0 %v193
    %948 = vmatprep.subr.bf16.mxu0 0
    %949 = vmatpush1.bf16.msra.mxu0 0
    %950 = vmatprep.subr.bf16.mxu0 0
    %951 = vmatpush1.bf16.msra.mxu0 0
    %952 = vmatprep.subr.bf16.mxu0 0
    %953 = vmatpush1.bf16.msra.mxu0 0
    %954 = vmatprep.subr.bf16.mxu0 0
    %955 = vmatpush1.bf16.msra.mxu0 0
    %956 = vmatprep.subr.bf16.mxu0 0
    %957 = vmatpush1.bf16.msra.mxu0 0
    %958 = vmatprep.subr.bf16.mxu0 0
    %959 = vmatpush1.bf16.msra.mxu0 0
    %960 = vmatprep.subr.bf16.mxu0 0
    %961 = vmatpush1.bf16.msra.mxu0 0
    %962 = vmatprep.subr.bf16.mxu0 0
    %963 = vmatpush1.bf16.msra.mxu0 0
    %964 = vmatprep.subr.bf16.mxu0 0
    %965 = vmatpush1.bf16.msra.mxu0 0
    %966 = vmatprep.subr.bf16.mxu0 0
    %967 = vmatpush1.bf16.msra.mxu0 0
    %968 = vmatprep.subr.bf16.mxu0 0
    %969 = vmatpush1.bf16.msra.mxu0 0
    %970 = vmatprep.subr.bf16.mxu0 0
    %971 = vmatpush1.bf16.msra.mxu0 0
    %972 = vmatprep.mubr.bf16.mxu0 0
    %973 = vmatmul.mubr.bf16.gmra.mrb[0].mxu0 %v897
    %v974 = vpop.f32.mrb[0].mxu0
    %v975 = vadd.f32 %v121, %v974
    %v976 = vpop.f32.mrb[0].mxu0
    %v977 = vpop.f32.mrb[0].mxu0
    %v978 = vpop.f32.mrb[0].mxu0
    %979 = vdwg.mxu0
    %v980 = vmax.f32 %v934, 0.0
    %v981 = vmax.f32 %v936, 0.0
    %v982 = vmax.f32 %v975, 0.0
    %v983 = vpack.c.bf16 %v980, %v980
    %v984 = vpack.c.bf16 %v981, %v981
    %v985 = vpack.c.bf16 %v982, %v982
    %v987 = vsel %vm420, %v985, 0
    %989 = vmatprep.subr.bf16.mxu0 0
    %990 = vmatpush1.bf16.msra.mxu0 %v380
    %991 = vmatprep.subr.bf16.mxu0 0
    %992 = vmatpush1.bf16.msra.mxu0 %v381
    %993 = vmatprep.subr.bf16.mxu0 0
    %994 = vmatpush1.bf16.msra.mxu0 %v382
    %995 = vmatprep.subr.bf16.mxu0 0
    %996 = vmatpush1.bf16.msra.mxu0 %v383
    %997 = vmatprep.subr.bf16.mxu0 0
    %998 = vmatpush1.bf16.msra.mxu0 %v384
    %999 = vmatprep.subr.bf16.mxu0 0
    %1000 = vmatpush1.bf16.msra.mxu0 %v385
    %1001 = vmatprep.subr.bf16.mxu0 0
    %1002 = vmatpush1.bf16.msra.mxu0 %v386
    %1003 = vmatprep.subr.bf16.mxu0 0
    %1004 = vmatpush1.bf16.msra.mxu0 %v387
    %1005 = vmatprep.subr.bf16.mxu0 0
    %1006 = vmatpush1.bf16.msra.mxu0 %v388
    %1007 = vmatprep.subr.bf16.mxu0 0
    %1008 = vmatpush1.bf16.msra.mxu0 %v389
    %1009 = vmatprep.subr.bf16.mxu0 0
    %1010 = vmatpush1.bf16.msra.mxu0 %v390
    %1011 = vmatprep.subr.bf16.mxu0 0
    %1012 = vmatpush1.bf16.msra.mxu0 %v391
    %1013 = vmatprep.subr.bf16.mxu0 0
    %1014 = vmatpush1.bf16.msra.mxu0 %v392
    %1015 = vmatprep.subr.bf16.mxu0 0
    %1016 = vmatpush1.bf16.msra.mxu0 %v393
    %1017 = vmatprep.subr.bf16.mxu0 0
    %1018 = vmatpush1.bf16.msra.mxu0 %v394
    %1019 = vmatprep.subr.bf16.mxu0 0
    %1020 = vmatpush1.bf16.msra.mxu0 %v395
    %1021 = vmatprep.mubr.bf16.mxu0 %v984
    %1022 = vmatmul.mubr.bf16.gmra.mrb[0].mxu0 %v983
    %v1023 = vpop.f32.mrb[0].mxu0
    %v1024 = vadd.f32 %v298, %v1023
    %v1025 = vpop.f32.mrb[0].mxu0
    %v1026 = vpop.f32.mrb[0].mxu0
    %v1027 = vpop.f32.mrb[0].mxu0
    %1028 = vdwg.mxu0
    %1029 = vmatprep.subr.bf16.mxu0 0
    %1030 = vmatpush1.bf16.msra.mxu0 %v396
    %1031 = vmatprep.subr.bf16.mxu0 0
    %1032 = vmatpush1.bf16.msra.mxu0 %v397
    %1033 = vmatprep.subr.bf16.mxu0 0
    %1034 = vmatpush1.bf16.msra.mxu0 %v398
    %1035 = vmatprep.subr.bf16.mxu0 0
    %1036 = vmatpush1.bf16.msra.mxu0 %v399
    %1037 = vmatprep.subr.bf16.mxu0 0
    %1038 = vmatpush1.bf16.msra.mxu0 0
    %1039 = vmatprep.subr.bf16.mxu0 0
    %1040 = vmatpush1.bf16.msra.mxu0 0
    %1041 = vmatprep.subr.bf16.mxu0 0
    %1042 = vmatpush1.bf16.msra.mxu0 0
    %1043 = vmatprep.subr.bf16.mxu0 0
    %1044 = vmatpush1.bf16.msra.mxu0 0
    %1045 = vmatprep.subr.bf16.mxu0 0
    %1046 = vmatpush1.bf16.msra.mxu0 0
    %1047 = vmatprep.subr.bf16.mxu0 0
    %1048 = vmatpush1.bf16.msra.mxu0 0
    %1049 = vmatprep.subr.bf16.mxu0 0
    %1050 = vmatpush1.bf16.msra.mxu0 0
    %1051 = vmatprep.subr.bf16.mxu0 0
    %1052 = vmatpush1.bf16.msra.mxu0 0
    %1053 = vmatprep.subr.bf16.mxu0 0
    %1054 = vmatpush1.bf16.msra.mxu0 0
    %1055 = vmatprep.subr.bf16.mxu0 0
    %1056 = vmatpush1.bf16.msra.mxu0 0
    %1057 = vmatprep.subr.bf16.mxu0 0
    %1058 = vmatpush1.bf16.msra.mxu0 0
    %1059 = vmatprep.subr.bf16.mxu0 0
    %1060 = vmatpush1.bf16.msra.mxu0 0
    %1061 = vmatprep.mubr.bf16.mxu0 0
    %1062 = vmatmul.mubr.bf16.gmra.mrb[0].mxu0 %v987
    %v1063 = vpop.f32.mrb[0].mxu0
    %v1064 = vadd.f32 %v1024, %v1063
    %v1065 = vpop.f32.mrb[0].mxu0
    %v1066 = vpop.f32.mrb[0].mxu0
    %v1067 = vpop.f32.mrb[0].mxu0
    %1068 = vdwg.mxu0
    %v1069 = vmax.f32 %v1064, 0.0
    %v1070 = vpack.c.bf16 %v1069, %v1069
    %s1071 = scalar_lea.vmem [#allocation2], 128
    %v1072 = vld [vmem:[%s1071] sm:$0xf]
    %v1073 = vld [vmem:[%s1071 + $0x4] sm:$0xf]
    %v1074 = vld [vmem:[%s1071 + $0x8] sm:$0xf]
    %v1075 = vld [vmem:[%s1071 + $0xc] sm:$0xf]
    %v1076 = vld [vmem:[%s1071 + $0x10] sm:$0xf]
    %v1077 = vld [vmem:[%s1071 + $0x14] sm:$0xf]
    %v1078 = vld [vmem:[%s1071 + $0x18] sm:$0xf]
    %v1079 = vld [vmem:[%s1071 + $0x1c] sm:$0xf]
    %v1080 = vld [vmem:[%s1071 + $0x20] sm:$0xf]
    %v1081 = vld [vmem:[%s1071 + $0x24] sm:$0xf]
    %v1082 = vld [vmem:[%s1071 + $0x28] sm:$0xf]
    %v1083 = vld [vmem:[%s1071 + $0x2c] sm:$0xf]
    %v1084 = vld [vmem:[%s1071 + $0x30] sm:$0xf]
    %v1085 = vld [vmem:[%s1071 + $0x34] sm:$0xf]
    %v1086 = vld [vmem:[%s1071 + $0x38] sm:$0xf]
    %v1087 = vld [vmem:[%s1071 + $0x3c] sm:$0xf]
    %v1104 = vunpack.c.l.b16 %v1072
    %v1105 = vunpack.c.l.b16 %v1073
    %v1106 = vunpack.c.l.b16 %v1074
    %v1107 = vunpack.c.l.b16 %v1075
    %v1108 = vunpack.c.l.b16 %v1076
    %v1109 = vunpack.c.l.b16 %v1077
    %v1110 = vunpack.c.l.b16 %v1078
    %v1111 = vunpack.c.l.b16 %v1079
    %v1112 = vunpack.c.l.b16 %v1080
    %v1113 = vunpack.c.l.b16 %v1081
    %v1114 = vunpack.c.l.b16 %v1082
    %v1115 = vunpack.c.l.b16 %v1083
    %v1116 = vunpack.c.l.b16 %v1084
    %v1117 = vunpack.c.l.b16 %v1085
    %v1118 = vunpack.c.l.b16 %v1086
    %v1119 = vunpack.c.l.b16 %v1087
    %v1120 = vpack.c.b16 %v1105, %v1104
    %v1121 = vpack.c.b16 %v1107, %v1106
    %v1122 = vpack.c.b16 %v1109, %v1108
    %v1123 = vpack.c.b16 %v1111, %v1110
    %v1124 = vpack.c.b16 %v1113, %v1112
    %v1125 = vpack.c.b16 %v1115, %v1114
    %v1126 = vpack.c.b16 %v1117, %v1116
    %v1127 = vpack.c.b16 %v1119, %v1118
    %1136 = vmatprep.subr.bf16.mxu0 0
    %1137 = vmatpush1.bf16.msra.mxu0 %v1120
    %1138 = vmatprep.subr.bf16.mxu0 0
    %1139 = vmatpush1.bf16.msra.mxu0 %v1121
    %1140 = vmatprep.subr.bf16.mxu0 0
    %1141 = vmatpush1.bf16.msra.mxu0 %v1122
    %1142 = vmatprep.subr.bf16.mxu0 0
    %1143 = vmatpush1.bf16.msra.mxu0 %v1123
    %1144 = vmatprep.subr.bf16.mxu0 0
    %1145 = vmatpush1.bf16.msra.mxu0 %v1124
    %1146 = vmatprep.subr.bf16.mxu0 0
    %1147 = vmatpush1.bf16.msra.mxu0 %v1125
    %1148 = vmatprep.subr.bf16.mxu0 0
    %1149 = vmatpush1.bf16.msra.mxu0 %v1126
    %1150 = vmatprep.subr.bf16.mxu0 0
    %1151 = vmatpush1.bf16.msra.mxu0 %v1127
    %1152 = vmatprep.subr.bf16.mxu0 0
    %1153 = vmatpush1.bf16.msra.mxu0 0
    %1154 = vmatprep.subr.bf16.mxu0 0
    %1155 = vmatpush1.bf16.msra.mxu0 0
    %1156 = vmatprep.subr.bf16.mxu0 0
    %1157 = vmatpush1.bf16.msra.mxu0 0
    %1158 = vmatprep.subr.bf16.mxu0 0
    %1159 = vmatpush1.bf16.msra.mxu0 0
    %1160 = vmatprep.subr.bf16.mxu0 0
    %1161 = vmatpush1.bf16.msra.mxu0 0
    %1162 = vmatprep.subr.bf16.mxu0 0
    %1163 = vmatpush1.bf16.msra.mxu0 0
    %1164 = vmatprep.subr.bf16.mxu0 0
    %1165 = vmatpush1.bf16.msra.mxu0 0
    %1166 = vmatprep.subr.bf16.mxu0 0
    %1167 = vmatpush1.bf16.msra.mxu0 0
    %1168 = vmatprep.mubr.bf16.mxu0 0
    %1169 = vmatmul.mubr.bf16.gmra.mrb[0].mxu0 %v1070
    %v1170 = vpop.f32.mrb[0].mxu0
    %v1171 = vadd.f32 0.0, %v1170
    %v1172 = vpop.f32.mrb[0].mxu0
    %v1173 = vpop.f32.mrb[0].mxu0
    %v1174 = vpop.f32.mrb[0].mxu0
    %1175 = vdwg.mxu0
    %v1176 = vadd.f32 %v893, %v1171
    %s1177 = scalar_lea.vmem %s0, 12
    %v1178 = vld [vmem:[%s1177] sm:$0xf]
    %v1180 = vsel %vm181, %v1178, 0
    %1182 = vmatprep.subr.bf16.mxu0 %v161
    %1183 = vmatpush1.bf16.msra.mxu0 %v160
    %1184 = vmatprep.subr.bf16.mxu0 %v164
    %1185 = vmatpush1.bf16.msra.mxu0 %v163
    %1186 = vmatprep.subr.bf16.mxu0 %v167
    %1187 = vmatpush1.bf16.msra.mxu0 %v166
    %1188 = vmatprep.subr.bf16.mxu0 %v190
    %1189 = vmatpush1.bf16.msra.mxu0 %v187
    %1190 = vmatprep.subr.bf16.mxu0 0
    %1191 = vmatpush1.bf16.msra.mxu0 0
    %1192 = vmatprep.subr.bf16.mxu0 0
    %1193 = vmatpush1.bf16.msra.mxu0 0
    %1194 = vmatprep.subr.bf16.mxu0 0
    %1195 = vmatpush1.bf16.msra.mxu0 0
    %1196 = vmatprep.subr.bf16.mxu0 0
    %1197 = vmatpush1.bf16.msra.mxu0 0
    %1198 = vmatprep.subr.bf16.mxu0 0
    %1199 = vmatpush1.bf16.msra.mxu0 0
    %1200 = vmatprep.subr.bf16.mxu0 0
    %1201 = vmatpush1.bf16.msra.mxu0 0
    %1202 = vmatprep.subr.bf16.mxu0 0
    %1203 = vmatpush1.bf16.msra.mxu0 0
    %1204 = vmatprep.subr.bf16.mxu0 0
    %1205 = vmatpush1.bf16.msra.mxu0 0
    %1206 = vmatprep.subr.bf16.mxu0 0
    %1207 = vmatpush1.bf16.msra.mxu0 0
    %1208 = vmatprep.subr.bf16.mxu0 0
    %1209 = vmatpush1.bf16.msra.mxu0 0
    %1210 = vmatprep.subr.bf16.mxu0 0
    %1211 = vmatpush1.bf16.msra.mxu0 0
    %1212 = vmatprep.subr.bf16.mxu0 0
    %1213 = vmatpush1.bf16.msra.mxu0 0
    %1214 = vmatprep.mubr.bf16.mxu0 0
    %1215 = vmatmul.mubr.bf16.gmra.mrb[0].mxu0 %v1180
    %v1216 = vpop.f32.mrb[0].mxu0
    %v1217 = vadd.f32 %v113, %v1216
    %v1218 = vpop.f32.mrb[0].mxu0
    %v1219 = vadd.f32 %v117, %v1218
    %v1220 = vpop.f32.mrb[0].mxu0
    %v1221 = vpop.f32.mrb[0].mxu0
    %1222 = vdwg.mxu0
    %1223 = vmatprep.subr.bf16.mxu0 0
    %1224 = vmatpush1.bf16.msra.mxu0 %v162
    %1225 = vmatprep.subr.bf16.mxu0 0
    %1226 = vmatpush1.bf16.msra.mxu0 %v165
    %1227 = vmatprep.subr.bf16.mxu0 0
    %1228 = vmatpush1.bf16.msra.mxu0 %v168
    %1229 = vmatprep.subr.bf16.mxu0 0
    %1230 = vmatpush1.bf16.msra.mxu0 %v193
    %1231 = vmatprep.subr.bf16.mxu0 0
    %1232 = vmatpush1.bf16.msra.mxu0 0
    %1233 = vmatprep.subr.bf16.mxu0 0
    %1234 = vmatpush1.bf16.msra.mxu0 0
    %1235 = vmatprep.subr.bf16.mxu0 0
    %1236 = vmatpush1.bf16.msra.mxu0 0
    %1237 = vmatprep.subr.bf16.mxu0 0
    %1238 = vmatpush1.bf16.msra.mxu0 0
    %1239 = vmatprep.subr.bf16.mxu0 0
    %1240 = vmatpush1.bf16.msra.mxu0 0
    %1241 = vmatprep.subr.bf16.mxu0 0
    %1242 = vmatpush1.bf16.msra.mxu0 0
    %1243 = vmatprep.subr.bf16.mxu0 0
    %1244 = vmatpush1.bf16.msra.mxu0 0
    %1245 = vmatprep.subr.bf16.mxu0 0
    %1246 = vmatpush1.bf16.msra.mxu0 0
    %1247 = vmatprep.subr.bf16.mxu0 0
    %1248 = vmatpush1.bf16.msra.mxu0 0
    %1249 = vmatprep.subr.bf16.mxu0 0
    %1250 = vmatpush1.bf16.msra.mxu0 0
    %1251 = vmatprep.subr.bf16.mxu0 0
    %1252 = vmatpush1.bf16.msra.mxu0 0
    %1253 = vmatprep.subr.bf16.mxu0 0
    %1254 = vmatpush1.bf16.msra.mxu0 0
    %1255 = vmatprep.mubr.bf16.mxu0 0
    %1256 = vmatmul.mubr.bf16.gmra.mrb[0].mxu0 %v1180
    %v1257 = vpop.f32.mrb[0].mxu0
    %v1258 = vadd.f32 %v121, %v1257
    %v1259 = vpop.f32.mrb[0].mxu0
    %v1260 = vpop.f32.mrb[0].mxu0
    %v1261 = vpop.f32.mrb[0].mxu0
    %1262 = vdwg.mxu0
    %v1263 = vmax.f32 %v1217, 0.0
    %v1264 = vmax.f32 %v1219, 0.0
    %v1265 = vmax.f32 %v1258, 0.0
    %v1266 = vpack.c.bf16 %v1263, %v1263
    %v1267 = vpack.c.bf16 %v1264, %v1264
    %v1268 = vpack.c.bf16 %v1265, %v1265
    %v1270 = vsel %vm420, %v1268, 0
    %1272 = vmatprep.subr.bf16.mxu0 0
    %1273 = vmatpush1.bf16.msra.mxu0 %v380
    %1274 = vmatprep.subr.bf16.mxu0 0
    %1275 = vmatpush1.bf16.msra.mxu0 %v381
    %1276 = vmatprep.subr.bf16.mxu0 0
    %1277 = vmatpush1.bf16.msra.mxu0 %v382
    %1278 = vmatprep.subr.bf16.mxu0 0
    %1279 = vmatpush1.bf16.msra.mxu0 %v383
    %1280 = vmatprep.subr.bf16.mxu0 0
    %1281 = vmatpush1.bf16.msra.mxu0 %v384
    %1282 = vmatprep.subr.bf16.mxu0 0
    %1283 = vmatpush1.bf16.msra.mxu0 %v385
    %1284 = vmatprep.subr.bf16.mxu0 0
    %1285 = vmatpush1.bf16.msra.mxu0 %v386
    %1286 = vmatprep.subr.bf16.mxu0 0
    %1287 = vmatpush1.bf16.msra.mxu0 %v387
    %1288 = vmatprep.subr.bf16.mxu0 0
    %1289 = vmatpush1.bf16.msra.mxu0 %v388
    %1290 = vmatprep.subr.bf16.mxu0 0
    %1291 = vmatpush1.bf16.msra.mxu0 %v389
    %1292 = vmatprep.subr.bf16.mxu0 0
    %1293 = vmatpush1.bf16.msra.mxu0 %v390
    %1294 = vmatprep.subr.bf16.mxu0 0
    %1295 = vmatpush1.bf16.msra.mxu0 %v391
    %1296 = vmatprep.subr.bf16.mxu0 0
    %1297 = vmatpush1.bf16.msra.mxu0 %v392
    %1298 = vmatprep.subr.bf16.mxu0 0
    %1299 = vmatpush1.bf16.msra.mxu0 %v393
    %1300 = vmatprep.subr.bf16.mxu0 0
    %1301 = vmatpush1.bf16.msra.mxu0 %v394
    %1302 = vmatprep.subr.bf16.mxu0 0
    %1303 = vmatpush1.bf16.msra.mxu0 %v395
    %1304 = vmatprep.mubr.bf16.mxu0 %v1267
    %1305 = vmatmul.mubr.bf16.gmra.mrb[0].mxu0 %v1266
    %v1306 = vpop.f32.mrb[0].mxu0
    %v1307 = vadd.f32 %v298, %v1306
    %v1308 = vpop.f32.mrb[0].mxu0
    %v1309 = vpop.f32.mrb[0].mxu0
    %v1310 = vpop.f32.mrb[0].mxu0
    %1311 = vdwg.mxu0
    %1312 = vmatprep.subr.bf16.mxu0 0
    %1313 = vmatpush1.bf16.msra.mxu0 %v396
    %1314 = vmatprep.subr.bf16.mxu0 0
    %1315 = vmatpush1.bf16.msra.mxu0 %v397
    %1316 = vmatprep.subr.bf16.mxu0 0
    %1317 = vmatpush1.bf16.msra.mxu0 %v398
    %1318 = vmatprep.subr.bf16.mxu0 0
    %1319 = vmatpush1.bf16.msra.mxu0 %v399
    %1320 = vmatprep.subr.bf16.mxu0 0
    %1321 = vmatpush1.bf16.msra.mxu0 0
    %1322 = vmatprep.subr.bf16.mxu0 0
    %1323 = vmatpush1.bf16.msra.mxu0 0
    %1324 = vmatprep.subr.bf16.mxu0 0
    %1325 = vmatpush1.bf16.msra.mxu0 0
    %1326 = vmatprep.subr.bf16.mxu0 0
    %1327 = vmatpush1.bf16.msra.mxu0 0
    %1328 = vmatprep.subr.bf16.mxu0 0
    %1329 = vmatpush1.bf16.msra.mxu0 0
    %1330 = vmatprep.subr.bf16.mxu0 0
    %1331 = vmatpush1.bf16.msra.mxu0 0
    %1332 = vmatprep.subr.bf16.mxu0 0
    %1333 = vmatpush1.bf16.msra.mxu0 0
    %1334 = vmatprep.subr.bf16.mxu0 0
    %1335 = vmatpush1.bf16.msra.mxu0 0
    %1336 = vmatprep.subr.bf16.mxu0 0
    %1337 = vmatpush1.bf16.msra.mxu0 0
    %1338 = vmatprep.subr.bf16.mxu0 0
    %1339 = vmatpush1.bf16.msra.mxu0 0
    %1340 = vmatprep.subr.bf16.mxu0 0
    %1341 = vmatpush1.bf16.msra.mxu0 0
    %1342 = vmatprep.subr.bf16.mxu0 0
    %1343 = vmatpush1.bf16.msra.mxu0 0
    %1344 = vmatprep.mubr.bf16.mxu0 0
    %1345 = vmatmul.mubr.bf16.gmra.mrb[0].mxu0 %v1270
    %v1346 = vpop.f32.mrb[0].mxu0
    %v1347 = vadd.f32 %v1307, %v1346
    %v1348 = vpop.f32.mrb[0].mxu0
    %v1349 = vpop.f32.mrb[0].mxu0
    %v1350 = vpop.f32.mrb[0].mxu0
    %1351 = vdwg.mxu0
    %v1352 = vmax.f32 %v1347, 0.0
    %v1353 = vpack.c.bf16 %v1352, %v1352
    %s1354 = scalar_lea.vmem [#allocation2], 192
    %v1355 = vld [vmem:[%s1354] sm:$0xf]
    %v1356 = vld [vmem:[%s1354 + $0x4] sm:$0xf]
    %v1357 = vld [vmem:[%s1354 + $0x8] sm:$0xf]
    %v1358 = vld [vmem:[%s1354 + $0xc] sm:$0xf]
    %v1359 = vld [vmem:[%s1354 + $0x10] sm:$0xf]
    %v1360 = vld [vmem:[%s1354 + $0x14] sm:$0xf]
    %v1361 = vld [vmem:[%s1354 + $0x18] sm:$0xf]
    %v1362 = vld [vmem:[%s1354 + $0x1c] sm:$0xf]
    %v1363 = vld [vmem:[%s1354 + $0x20] sm:$0xf]
    %v1364 = vld [vmem:[%s1354 + $0x24] sm:$0xf]
    %v1365 = vld [vmem:[%s1354 + $0x28] sm:$0xf]
    %v1366 = vld [vmem:[%s1354 + $0x2c] sm:$0xf]
    %v1367 = vld [vmem:[%s1354 + $0x30] sm:$0xf]
    %v1368 = vld [vmem:[%s1354 + $0x34] sm:$0xf]
    %v1369 = vld [vmem:[%s1354 + $0x38] sm:$0xf]
    %v1370 = vld [vmem:[%s1354 + $0x3c] sm:$0xf]
    %v1387 = vunpack.c.l.b16 %v1355
    %v1388 = vunpack.c.l.b16 %v1356
    %v1389 = vunpack.c.l.b16 %v1357
    %v1390 = vunpack.c.l.b16 %v1358
    %v1391 = vunpack.c.l.b16 %v1359
    %v1392 = vunpack.c.l.b16 %v1360
    %v1393 = vunpack.c.l.b16 %v1361
    %v1394 = vunpack.c.l.b16 %v1362
    %v1395 = vunpack.c.l.b16 %v1363
    %v1396 = vunpack.c.l.b16 %v1364
    %v1397 = vunpack.c.l.b16 %v1365
    %v1398 = vunpack.c.l.b16 %v1366
    %v1399 = vunpack.c.l.b16 %v1367
    %v1400 = vunpack.c.l.b16 %v1368
    %v1401 = vunpack.c.l.b16 %v1369
    %v1402 = vunpack.c.l.b16 %v1370
    %v1403 = vpack.c.b16 %v1388, %v1387
    %v1404 = vpack.c.b16 %v1390, %v1389
    %v1405 = vpack.c.b16 %v1392, %v1391
    %v1406 = vpack.c.b16 %v1394, %v1393
    %v1407 = vpack.c.b16 %v1396, %v1395
    %v1408 = vpack.c.b16 %v1398, %v1397
    %v1409 = vpack.c.b16 %v1400, %v1399
    %v1410 = vpack.c.b16 %v1402, %v1401
    %1419 = vmatprep.subr.bf16.mxu0 0
    %1420 = vmatpush1.bf16.msra.mxu0 %v1403
    %1421 = vmatprep.subr.bf16.mxu0 0
    %1422 = vmatpush1.bf16.msra.mxu0 %v1404
    %1423 = vmatprep.subr.bf16.mxu0 0
    %1424 = vmatpush1.bf16.msra.mxu0 %v1405
    %1425 = vmatprep.subr.bf16.mxu0 0
    %1426 = vmatpush1.bf16.msra.mxu0 %v1406
    %1427 = vmatprep.subr.bf16.mxu0 0
    %1428 = vmatpush1.bf16.msra.mxu0 %v1407
    %1429 = vmatprep.subr.bf16.mxu0 0
    %1430 = vmatpush1.bf16.msra.mxu0 %v1408
    %1431 = vmatprep.subr.bf16.mxu0 0
    %1432 = vmatpush1.bf16.msra.mxu0 %v1409
    %1433 = vmatprep.subr.bf16.mxu0 0
    %1434 = vmatpush1.bf16.msra.mxu0 %v1410
    %1435 = vmatprep.subr.bf16.mxu0 0
    %1436 = vmatpush1.bf16.msra.mxu0 0
    %1437 = vmatprep.subr.bf16.mxu0 0
    %1438 = vmatpush1.bf16.msra.mxu0 0
    %1439 = vmatprep.subr.bf16.mxu0 0
    %1440 = vmatpush1.bf16.msra.mxu0 0
    %1441 = vmatprep.subr.bf16.mxu0 0
    %1442 = vmatpush1.bf16.msra.mxu0 0
    %1443 = vmatprep.subr.bf16.mxu0 0
    %1444 = vmatpush1.bf16.msra.mxu0 0
    %1445 = vmatprep.subr.bf16.mxu0 0
    %1446 = vmatpush1.bf16.msra.mxu0 0
    %1447 = vmatprep.subr.bf16.mxu0 0
    %1448 = vmatpush1.bf16.msra.mxu0 0
    %1449 = vmatprep.subr.bf16.mxu0 0
    %1450 = vmatpush1.bf16.msra.mxu0 0
    %1451 = vmatprep.mubr.bf16.mxu0 0
    %1452 = vmatmul.mubr.bf16.gmra.mrb[0].mxu0 %v1353
    %v1453 = vpop.f32.mrb[0].mxu0
    %v1454 = vadd.f32 0.0, %v1453
    %v1455 = vpop.f32.mrb[0].mxu0
    %v1456 = vpop.f32.mrb[0].mxu0
    %v1457 = vpop.f32.mrb[0].mxu0
    %1458 = vdwg.mxu0
    %v1459 = vadd.f32 %v1176, %v1454
    %s1460 = scalar_lea.vmem %s0, 16
    %v1461 = vld [vmem:[%s1460] sm:$0xf]
    %v1463 = vsel %vm181, %v1461, 0
    %1465 = vmatprep.subr.bf16.mxu0 %v161
    %1466 = vmatpush1.bf16.msra.mxu0 %v160
    %1467 = vmatprep.subr.bf16.mxu0 %v164
    %1468 = vmatpush1.bf16.msra.mxu0 %v163
    %1469 = vmatprep.subr.bf16.mxu0 %v167
    %1470 = vmatpush1.bf16.msra.mxu0 %v166
    %1471 = vmatprep.subr.bf16.mxu0 %v190
    %1472 = vmatpush1.bf16.msra.mxu0 %v187
    %1473 = vmatprep.subr.bf16.mxu0 0
    %1474 = vmatpush1.bf16.msra.mxu0 0
    %1475 = vmatprep.subr.bf16.mxu0 0
    %1476 = vmatpush1.bf16.msra.mxu0 0
    %1477 = vmatprep.subr.bf16.mxu0 0
    %1478 = vmatpush1.bf16.msra.mxu0 0
    %1479 = vmatprep.subr.bf16.mxu0 0
    %1480 = vmatpush1.bf16.msra.mxu0 0
    %1481 = vmatprep.subr.bf16.mxu0 0
    %1482 = vmatpush1.bf16.msra.mxu0 0
    %1483 = vmatprep.subr.bf16.mxu0 0
    %1484 = vmatpush1.bf16.msra.mxu0 0
    %1485 = vmatprep.subr.bf16.mxu0 0
    %1486 = vmatpush1.bf16.msra.mxu0 0
    %1487 = vmatprep.subr.bf16.mxu0 0
    %1488 = vmatpush1.bf16.msra.mxu0 0
    %1489 = vmatprep.subr.bf16.mxu0 0
    %1490 = vmatpush1.bf16.msra.mxu0 0
    %1491 = vmatprep.subr.bf16.mxu0 0
    %1492 = vmatpush1.bf16.msra.mxu0 0
    %1493 = vmatprep.subr.bf16.mxu0 0
    %1494 = vmatpush1.bf16.msra.mxu0 0
    %1495 = vmatprep.subr.bf16.mxu0 0
    %1496 = vmatpush1.bf16.msra.mxu0 0
    %1497 = vmatprep.mubr.bf16.mxu0 0
    %1498 = vmatmul.mubr.bf16.gmra.mrb[0].mxu0 %v1463
    %v1499 = vpop.f32.mrb[0].mxu0
    %v1500 = vadd.f32 %v113, %v1499
    %v1501 = vpop.f32.mrb[0].mxu0
    %v1502 = vadd.f32 %v117, %v1501
    %v1503 = vpop.f32.mrb[0].mxu0
    %v1504 = vpop.f32.mrb[0].mxu0
    %1505 = vdwg.mxu0
    %1506 = vmatprep.subr.bf16.mxu0 0
    %1507 = vmatpush1.bf16.msra.mxu0 %v162
    %1508 = vmatprep.subr.bf16.mxu0 0
    %1509 = vmatpush1.bf16.msra.mxu0 %v165
    %1510 = vmatprep.subr.bf16.mxu0 0
    %1511 = vmatpush1.bf16.msra.mxu0 %v168
    %1512 = vmatprep.subr.bf16.mxu0 0
    %1513 = vmatpush1.bf16.msra.mxu0 %v193
    %1514 = vmatprep.subr.bf16.mxu0 0
    %1515 = vmatpush1.bf16.msra.mxu0 0
    %1516 = vmatprep.subr.bf16.mxu0 0
    %1517 = vmatpush1.bf16.msra.mxu0 0
    %1518 = vmatprep.subr.bf16.mxu0 0
    %1519 = vmatpush1.bf16.msra.mxu0 0
    %1520 = vmatprep.subr.bf16.mxu0 0
    %1521 = vmatpush1.bf16.msra.mxu0 0
    %1522 = vmatprep.subr.bf16.mxu0 0
    %1523 = vmatpush1.bf16.msra.mxu0 0
    %1524 = vmatprep.subr.bf16.mxu0 0
    %1525 = vmatpush1.bf16.msra.mxu0 0
    %1526 = vmatprep.subr.bf16.mxu0 0
    %1527 = vmatpush1.bf16.msra.mxu0 0
    %1528 = vmatprep.subr.bf16.mxu0 0
    %1529 = vmatpush1.bf16.msra.mxu0 0
    %1530 = vmatprep.subr.bf16.mxu0 0
    %1531 = vmatpush1.bf16.msra.mxu0 0
    %1532 = vmatprep.subr.bf16.mxu0 0
    %1533 = vmatpush1.bf16.msra.mxu0 0
    %1534 = vmatprep.subr.bf16.mxu0 0
    %1535 = vmatpush1.bf16.msra.mxu0 0
    %1536 = vmatprep.subr.bf16.mxu0 0
    %1537 = vmatpush1.bf16.msra.mxu0 0
    %1538 = vmatprep.mubr.bf16.mxu0 0
    %1539 = vmatmul.mubr.bf16.gmra.mrb[0].mxu0 %v1463
    %v1540 = vpop.f32.mrb[0].mxu0
    %v1541 = vadd.f32 %v121, %v1540
    %v1542 = vpop.f32.mrb[0].mxu0
    %v1543 = vpop.f32.mrb[0].mxu0
    %v1544 = vpop.f32.mrb[0].mxu0
    %1545 = vdwg.mxu0
    %v1546 = vmax.f32 %v1500, 0.0
    %v1547 = vmax.f32 %v1502, 0.0
    %v1548 = vmax.f32 %v1541, 0.0
    %v1549 = vpack.c.bf16 %v1546, %v1546
    %v1550 = vpack.c.bf16 %v1547, %v1547
    %v1551 = vpack.c.bf16 %v1548, %v1548
    %v1553 = vsel %vm420, %v1551, 0
    %1555 = vmatprep.subr.bf16.mxu0 0
    %1556 = vmatpush1.bf16.msra.mxu0 %v380
    %1557 = vmatprep.subr.bf16.mxu0 0
    %1558 = vmatpush1.bf16.msra.mxu0 %v381
    %1559 = vmatprep.subr.bf16.mxu0 0
    %1560 = vmatpush1.bf16.msra.mxu0 %v382
    %1561 = vmatprep.subr.bf16.mxu0 0
    %1562 = vmatpush1.bf16.msra.mxu0 %v383
    %1563 = vmatprep.subr.bf16.mxu0 0
    %1564 = vmatpush1.bf16.msra.mxu0 %v384
    %1565 = vmatprep.subr.bf16.mxu0 0
    %1566 = vmatpush1.bf16.msra.mxu0 %v385
    %1567 = vmatprep.subr.bf16.mxu0 0
    %1568 = vmatpush1.bf16.msra.mxu0 %v386
    %1569 = vmatprep.subr.bf16.mxu0 0
    %1570 = vmatpush1.bf16.msra.mxu0 %v387
    %1571 = vmatprep.subr.bf16.mxu0 0
    %1572 = vmatpush1.bf16.msra.mxu0 %v388
    %1573 = vmatprep.subr.bf16.mxu0 0
    %1574 = vmatpush1.bf16.msra.mxu0 %v389
    %1575 = vmatprep.subr.bf16.mxu0 0
    %1576 = vmatpush1.bf16.msra.mxu0 %v390
    %1577 = vmatprep.subr.bf16.mxu0 0
    %1578 = vmatpush1.bf16.msra.mxu0 %v391
    %1579 = vmatprep.subr.bf16.mxu0 0
    %1580 = vmatpush1.bf16.msra.mxu0 %v392
    %1581 = vmatprep.subr.bf16.mxu0 0
    %1582 = vmatpush1.bf16.msra.mxu0 %v393
    %1583 = vmatprep.subr.bf16.mxu0 0
    %1584 = vmatpush1.bf16.msra.mxu0 %v394
    %1585 = vmatprep.subr.bf16.mxu0 0
    %1586 = vmatpush1.bf16.msra.mxu0 %v395
    %1587 = vmatprep.mubr.bf16.mxu0 %v1550
    %1588 = vmatmul.mubr.bf16.gmra.mrb[0].mxu0 %v1549
    %v1589 = vpop.f32.mrb[0].mxu0
    %v1590 = vadd.f32 %v298, %v1589
    %v1591 = vpop.f32.mrb[0].mxu0
    %v1592 = vpop.f32.mrb[0].mxu0
    %v1593 = vpop.f32.mrb[0].mxu0
    %1594 = vdwg.mxu0
    %1595 = vmatprep.subr.bf16.mxu0 0
    %1596 = vmatpush1.bf16.msra.mxu0 %v396
    %1597 = vmatprep.subr.bf16.mxu0 0
    %1598 = vmatpush1.bf16.msra.mxu0 %v397
    %1599 = vmatprep.subr.bf16.mxu0 0
    %1600 = vmatpush1.bf16.msra.mxu0 %v398
    %1601 = vmatprep.subr.bf16.mxu0 0
    %1602 = vmatpush1.bf16.msra.mxu0 %v399
    %1603 = vmatprep.subr.bf16.mxu0 0
    %1604 = vmatpush1.bf16.msra.mxu0 0
    %1605 = vmatprep.subr.bf16.mxu0 0
    %1606 = vmatpush1.bf16.msra.mxu0 0
    %1607 = vmatprep.subr.bf16.mxu0 0
    %1608 = vmatpush1.bf16.msra.mxu0 0
    %1609 = vmatprep.subr.bf16.mxu0 0
    %1610 = vmatpush1.bf16.msra.mxu0 0
    %1611 = vmatprep.subr.bf16.mxu0 0
    %1612 = vmatpush1.bf16.msra.mxu0 0
    %1613 = vmatprep.subr.bf16.mxu0 0
    %1614 = vmatpush1.bf16.msra.mxu0 0
    %1615 = vmatprep.subr.bf16.mxu0 0
    %1616 = vmatpush1.bf16.msra.mxu0 0
    %1617 = vmatprep.subr.bf16.mxu0 0
    %1618 = vmatpush1.bf16.msra.mxu0 0
    %1619 = vmatprep.subr.bf16.mxu0 0
    %1620 = vmatpush1.bf16.msra.mxu0 0
    %1621 = vmatprep.subr.bf16.mxu0 0
    %1622 = vmatpush1.bf16.msra.mxu0 0
    %1623 = vmatprep.subr.bf16.mxu0 0
    %1624 = vmatpush1.bf16.msra.mxu0 0
    %1625 = vmatprep.subr.bf16.mxu0 0
    %1626 = vmatpush1.bf16.msra.mxu0 0
    %1627 = vmatprep.mubr.bf16.mxu0 0
    %1628 = vmatmul.mubr.bf16.gmra.mrb[0].mxu0 %v1553
    %v1629 = vpop.f32.mrb[0].mxu0
    %v1630 = vadd.f32 %v1590, %v1629
    %v1631 = vpop.f32.mrb[0].mxu0
    %v1632 = vpop.f32.mrb[0].mxu0
    %v1633 = vpop.f32.mrb[0].mxu0
    %1634 = vdwg.mxu0
    %v1635 = vmax.f32 %v1630, 0.0
    %v1636 = vpack.c.bf16 %v1635, %v1635
    %s1637 = scalar_lea.vmem [#allocation2], 256
    %v1638 = vld [vmem:[%s1637] sm:$0xf]
    %v1639 = vld [vmem:[%s1637 + $0x4] sm:$0xf]
    %v1640 = vld [vmem:[%s1637 + $0x8] sm:$0xf]
    %v1641 = vld [vmem:[%s1637 + $0xc] sm:$0xf]
    %v1642 = vld [vmem:[%s1637 + $0x10] sm:$0xf]
    %v1643 = vld [vmem:[%s1637 + $0x14] sm:$0xf]
    %v1644 = vld [vmem:[%s1637 + $0x18] sm:$0xf]
    %v1645 = vld [vmem:[%s1637 + $0x1c] sm:$0xf]
    %v1646 = vld [vmem:[%s1637 + $0x20] sm:$0xf]
    %v1647 = vld [vmem:[%s1637 + $0x24] sm:$0xf]
    %v1648 = vld [vmem:[%s1637 + $0x28] sm:$0xf]
    %v1649 = vld [vmem:[%s1637 + $0x2c] sm:$0xf]
    %v1650 = vld [vmem:[%s1637 + $0x30] sm:$0xf]
    %v1651 = vld [vmem:[%s1637 + $0x34] sm:$0xf]
    %v1652 = vld [vmem:[%s1637 + $0x38] sm:$0xf]
    %v1653 = vld [vmem:[%s1637 + $0x3c] sm:$0xf]
    %v1670 = vunpack.c.l.b16 %v1638
    %v1671 = vunpack.c.l.b16 %v1639
    %v1672 = vunpack.c.l.b16 %v1640
    %v1673 = vunpack.c.l.b16 %v1641
    %v1674 = vunpack.c.l.b16 %v1642
    %v1675 = vunpack.c.l.b16 %v1643
    %v1676 = vunpack.c.l.b16 %v1644
    %v1677 = vunpack.c.l.b16 %v1645
    %v1678 = vunpack.c.l.b16 %v1646
    %v1679 = vunpack.c.l.b16 %v1647
    %v1680 = vunpack.c.l.b16 %v1648
    %v1681 = vunpack.c.l.b16 %v1649
    %v1682 = vunpack.c.l.b16 %v1650
    %v1683 = vunpack.c.l.b16 %v1651
    %v1684 = vunpack.c.l.b16 %v1652
    %v1685 = vunpack.c.l.b16 %v1653
    %v1686 = vpack.c.b16 %v1671, %v1670
    %v1687 = vpack.c.b16 %v1673, %v1672
    %v1688 = vpack.c.b16 %v1675, %v1674
    %v1689 = vpack.c.b16 %v1677, %v1676
    %v1690 = vpack.c.b16 %v1679, %v1678
    %v1691 = vpack.c.b16 %v1681, %v1680
    %v1692 = vpack.c.b16 %v1683, %v1682
    %v1693 = vpack.c.b16 %v1685, %v1684
    %1702 = vmatprep.subr.bf16.mxu0 0
    %1703 = vmatpush1.bf16.msra.mxu0 %v1686
    %1704 = vmatprep.subr.bf16.mxu0 0
    %1705 = vmatpush1.bf16.msra.mxu0 %v1687
    %1706 = vmatprep.subr.bf16.mxu0 0
    %1707 = vmatpush1.bf16.msra.mxu0 %v1688
    %1708 = vmatprep.subr.bf16.mxu0 0
    %1709 = vmatpush1.bf16.msra.mxu0 %v1689
    %1710 = vmatprep.subr.bf16.mxu0 0
    %1711 = vmatpush1.bf16.msra.mxu0 %v1690
    %1712 = vmatprep.subr.bf16.mxu0 0
    %1713 = vmatpush1.bf16.msra.mxu0 %v1691
    %1714 = vmatprep.subr.bf16.mxu0 0
    %1715 = vmatpush1.bf16.msra.mxu0 %v1692
    %1716 = vmatprep.subr.bf16.mxu0 0
    %1717 = vmatpush1.bf16.msra.mxu0 %v1693
    %1718 = vmatprep.subr.bf16.mxu0 0
    %1719 = vmatpush1.bf16.msra.mxu0 0
    %1720 = vmatprep.subr.bf16.mxu0 0
    %1721 = vmatpush1.bf16.msra.mxu0 0
    %1722 = vmatprep.subr.bf16.mxu0 0
    %1723 = vmatpush1.bf16.msra.mxu0 0
    %1724 = vmatprep.subr.bf16.mxu0 0
    %1725 = vmatpush1.bf16.msra.mxu0 0
    %1726 = vmatprep.subr.bf16.mxu0 0
    %1727 = vmatpush1.bf16.msra.mxu0 0
    %1728 = vmatprep.subr.bf16.mxu0 0
    %1729 = vmatpush1.bf16.msra.mxu0 0
    %1730 = vmatprep.subr.bf16.mxu0 0
    %1731 = vmatpush1.bf16.msra.mxu0 0
    %1732 = vmatprep.subr.bf16.mxu0 0
    %1733 = vmatpush1.bf16.msra.mxu0 0
    %1734 = vmatprep.mubr.bf16.mxu0 0
    %1735 = vmatmul.mubr.bf16.gmra.mrb[0].mxu0 %v1636
    %v1736 = vpop.f32.mrb[0].mxu0
    %v1737 = vadd.f32 0.0, %v1736
    %v1738 = vpop.f32.mrb[0].mxu0
    %v1739 = vpop.f32.mrb[0].mxu0
    %v1740 = vpop.f32.mrb[0].mxu0
    %1741 = vdwg.mxu0
    %v1742 = vadd.f32 %v1459, %v1737
    %s1743 = scalar_lea.vmem %s0, 20
    %v1744 = vld [vmem:[%s1743] sm:$0xf]
    %v1746 = vsel %vm181, %v1744, 0
    %1748 = vmatprep.subr.bf16.mxu0 %v161
    %1749 = vmatpush1.bf16.msra.mxu0 %v160
    %1750 = vmatprep.subr.bf16.mxu0 %v164
    %1751 = vmatpush1.bf16.msra.mxu0 %v163
    %1752 = vmatprep.subr.bf16.mxu0 %v167
    %1753 = vmatpush1.bf16.msra.mxu0 %v166
    %1754 = vmatprep.subr.bf16.mxu0 %v190
    %1755 = vmatpush1.bf16.msra.mxu0 %v187
    %1756 = vmatprep.subr.bf16.mxu0 0
    %1757 = vmatpush1.bf16.msra.mxu0 0
    %1758 = vmatprep.subr.bf16.mxu0 0
    %1759 = vmatpush1.bf16.msra.mxu0 0
    %1760 = vmatprep.subr.bf16.mxu0 0
    %1761 = vmatpush1.bf16.msra.mxu0 0
    %1762 = vmatprep.subr.bf16.mxu0 0
    %1763 = vmatpush1.bf16.msra.mxu0 0
    %1764 = vmatprep.subr.bf16.mxu0 0
    %1765 = vmatpush1.bf16.msra.mxu0 0
    %1766 = vmatprep.subr.bf16.mxu0 0
    %1767 = vmatpush1.bf16.msra.mxu0 0
    %1768 = vmatprep.subr.bf16.mxu0 0
    %1769 = vmatpush1.bf16.msra.mxu0 0
    %1770 = vmatprep.subr.bf16.mxu0 0
    %1771 = vmatpush1.bf16.msra.mxu0 0
    %1772 = vmatprep.subr.bf16.mxu0 0
    %1773 = vmatpush1.bf16.msra.mxu0 0
    %1774 = vmatprep.subr.bf16.mxu0 0
    %1775 = vmatpush1.bf16.msra.mxu0 0
    %1776 = vmatprep.subr.bf16.mxu0 0
    %1777 = vmatpush1.bf16.msra.mxu0 0
    %1778 = vmatprep.subr.bf16.mxu0 0
    %1779 = vmatpush1.bf16.msra.mxu0 0
    %1780 = vmatprep.mubr.bf16.mxu0 0
    %1781 = vmatmul.mubr.bf16.gmra.mrb[0].mxu0 %v1746
    %v1782 = vpop.f32.mrb[0].mxu0
    %v1783 = vadd.f32 %v113, %v1782
    %v1784 = vpop.f32.mrb[0].mxu0
    %v1785 = vadd.f32 %v117, %v1784
    %v1786 = vpop.f32.mrb[0].mxu0
    %v1787 = vpop.f32.mrb[0].mxu0
    %1788 = vdwg.mxu0
    %1789 = vmatprep.subr.bf16.mxu0 0
    %1790 = vmatpush1.bf16.msra.mxu0 %v162
    %1791 = vmatprep.subr.bf16.mxu0 0
    %1792 = vmatpush1.bf16.msra.mxu0 %v165
    %1793 = vmatprep.subr.bf16.mxu0 0
    %1794 = vmatpush1.bf16.msra.mxu0 %v168
    %1795 = vmatprep.subr.bf16.mxu0 0
    %1796 = vmatpush1.bf16.msra.mxu0 %v193
    %1797 = vmatprep.subr.bf16.mxu0 0
    %1798 = vmatpush1.bf16.msra.mxu0 0
    %1799 = vmatprep.subr.bf16.mxu0 0
    %1800 = vmatpush1.bf16.msra.mxu0 0
    %1801 = vmatprep.subr.bf16.mxu0 0
    %1802 = vmatpush1.bf16.msra.mxu0 0
    %1803 = vmatprep.subr.bf16.mxu0 0
    %1804 = vmatpush1.bf16.msra.mxu0 0
    %1805 = vmatprep.subr.bf16.mxu0 0
    %1806 = vmatpush1.bf16.msra.mxu0 0
    %1807 = vmatprep.subr.bf16.mxu0 0
    %1808 = vmatpush1.bf16.msra.mxu0 0
    %1809 = vmatprep.subr.bf16.mxu0 0
    %1810 = vmatpush1.bf16.msra.mxu0 0
    %1811 = vmatprep.subr.bf16.mxu0 0
    %1812 = vmatpush1.bf16.msra.mxu0 0
    %1813 = vmatprep.subr.bf16.mxu0 0
    %1814 = vmatpush1.bf16.msra.mxu0 0
    %1815 = vmatprep.subr.bf16.mxu0 0
    %1816 = vmatpush1.bf16.msra.mxu0 0
    %1817 = vmatprep.subr.bf16.mxu0 0
    %1818 = vmatpush1.bf16.msra.mxu0 0
    %1819 = vmatprep.subr.bf16.mxu0 0
    %1820 = vmatpush1.bf16.msra.mxu0 0
    %1821 = vmatprep.mubr.bf16.mxu0 0
    %1822 = vmatmul.mubr.bf16.gmra.mrb[0].mxu0 %v1746
    %v1823 = vpop.f32.mrb[0].mxu0
    %v1824 = vadd.f32 %v121, %v1823
    %v1825 = vpop.f32.mrb[0].mxu0
    %v1826 = vpop.f32.mrb[0].mxu0
    %v1827 = vpop.f32.mrb[0].mxu0
    %1828 = vdwg.mxu0
    %v1829 = vmax.f32 %v1783, 0.0
    %v1830 = vmax.f32 %v1785, 0.0
    %v1831 = vmax.f32 %v1824, 0.0
    %v1832 = vpack.c.bf16 %v1829, %v1829
    %v1833 = vpack.c.bf16 %v1830, %v1830
    %v1834 = vpack.c.bf16 %v1831, %v1831
    %v1836 = vsel %vm420, %v1834, 0
    %1838 = vmatprep.subr.bf16.mxu0 0
    %1839 = vmatpush1.bf16.msra.mxu0 %v380
    %1840 = vmatprep.subr.bf16.mxu0 0
    %1841 = vmatpush1.bf16.msra.mxu0 %v381
    %1842 = vmatprep.subr.bf16.mxu0 0
    %1843 = vmatpush1.bf16.msra.mxu0 %v382
    %1844 = vmatprep.subr.bf16.mxu0 0
    %1845 = vmatpush1.bf16.msra.mxu0 %v383
    %1846 = vmatprep.subr.bf16.mxu0 0
    %1847 = vmatpush1.bf16.msra.mxu0 %v384
    %1848 = vmatprep.subr.bf16.mxu0 0
    %1849 = vmatpush1.bf16.msra.mxu0 %v385
    %1850 = vmatprep.subr.bf16.mxu0 0
    %1851 = vmatpush1.bf16.msra.mxu0 %v386
    %1852 = vmatprep.subr.bf16.mxu0 0
    %1853 = vmatpush1.bf16.msra.mxu0 %v387
    %1854 = vmatprep.subr.bf16.mxu0 0
    %1855 = vmatpush1.bf16.msra.mxu0 %v388
    %1856 = vmatprep.subr.bf16.mxu0 0
    %1857 = vmatpush1.bf16.msra.mxu0 %v389
    %1858 = vmatprep.subr.bf16.mxu0 0
    %1859 = vmatpush1.bf16.msra.mxu0 %v390
    %1860 = vmatprep.subr.bf16.mxu0 0
    %1861 = vmatpush1.bf16.msra.mxu0 %v391
    %1862 = vmatprep.subr.bf16.mxu0 0
    %1863 = vmatpush1.bf16.msra.mxu0 %v392
    %1864 = vmatprep.subr.bf16.mxu0 0
    %1865 = vmatpush1.bf16.msra.mxu0 %v393
    %1866 = vmatprep.subr.bf16.mxu0 0
    %1867 = vmatpush1.bf16.msra.mxu0 %v394
    %1868 = vmatprep.subr.bf16.mxu0 0
    %1869 = vmatpush1.bf16.msra.mxu0 %v395
    %1870 = vmatprep.mubr.bf16.mxu0 %v1833
    %1871 = vmatmul.mubr.bf16.gmra.mrb[0].mxu0 %v1832
    %v1872 = vpop.f32.mrb[0].mxu0
    %v1873 = vadd.f32 %v298, %v1872
    %v1874 = vpop.f32.mrb[0].mxu0
    %v1875 = vpop.f32.mrb[0].mxu0
    %v1876 = vpop.f32.mrb[0].mxu0
    %1877 = vdwg.mxu0
    %1878 = vmatprep.subr.bf16.mxu0 0
    %1879 = vmatpush1.bf16.msra.mxu0 %v396
    %1880 = vmatprep.subr.bf16.mxu0 0
    %1881 = vmatpush1.bf16.msra.mxu0 %v397
    %1882 = vmatprep.subr.bf16.mxu0 0
    %1883 = vmatpush1.bf16.msra.mxu0 %v398
    %1884 = vmatprep.subr.bf16.mxu0 0
    %1885 = vmatpush1.bf16.msra.mxu0 %v399
    %1886 = vmatprep.subr.bf16.mxu0 0
    %1887 = vmatpush1.bf16.msra.mxu0 0
    %1888 = vmatprep.subr.bf16.mxu0 0
    %1889 = vmatpush1.bf16.msra.mxu0 0
    %1890 = vmatprep.subr.bf16.mxu0 0
    %1891 = vmatpush1.bf16.msra.mxu0 0
    %1892 = vmatprep.subr.bf16.mxu0 0
    %1893 = vmatpush1.bf16.msra.mxu0 0
    %1894 = vmatprep.subr.bf16.mxu0 0
    %1895 = vmatpush1.bf16.msra.mxu0 0
    %1896 = vmatprep.subr.bf16.mxu0 0
    %1897 = vmatpush1.bf16.msra.mxu0 0
    %1898 = vmatprep.subr.bf16.mxu0 0
    %1899 = vmatpush1.bf16.msra.mxu0 0
    %1900 = vmatprep.subr.bf16.mxu0 0
    %1901 = vmatpush1.bf16.msra.mxu0 0
    %1902 = vmatprep.subr.bf16.mxu0 0
    %1903 = vmatpush1.bf16.msra.mxu0 0
    %1904 = vmatprep.subr.bf16.mxu0 0
    %1905 = vmatpush1.bf16.msra.mxu0 0
    %1906 = vmatprep.subr.bf16.mxu0 0
    %1907 = vmatpush1.bf16.msra.mxu0 0
    %1908 = vmatprep.subr.bf16.mxu0 0
    %1909 = vmatpush1.bf16.msra.mxu0 0
    %1910 = vmatprep.mubr.bf16.mxu0 0
    %1911 = vmatmul.mubr.bf16.gmra.mrb[0].mxu0 %v1836
    %v1912 = vpop.f32.mrb[0].mxu0
    %v1913 = vadd.f32 %v1873, %v1912
    %v1914 = vpop.f32.mrb[0].mxu0
    %v1915 = vpop.f32.mrb[0].mxu0
    %v1916 = vpop.f32.mrb[0].mxu0
    %1917 = vdwg.mxu0
    %v1918 = vmax.f32 %v1913, 0.0
    %v1919 = vpack.c.bf16 %v1918, %v1918
    %s1920 = scalar_lea.vmem [#allocation2], 320
    %v1921 = vld [vmem:[%s1920] sm:$0xf]
    %v1922 = vld [vmem:[%s1920 + $0x4] sm:$0xf]
    %v1923 = vld [vmem:[%s1920 + $0x8] sm:$0xf]
    %v1924 = vld [vmem:[%s1920 + $0xc] sm:$0xf]
    %v1925 = vld [vmem:[%s1920 + $0x10] sm:$0xf]
    %v1926 = vld [vmem:[%s1920 + $0x14] sm:$0xf]
    %v1927 = vld [vmem:[%s1920 + $0x18] sm:$0xf]
    %v1928 = vld [vmem:[%s1920 + $0x1c] sm:$0xf]
    %v1929 = vld [vmem:[%s1920 + $0x20] sm:$0xf]
    %v1930 = vld [vmem:[%s1920 + $0x24] sm:$0xf]
    %v1931 = vld [vmem:[%s1920 + $0x28] sm:$0xf]
    %v1932 = vld [vmem:[%s1920 + $0x2c] sm:$0xf]
    %v1933 = vld [vmem:[%s1920 + $0x30] sm:$0xf]
    %v1934 = vld [vmem:[%s1920 + $0x34] sm:$0xf]
    %v1935 = vld [vmem:[%s1920 + $0x38] sm:$0xf]
    %v1936 = vld [vmem:[%s1920 + $0x3c] sm:$0xf]
    %v1953 = vunpack.c.l.b16 %v1921
    %v1954 = vunpack.c.l.b16 %v1922
    %v1955 = vunpack.c.l.b16 %v1923
    %v1956 = vunpack.c.l.b16 %v1924
    %v1957 = vunpack.c.l.b16 %v1925
    %v1958 = vunpack.c.l.b16 %v1926
    %v1959 = vunpack.c.l.b16 %v1927
    %v1960 = vunpack.c.l.b16 %v1928
    %v1961 = vunpack.c.l.b16 %v1929
    %v1962 = vunpack.c.l.b16 %v1930
    %v1963 = vunpack.c.l.b16 %v1931
    %v1964 = vunpack.c.l.b16 %v1932
    %v1965 = vunpack.c.l.b16 %v1933
    %v1966 = vunpack.c.l.b16 %v1934
    %v1967 = vunpack.c.l.b16 %v1935
    %v1968 = vunpack.c.l.b16 %v1936
    %v1969 = vpack.c.b16 %v1954, %v1953
    %v1970 = vpack.c.b16 %v1956, %v1955
    %v1971 = vpack.c.b16 %v1958, %v1957
    %v1972 = vpack.c.b16 %v1960, %v1959
    %v1973 = vpack.c.b16 %v1962, %v1961
    %v1974 = vpack.c.b16 %v1964, %v1963
    %v1975 = vpack.c.b16 %v1966, %v1965
    %v1976 = vpack.c.b16 %v1968, %v1967
    %1985 = vmatprep.subr.bf16.mxu0 0
    %1986 = vmatpush1.bf16.msra.mxu0 %v1969
    %1987 = vmatprep.subr.bf16.mxu0 0
    %1988 = vmatpush1.bf16.msra.mxu0 %v1970
    %1989 = vmatprep.subr.bf16.mxu0 0
    %1990 = vmatpush1.bf16.msra.mxu0 %v1971
    %1991 = vmatprep.subr.bf16.mxu0 0
    %1992 = vmatpush1.bf16.msra.mxu0 %v1972
    %1993 = vmatprep.subr.bf16.mxu0 0
    %1994 = vmatpush1.bf16.msra.mxu0 %v1973
    %1995 = vmatprep.subr.bf16.mxu0 0
    %1996 = vmatpush1.bf16.msra.mxu0 %v1974
    %1997 = vmatprep.subr.bf16.mxu0 0
    %1998 = vmatpush1.bf16.msra.mxu0 %v1975
    %1999 = vmatprep.subr.bf16.mxu0 0
    %2000 = vmatpush1.bf16.msra.mxu0 %v1976
    %2001 = vmatprep.subr.bf16.mxu0 0
    %2002 = vmatpush1.bf16.msra.mxu0 0
    %2003 = vmatprep.subr.bf16.mxu0 0
    %2004 = vmatpush1.bf16.msra.mxu0 0
    %2005 = vmatprep.subr.bf16.mxu0 0
    %2006 = vmatpush1.bf16.msra.mxu0 0
    %2007 = vmatprep.subr.bf16.mxu0 0
    %2008 = vmatpush1.bf16.msra.mxu0 0
    %2009 = vmatprep.subr.bf16.mxu0 0
    %2010 = vmatpush1.bf16.msra.mxu0 0
    %2011 = vmatprep.subr.bf16.mxu0 0
    %2012 = vmatpush1.bf16.msra.mxu0 0
    %2013 = vmatprep.subr.bf16.mxu0 0
    %2014 = vmatpush1.bf16.msra.mxu0 0
    %2015 = vmatprep.subr.bf16.mxu0 0
    %2016 = vmatpush1.bf16.msra.mxu0 0
    %2017 = vmatprep.mubr.bf16.mxu0 0
    %2018 = vmatmul.mubr.bf16.gmra.mrb[0].mxu0 %v1919
    %v2019 = vpop.f32.mrb[0].mxu0
    %v2020 = vadd.f32 0.0, %v2019
    %v2021 = vpop.f32.mrb[0].mxu0
    %v2022 = vpop.f32.mrb[0].mxu0
    %v2023 = vpop.f32.mrb[0].mxu0
    %2024 = vdwg.mxu0
    %v2025 = vadd.f32 %v1742, %v2020
    %s2026 = scalar_lea.vmem %s0, 24
    %v2027 = vld [vmem:[%s2026] sm:$0xf]
    %v2029 = vsel %vm181, %v2027, 0
    %2031 = vmatprep.subr.bf16.mxu0 %v161
    %2032 = vmatpush1.bf16.msra.mxu0 %v160
    %2033 = vmatprep.subr.bf16.mxu0 %v164
    %2034 = vmatpush1.bf16.msra.mxu0 %v163
    %2035 = vmatprep.subr.bf16.mxu0 %v167
    %2036 = vmatpush1.bf16.msra.mxu0 %v166
    %2037 = vmatprep.subr.bf16.mxu0 %v190
    %2038 = vmatpush1.bf16.msra.mxu0 %v187
    %2039 = vmatprep.subr.bf16.mxu0 0
    %2040 = vmatpush1.bf16.msra.mxu0 0
    %2041 = vmatprep.subr.bf16.mxu0 0
    %2042 = vmatpush1.bf16.msra.mxu0 0
    %2043 = vmatprep.subr.bf16.mxu0 0
    %2044 = vmatpush1.bf16.msra.mxu0 0
    %2045 = vmatprep.subr.bf16.mxu0 0
    %2046 = vmatpush1.bf16.msra.mxu0 0
    %2047 = vmatprep.subr.bf16.mxu0 0
    %2048 = vmatpush1.bf16.msra.mxu0 0
    %2049 = vmatprep.subr.bf16.mxu0 0
    %2050 = vmatpush1.bf16.msra.mxu0 0
    %2051 = vmatprep.subr.bf16.mxu0 0
    %2052 = vmatpush1.bf16.msra.mxu0 0
    %2053 = vmatprep.subr.bf16.mxu0 0
    %2054 = vmatpush1.bf16.msra.mxu0 0
    %2055 = vmatprep.subr.bf16.mxu0 0
    %2056 = vmatpush1.bf16.msra.mxu0 0
    %2057 = vmatprep.subr.bf16.mxu0 0
    %2058 = vmatpush1.bf16.msra.mxu0 0
    %2059 = vmatprep.subr.bf16.mxu0 0
    %2060 = vmatpush1.bf16.msra.mxu0 0
    %2061 = vmatprep.subr.bf16.mxu0 0
    %2062 = vmatpush1.bf16.msra.mxu0 0
    %2063 = vmatprep.mubr.bf16.mxu0 0
    %2064 = vmatmul.mubr.bf16.gmra.mrb[0].mxu0 %v2029
    %v2065 = vpop.f32.mrb[0].mxu0
    %v2066 = vadd.f32 %v113, %v2065
    %v2067 = vpop.f32.mrb[0].mxu0
    %v2068 = vadd.f32 %v117, %v2067
    %v2069 = vpop.f32.mrb[0].mxu0
    %v2070 = vpop.f32.mrb[0].mxu0
    %2071 = vdwg.mxu0
    %2072 = vmatprep.subr.bf16.mxu0 0
    %2073 = vmatpush1.bf16.msra.mxu0 %v162
    %2074 = vmatprep.subr.bf16.mxu0 0
    %2075 = vmatpush1.bf16.msra.mxu0 %v165
    %2076 = vmatprep.subr.bf16.mxu0 0
    %2077 = vmatpush1.bf16.msra.mxu0 %v168
    %2078 = vmatprep.subr.bf16.mxu0 0
    %2079 = vmatpush1.bf16.msra.mxu0 %v193
    %2080 = vmatprep.subr.bf16.mxu0 0
    %2081 = vmatpush1.bf16.msra.mxu0 0
    %2082 = vmatprep.subr.bf16.mxu0 0
    %2083 = vmatpush1.bf16.msra.mxu0 0
    %2084 = vmatprep.subr.bf16.mxu0 0
    %2085 = vmatpush1.bf16.msra.mxu0 0
    %2086 = vmatprep.subr.bf16.mxu0 0
    %2087 = vmatpush1.bf16.msra.mxu0 0
    %2088 = vmatprep.subr.bf16.mxu0 0
    %2089 = vmatpush1.bf16.msra.mxu0 0
    %2090 = vmatprep.subr.bf16.mxu0 0
    %2091 = vmatpush1.bf16.msra.mxu0 0
    %2092 = vmatprep.subr.bf16.mxu0 0
    %2093 = vmatpush1.bf16.msra.mxu0 0
    %2094 = vmatprep.subr.bf16.mxu0 0
    %2095 = vmatpush1.bf16.msra.mxu0 0
    %2096 = vmatprep.subr.bf16.mxu0 0
    %2097 = vmatpush1.bf16.msra.mxu0 0
    %2098 = vmatprep.subr.bf16.mxu0 0
    %2099 = vmatpush1.bf16.msra.mxu0 0
    %2100 = vmatprep.subr.bf16.mxu0 0
    %2101 = vmatpush1.bf16.msra.mxu0 0
    %2102 = vmatprep.subr.bf16.mxu0 0
    %2103 = vmatpush1.bf16.msra.mxu0 0
    %2104 = vmatprep.mubr.bf16.mxu0 0
    %2105 = vmatmul.mubr.bf16.gmra.mrb[0].mxu0 %v2029
    %v2106 = vpop.f32.mrb[0].mxu0
    %v2107 = vadd.f32 %v121, %v2106
    %v2108 = vpop.f32.mrb[0].mxu0
    %v2109 = vpop.f32.mrb[0].mxu0
    %v2110 = vpop.f32.mrb[0].mxu0
    %2111 = vdwg.mxu0
    %v2112 = vmax.f32 %v2066, 0.0
    %v2113 = vmax.f32 %v2068, 0.0
    %v2114 = vmax.f32 %v2107, 0.0
    %v2115 = vpack.c.bf16 %v2112, %v2112
    %v2116 = vpack.c.bf16 %v2113, %v2113
    %v2117 = vpack.c.bf16 %v2114, %v2114
    %v2119 = vsel %vm420, %v2117, 0
    %2121 = vmatprep.subr.bf16.mxu0 0
    %2122 = vmatpush1.bf16.msra.mxu0 %v380
    %2123 = vmatprep.subr.bf16.mxu0 0
    %2124 = vmatpush1.bf16.msra.mxu0 %v381
    %2125 = vmatprep.subr.bf16.mxu0 0
    %2126 = vmatpush1.bf16.msra.mxu0 %v382
    %2127 = vmatprep.subr.bf16.mxu0 0
    %2128 = vmatpush1.bf16.msra.mxu0 %v383
    %2129 = vmatprep.subr.bf16.mxu0 0
    %2130 = vmatpush1.bf16.msra.mxu0 %v384
    %2131 = vmatprep.subr.bf16.mxu0 0
    %2132 = vmatpush1.bf16.msra.mxu0 %v385
    %2133 = vmatprep.subr.bf16.mxu0 0
    %2134 = vmatpush1.bf16.msra.mxu0 %v386
    %2135 = vmatprep.subr.bf16.mxu0 0
    %2136 = vmatpush1.bf16.msra.mxu0 %v387
    %2137 = vmatprep.subr.bf16.mxu0 0
    %2138 = vmatpush1.bf16.msra.mxu0 %v388
    %2139 = vmatprep.subr.bf16.mxu0 0
    %2140 = vmatpush1.bf16.msra.mxu0 %v389
    %2141 = vmatprep.subr.bf16.mxu0 0
    %2142 = vmatpush1.bf16.msra.mxu0 %v390
    %2143 = vmatprep.subr.bf16.mxu0 0
    %2144 = vmatpush1.bf16.msra.mxu0 %v391
    %2145 = vmatprep.subr.bf16.mxu0 0
    %2146 = vmatpush1.bf16.msra.mxu0 %v392
    %2147 = vmatprep.subr.bf16.mxu0 0
    %2148 = vmatpush1.bf16.msra.mxu0 %v393
    %2149 = vmatprep.subr.bf16.mxu0 0
    %2150 = vmatpush1.bf16.msra.mxu0 %v394
    %2151 = vmatprep.subr.bf16.mxu0 0
    %2152 = vmatpush1.bf16.msra.mxu0 %v395
    %2153 = vmatprep.mubr.bf16.mxu0 %v2116
    %2154 = vmatmul.mubr.bf16.gmra.mrb[0].mxu0 %v2115
    %v2155 = vpop.f32.mrb[0].mxu0
    %v2156 = vadd.f32 %v298, %v2155
    %v2157 = vpop.f32.mrb[0].mxu0
    %v2158 = vpop.f32.mrb[0].mxu0
    %v2159 = vpop.f32.mrb[0].mxu0
    %2160 = vdwg.mxu0
    %2161 = vmatprep.subr.bf16.mxu0 0
    %2162 = vmatpush1.bf16.msra.mxu0 %v396
    %2163 = vmatprep.subr.bf16.mxu0 0
    %2164 = vmatpush1.bf16.msra.mxu0 %v397
    %2165 = vmatprep.subr.bf16.mxu0 0
    %2166 = vmatpush1.bf16.msra.mxu0 %v398
    %2167 = vmatprep.subr.bf16.mxu0 0
    %2168 = vmatpush1.bf16.msra.mxu0 %v399
    %2169 = vmatprep.subr.bf16.mxu0 0
    %2170 = vmatpush1.bf16.msra.mxu0 0
    %2171 = vmatprep.subr.bf16.mxu0 0
    %2172 = vmatpush1.bf16.msra.mxu0 0
    %2173 = vmatprep.subr.bf16.mxu0 0
    %2174 = vmatpush1.bf16.msra.mxu0 0
    %2175 = vmatprep.subr.bf16.mxu0 0
    %2176 = vmatpush1.bf16.msra.mxu0 0
    %2177 = vmatprep.subr.bf16.mxu0 0
    %2178 = vmatpush1.bf16.msra.mxu0 0
    %2179 = vmatprep.subr.bf16.mxu0 0
    %2180 = vmatpush1.bf16.msra.mxu0 0
    %2181 = vmatprep.subr.bf16.mxu0 0
    %2182 = vmatpush1.bf16.msra.mxu0 0
    %2183 = vmatprep.subr.bf16.mxu0 0
    %2184 = vmatpush1.bf16.msra.mxu0 0
    %2185 = vmatprep.subr.bf16.mxu0 0
    %2186 = vmatpush1.bf16.msra.mxu0 0
    %2187 = vmatprep.subr.bf16.mxu0 0
    %2188 = vmatpush1.bf16.msra.mxu0 0
    %2189 = vmatprep.subr.bf16.mxu0 0
    %2190 = vmatpush1.bf16.msra.mxu0 0
    %2191 = vmatprep.subr.bf16.mxu0 0
    %2192 = vmatpush1.bf16.msra.mxu0 0
    %2193 = vmatprep.mubr.bf16.mxu0 0
    %2194 = vmatmul.mubr.bf16.gmra.mrb[0].mxu0 %v2119
    %v2195 = vpop.f32.mrb[0].mxu0
    %v2196 = vadd.f32 %v2156, %v2195
    %v2197 = vpop.f32.mrb[0].mxu0
    %v2198 = vpop.f32.mrb[0].mxu0
    %v2199 = vpop.f32.mrb[0].mxu0
    %2200 = vdwg.mxu0
    %v2201 = vmax.f32 %v2196, 0.0
    %v2202 = vpack.c.bf16 %v2201, %v2201
    %s2203 = scalar_lea.vmem [#allocation2], 384
    %v2204 = vld [vmem:[%s2203] sm:$0xf]
    %v2205 = vld [vmem:[%s2203 + $0x4] sm:$0xf]
    %v2206 = vld [vmem:[%s2203 + $0x8] sm:$0xf]
    %v2207 = vld [vmem:[%s2203 + $0xc] sm:$0xf]
    %v2208 = vld [vmem:[%s2203 + $0x10] sm:$0xf]
    %v2209 = vld [vmem:[%s2203 + $0x14] sm:$0xf]
    %v2210 = vld [vmem:[%s2203 + $0x18] sm:$0xf]
    %v2211 = vld [vmem:[%s2203 + $0x1c] sm:$0xf]
    %v2212 = vld [vmem:[%s2203 + $0x20] sm:$0xf]
    %v2213 = vld [vmem:[%s2203 + $0x24] sm:$0xf]
    %v2214 = vld [vmem:[%s2203 + $0x28] sm:$0xf]
    %v2215 = vld [vmem:[%s2203 + $0x2c] sm:$0xf]
    %v2216 = vld [vmem:[%s2203 + $0x30] sm:$0xf]
    %v2217 = vld [vmem:[%s2203 + $0x34] sm:$0xf]
    %v2218 = vld [vmem:[%s2203 + $0x38] sm:$0xf]
    %v2219 = vld [vmem:[%s2203 + $0x3c] sm:$0xf]
    %v2236 = vunpack.c.l.b16 %v2204
    %v2237 = vunpack.c.l.b16 %v2205
    %v2238 = vunpack.c.l.b16 %v2206
    %v2239 = vunpack.c.l.b16 %v2207
    %v2240 = vunpack.c.l.b16 %v2208
    %v2241 = vunpack.c.l.b16 %v2209
    %v2242 = vunpack.c.l.b16 %v2210
    %v2243 = vunpack.c.l.b16 %v2211
    %v2244 = vunpack.c.l.b16 %v2212
    %v2245 = vunpack.c.l.b16 %v2213
    %v2246 = vunpack.c.l.b16 %v2214
    %v2247 = vunpack.c.l.b16 %v2215
    %v2248 = vunpack.c.l.b16 %v2216
    %v2249 = vunpack.c.l.b16 %v2217
    %v2250 = vunpack.c.l.b16 %v2218
    %v2251 = vunpack.c.l.b16 %v2219
    %v2252 = vpack.c.b16 %v2237, %v2236
    %v2253 = vpack.c.b16 %v2239, %v2238
    %v2254 = vpack.c.b16 %v2241, %v2240
    %v2255 = vpack.c.b16 %v2243, %v2242
    %v2256 = vpack.c.b16 %v2245, %v2244
    %v2257 = vpack.c.b16 %v2247, %v2246
    %v2258 = vpack.c.b16 %v2249, %v2248
    %v2259 = vpack.c.b16 %v2251, %v2250
    %2268 = vmatprep.subr.bf16.mxu0 0
    %2269 = vmatpush1.bf16.msra.mxu0 %v2252
    %2270 = vmatprep.subr.bf16.mxu0 0
    %2271 = vmatpush1.bf16.msra.mxu0 %v2253
    %2272 = vmatprep.subr.bf16.mxu0 0
    %2273 = vmatpush1.bf16.msra.mxu0 %v2254
    %2274 = vmatprep.subr.bf16.mxu0 0
    %2275 = vmatpush1.bf16.msra.mxu0 %v2255
    %2276 = vmatprep.subr.bf16.mxu0 0
    %2277 = vmatpush1.bf16.msra.mxu0 %v2256
    %2278 = vmatprep.subr.bf16.mxu0 0
    %2279 = vmatpush1.bf16.msra.mxu0 %v2257
    %2280 = vmatprep.subr.bf16.mxu0 0
    %2281 = vmatpush1.bf16.msra.mxu0 %v2258
    %2282 = vmatprep.subr.bf16.mxu0 0
    %2283 = vmatpush1.bf16.msra.mxu0 %v2259
    %2284 = vmatprep.subr.bf16.mxu0 0
    %2285 = vmatpush1.bf16.msra.mxu0 0
    %2286 = vmatprep.subr.bf16.mxu0 0
    %2287 = vmatpush1.bf16.msra.mxu0 0
    %2288 = vmatprep.subr.bf16.mxu0 0
    %2289 = vmatpush1.bf16.msra.mxu0 0
    %2290 = vmatprep.subr.bf16.mxu0 0
    %2291 = vmatpush1.bf16.msra.mxu0 0
    %2292 = vmatprep.subr.bf16.mxu0 0
    %2293 = vmatpush1.bf16.msra.mxu0 0
    %2294 = vmatprep.subr.bf16.mxu0 0
    %2295 = vmatpush1.bf16.msra.mxu0 0
    %2296 = vmatprep.subr.bf16.mxu0 0
    %2297 = vmatpush1.bf16.msra.mxu0 0
    %2298 = vmatprep.subr.bf16.mxu0 0
    %2299 = vmatpush1.bf16.msra.mxu0 0
    %2300 = vmatprep.mubr.bf16.mxu0 0
    %2301 = vmatmul.mubr.bf16.gmra.mrb[0].mxu0 %v2202
    %v2302 = vpop.f32.mrb[0].mxu0
    %v2303 = vadd.f32 0.0, %v2302
    %v2304 = vpop.f32.mrb[0].mxu0
    %v2305 = vpop.f32.mrb[0].mxu0
    %v2306 = vpop.f32.mrb[0].mxu0
    %2307 = vdwg.mxu0
    %v2308 = vadd.f32 %v2025, %v2303
    %s2309 = scalar_lea.vmem %s0, 28
    %v2310 = vld [vmem:[%s2309] sm:$0xf]
    %v2312 = vsel %vm181, %v2310, 0
    %2314 = vmatprep.subr.bf16.mxu0 %v161
    %2315 = vmatpush1.bf16.msra.mxu0 %v160
    %2316 = vmatprep.subr.bf16.mxu0 %v164
    %2317 = vmatpush1.bf16.msra.mxu0 %v163
    %2318 = vmatprep.subr.bf16.mxu0 %v167
    %2319 = vmatpush1.bf16.msra.mxu0 %v166
    %2320 = vmatprep.subr.bf16.mxu0 %v190
    %2321 = vmatpush1.bf16.msra.mxu0 %v187
    %2322 = vmatprep.subr.bf16.mxu0 0
    %2323 = vmatpush1.bf16.msra.mxu0 0
    %2324 = vmatprep.subr.bf16.mxu0 0
    %2325 = vmatpush1.bf16.msra.mxu0 0
    %2326 = vmatprep.subr.bf16.mxu0 0
    %2327 = vmatpush1.bf16.msra.mxu0 0
    %2328 = vmatprep.subr.bf16.mxu0 0
    %2329 = vmatpush1.bf16.msra.mxu0 0
    %2330 = vmatprep.subr.bf16.mxu0 0
    %2331 = vmatpush1.bf16.msra.mxu0 0
    %2332 = vmatprep.subr.bf16.mxu0 0
    %2333 = vmatpush1.bf16.msra.mxu0 0
    %2334 = vmatprep.subr.bf16.mxu0 0
    %2335 = vmatpush1.bf16.msra.mxu0 0
    %2336 = vmatprep.subr.bf16.mxu0 0
    %2337 = vmatpush1.bf16.msra.mxu0 0
    %2338 = vmatprep.subr.bf16.mxu0 0
    %2339 = vmatpush1.bf16.msra.mxu0 0
    %2340 = vmatprep.subr.bf16.mxu0 0
    %2341 = vmatpush1.bf16.msra.mxu0 0
    %2342 = vmatprep.subr.bf16.mxu0 0
    %2343 = vmatpush1.bf16.msra.mxu0 0
    %2344 = vmatprep.subr.bf16.mxu0 0
    %2345 = vmatpush1.bf16.msra.mxu0 0
    %2346 = vmatprep.mubr.bf16.mxu0 0
    %2347 = vmatmul.mubr.bf16.gmra.mrb[0].mxu0 %v2312
    %v2348 = vpop.f32.mrb[0].mxu0
    %v2349 = vadd.f32 %v113, %v2348
    %v2350 = vpop.f32.mrb[0].mxu0
    %v2351 = vadd.f32 %v117, %v2350
    %v2352 = vpop.f32.mrb[0].mxu0
    %v2353 = vpop.f32.mrb[0].mxu0
    %2354 = vdwg.mxu0
    %2355 = vmatprep.subr.bf16.mxu0 0
    %2356 = vmatpush1.bf16.msra.mxu0 %v162
    %2357 = vmatprep.subr.bf16.mxu0 0
    %2358 = vmatpush1.bf16.msra.mxu0 %v165
    %2359 = vmatprep.subr.bf16.mxu0 0
    %2360 = vmatpush1.bf16.msra.mxu0 %v168
    %2361 = vmatprep.subr.bf16.mxu0 0
    %2362 = vmatpush1.bf16.msra.mxu0 %v193
    %2363 = vmatprep.subr.bf16.mxu0 0
    %2364 = vmatpush1.bf16.msra.mxu0 0
    %2365 = vmatprep.subr.bf16.mxu0 0
    %2366 = vmatpush1.bf16.msra.mxu0 0
    %2367 = vmatprep.subr.bf16.mxu0 0
    %2368 = vmatpush1.bf16.msra.mxu0 0
    %2369 = vmatprep.subr.bf16.mxu0 0
    %2370 = vmatpush1.bf16.msra.mxu0 0
    %2371 = vmatprep.subr.bf16.mxu0 0
    %2372 = vmatpush1.bf16.msra.mxu0 0
    %2373 = vmatprep.subr.bf16.mxu0 0
    %2374 = vmatpush1.bf16.msra.mxu0 0
    %2375 = vmatprep.subr.bf16.mxu0 0
    %2376 = vmatpush1.bf16.msra.mxu0 0
    %2377 = vmatprep.subr.bf16.mxu0 0
    %2378 = vmatpush1.bf16.msra.mxu0 0
    %2379 = vmatprep.subr.bf16.mxu0 0
    %2380 = vmatpush1.bf16.msra.mxu0 0
    %2381 = vmatprep.subr.bf16.mxu0 0
    %2382 = vmatpush1.bf16.msra.mxu0 0
    %2383 = vmatprep.subr.bf16.mxu0 0
    %2384 = vmatpush1.bf16.msra.mxu0 0
    %2385 = vmatprep.subr.bf16.mxu0 0
    %2386 = vmatpush1.bf16.msra.mxu0 0
    %2387 = vmatprep.mubr.bf16.mxu0 0
    %2388 = vmatmul.mubr.bf16.gmra.mrb[0].mxu0 %v2312
    %v2389 = vpop.f32.mrb[0].mxu0
    %v2390 = vadd.f32 %v121, %v2389
    %v2391 = vpop.f32.mrb[0].mxu0
    %v2392 = vpop.f32.mrb[0].mxu0
    %v2393 = vpop.f32.mrb[0].mxu0
    %2394 = vdwg.mxu0
    %v2395 = vmax.f32 %v2349, 0.0
    %v2396 = vmax.f32 %v2351, 0.0
    %v2397 = vmax.f32 %v2390, 0.0
    %v2398 = vpack.c.bf16 %v2395, %v2395
    %v2399 = vpack.c.bf16 %v2396, %v2396
    %v2400 = vpack.c.bf16 %v2397, %v2397
    %v2402 = vsel %vm420, %v2400, 0
    %2404 = vmatprep.subr.bf16.mxu0 0
    %2405 = vmatpush1.bf16.msra.mxu0 %v380
    %2406 = vmatprep.subr.bf16.mxu0 0
    %2407 = vmatpush1.bf16.msra.mxu0 %v381
    %2408 = vmatprep.subr.bf16.mxu0 0
    %2409 = vmatpush1.bf16.msra.mxu0 %v382
    %2410 = vmatprep.subr.bf16.mxu0 0
    %2411 = vmatpush1.bf16.msra.mxu0 %v383
    %2412 = vmatprep.subr.bf16.mxu0 0
    %2413 = vmatpush1.bf16.msra.mxu0 %v384
    %2414 = vmatprep.subr.bf16.mxu0 0
    %2415 = vmatpush1.bf16.msra.mxu0 %v385
    %2416 = vmatprep.subr.bf16.mxu0 0
    %2417 = vmatpush1.bf16.msra.mxu0 %v386
    %2418 = vmatprep.subr.bf16.mxu0 0
    %2419 = vmatpush1.bf16.msra.mxu0 %v387
    %2420 = vmatprep.subr.bf16.mxu0 0
    %2421 = vmatpush1.bf16.msra.mxu0 %v388
    %2422 = vmatprep.subr.bf16.mxu0 0
    %2423 = vmatpush1.bf16.msra.mxu0 %v389
    %2424 = vmatprep.subr.bf16.mxu0 0
    %2425 = vmatpush1.bf16.msra.mxu0 %v390
    %2426 = vmatprep.subr.bf16.mxu0 0
    %2427 = vmatpush1.bf16.msra.mxu0 %v391
    %2428 = vmatprep.subr.bf16.mxu0 0
    %2429 = vmatpush1.bf16.msra.mxu0 %v392
    %2430 = vmatprep.subr.bf16.mxu0 0
    %2431 = vmatpush1.bf16.msra.mxu0 %v393
    %2432 = vmatprep.subr.bf16.mxu0 0
    %2433 = vmatpush1.bf16.msra.mxu0 %v394
    %2434 = vmatprep.subr.bf16.mxu0 0
    %2435 = vmatpush1.bf16.msra.mxu0 %v395
    %2436 = vmatprep.mubr.bf16.mxu0 %v2399
    %2437 = vmatmul.mubr.bf16.gmra.mrb[0].mxu0 %v2398
    %v2438 = vpop.f32.mrb[0].mxu0
    %v2439 = vadd.f32 %v298, %v2438
    %v2440 = vpop.f32.mrb[0].mxu0
    %v2441 = vpop.f32.mrb[0].mxu0
    %v2442 = vpop.f32.mrb[0].mxu0
    %2443 = vdwg.mxu0
    %2444 = vmatprep.subr.bf16.mxu0 0
    %2445 = vmatpush1.bf16.msra.mxu0 %v396
    %2446 = vmatprep.subr.bf16.mxu0 0
    %2447 = vmatpush1.bf16.msra.mxu0 %v397
    %2448 = vmatprep.subr.bf16.mxu0 0
    %2449 = vmatpush1.bf16.msra.mxu0 %v398
    %2450 = vmatprep.subr.bf16.mxu0 0
    %2451 = vmatpush1.bf16.msra.mxu0 %v399
    %2452 = vmatprep.subr.bf16.mxu0 0
    %2453 = vmatpush1.bf16.msra.mxu0 0
    %2454 = vmatprep.subr.bf16.mxu0 0
    %2455 = vmatpush1.bf16.msra.mxu0 0
    %2456 = vmatprep.subr.bf16.mxu0 0
    %2457 = vmatpush1.bf16.msra.mxu0 0
    %2458 = vmatprep.subr.bf16.mxu0 0
    %2459 = vmatpush1.bf16.msra.mxu0 0
    %2460 = vmatprep.subr.bf16.mxu0 0
    %2461 = vmatpush1.bf16.msra.mxu0 0
    %2462 = vmatprep.subr.bf16.mxu0 0
    %2463 = vmatpush1.bf16.msra.mxu0 0
    %2464 = vmatprep.subr.bf16.mxu0 0
    %2465 = vmatpush1.bf16.msra.mxu0 0
    %2466 = vmatprep.subr.bf16.mxu0 0
    %2467 = vmatpush1.bf16.msra.mxu0 0
    %2468 = vmatprep.subr.bf16.mxu0 0
    %2469 = vmatpush1.bf16.msra.mxu0 0
    %2470 = vmatprep.subr.bf16.mxu0 0
    %2471 = vmatpush1.bf16.msra.mxu0 0
    %2472 = vmatprep.subr.bf16.mxu0 0
    %2473 = vmatpush1.bf16.msra.mxu0 0
    %2474 = vmatprep.subr.bf16.mxu0 0
    %2475 = vmatpush1.bf16.msra.mxu0 0
    %2476 = vmatprep.mubr.bf16.mxu0 0
    %2477 = vmatmul.mubr.bf16.gmra.mrb[0].mxu0 %v2402
    %v2478 = vpop.f32.mrb[0].mxu0
    %v2479 = vadd.f32 %v2439, %v2478
    %v2480 = vpop.f32.mrb[0].mxu0
    %v2481 = vpop.f32.mrb[0].mxu0
    %v2482 = vpop.f32.mrb[0].mxu0
    %2483 = vdwg.mxu0
    %v2484 = vmax.f32 %v2479, 0.0
    %v2485 = vpack.c.bf16 %v2484, %v2484
    %s2486 = scalar_lea.vmem [#allocation2], 448
    %v2487 = vld [vmem:[%s2486] sm:$0xf]
    %v2488 = vld [vmem:[%s2486 + $0x4] sm:$0xf]
    %v2489 = vld [vmem:[%s2486 + $0x8] sm:$0xf]
    %v2490 = vld [vmem:[%s2486 + $0xc] sm:$0xf]
    %v2491 = vld [vmem:[%s2486 + $0x10] sm:$0xf]
    %v2492 = vld [vmem:[%s2486 + $0x14] sm:$0xf]
    %v2493 = vld [vmem:[%s2486 + $0x18] sm:$0xf]
    %v2494 = vld [vmem:[%s2486 + $0x1c] sm:$0xf]
    %v2495 = vld [vmem:[%s2486 + $0x20] sm:$0xf]
    %v2496 = vld [vmem:[%s2486 + $0x24] sm:$0xf]
    %v2497 = vld [vmem:[%s2486 + $0x28] sm:$0xf]
    %v2498 = vld [vmem:[%s2486 + $0x2c] sm:$0xf]
    %v2499 = vld [vmem:[%s2486 + $0x30] sm:$0xf]
    %v2500 = vld [vmem:[%s2486 + $0x34] sm:$0xf]
    %v2501 = vld [vmem:[%s2486 + $0x38] sm:$0xf]
    %v2502 = vld [vmem:[%s2486 + $0x3c] sm:$0xf]
    %v2519 = vunpack.c.l.b16 %v2487
    %v2520 = vunpack.c.l.b16 %v2488
    %v2521 = vunpack.c.l.b16 %v2489
    %v2522 = vunpack.c.l.b16 %v2490
    %v2523 = vunpack.c.l.b16 %v2491
    %v2524 = vunpack.c.l.b16 %v2492
    %v2525 = vunpack.c.l.b16 %v2493
    %v2526 = vunpack.c.l.b16 %v2494
    %v2527 = vunpack.c.l.b16 %v2495
    %v2528 = vunpack.c.l.b16 %v2496
    %v2529 = vunpack.c.l.b16 %v2497
    %v2530 = vunpack.c.l.b16 %v2498
    %v2531 = vunpack.c.l.b16 %v2499
    %v2532 = vunpack.c.l.b16 %v2500
    %v2533 = vunpack.c.l.b16 %v2501
    %v2534 = vunpack.c.l.b16 %v2502
    %v2535 = vpack.c.b16 %v2520, %v2519
    %v2536 = vpack.c.b16 %v2522, %v2521
    %v2537 = vpack.c.b16 %v2524, %v2523
    %v2538 = vpack.c.b16 %v2526, %v2525
    %v2539 = vpack.c.b16 %v2528, %v2527
    %v2540 = vpack.c.b16 %v2530, %v2529
    %v2541 = vpack.c.b16 %v2532, %v2531
    %v2542 = vpack.c.b16 %v2534, %v2533
    %2551 = vmatprep.subr.bf16.mxu0 0
    %2552 = vmatpush1.bf16.msra.mxu0 %v2535
    %2553 = vmatprep.subr.bf16.mxu0 0
    %2554 = vmatpush1.bf16.msra.mxu0 %v2536
    %2555 = vmatprep.subr.bf16.mxu0 0
    %2556 = vmatpush1.bf16.msra.mxu0 %v2537
    %2557 = vmatprep.subr.bf16.mxu0 0
    %2558 = vmatpush1.bf16.msra.mxu0 %v2538
    %2559 = vmatprep.subr.bf16.mxu0 0
    %2560 = vmatpush1.bf16.msra.mxu0 %v2539
    %2561 = vmatprep.subr.bf16.mxu0 0
    %2562 = vmatpush1.bf16.msra.mxu0 %v2540
    %2563 = vmatprep.subr.bf16.mxu0 0
    %2564 = vmatpush1.bf16.msra.mxu0 %v2541
    %2565 = vmatprep.subr.bf16.mxu0 0
    %2566 = vmatpush1.bf16.msra.mxu0 %v2542
    %2567 = vmatprep.subr.bf16.mxu0 0
    %2568 = vmatpush1.bf16.msra.mxu0 0
    %2569 = vmatprep.subr.bf16.mxu0 0
    %2570 = vmatpush1.bf16.msra.mxu0 0
    %2571 = vmatprep.subr.bf16.mxu0 0
    %2572 = vmatpush1.bf16.msra.mxu0 0
    %2573 = vmatprep.subr.bf16.mxu0 0
    %2574 = vmatpush1.bf16.msra.mxu0 0
    %2575 = vmatprep.subr.bf16.mxu0 0
    %2576 = vmatpush1.bf16.msra.mxu0 0
    %2577 = vmatprep.subr.bf16.mxu0 0
    %2578 = vmatpush1.bf16.msra.mxu0 0
    %2579 = vmatprep.subr.bf16.mxu0 0
    %2580 = vmatpush1.bf16.msra.mxu0 0
    %2581 = vmatprep.subr.bf16.mxu0 0
    %2582 = vmatpush1.bf16.msra.mxu0 0
    %2583 = vmatprep.mubr.bf16.mxu0 0
    %2584 = vmatmul.mubr.bf16.gmra.mrb[0].mxu0 %v2485
    %v2585 = vpop.f32.mrb[0].mxu0
    %v2586 = vadd.f32 0.0, %v2585
    %v2587 = vpop.f32.mrb[0].mxu0
    %v2588 = vpop.f32.mrb[0].mxu0
    %v2589 = vpop.f32.mrb[0].mxu0
    %2590 = vdwg.mxu0
    %v2591 = vadd.f32 %v2308, %v2586
    %s2592 = scalar_lea.vmem %s0, 32
    %v2593 = vld [vmem:[%s2592] sm:$0xf]
    %v2595 = vsel %vm181, %v2593, 0
    %2597 = vmatprep.subr.bf16.mxu0 %v161
    %2598 = vmatpush1.bf16.msra.mxu0 %v160
    %2599 = vmatprep.subr.bf16.mxu0 %v164
    %2600 = vmatpush1.bf16.msra.mxu0 %v163
    %2601 = vmatprep.subr.bf16.mxu0 %v167
    %2602 = vmatpush1.bf16.msra.mxu0 %v166
    %2603 = vmatprep.subr.bf16.mxu0 %v190
    %2604 = vmatpush1.bf16.msra.mxu0 %v187
    %2605 = vmatprep.subr.bf16.mxu0 0
    %2606 = vmatpush1.bf16.msra.mxu0 0
    %2607 = vmatprep.subr.bf16.mxu0 0
    %2608 = vmatpush1.bf16.msra.mxu0 0
    %2609 = vmatprep.subr.bf16.mxu0 0
    %2610 = vmatpush1.bf16.msra.mxu0 0
    %2611 = vmatprep.subr.bf16.mxu0 0
    %2612 = vmatpush1.bf16.msra.mxu0 0
    %2613 = vmatprep.subr.bf16.mxu0 0
    %2614 = vmatpush1.bf16.msra.mxu0 0
    %2615 = vmatprep.subr.bf16.mxu0 0
    %2616 = vmatpush1.bf16.msra.mxu0 0
    %2617 = vmatprep.subr.bf16.mxu0 0
    %2618 = vmatpush1.bf16.msra.mxu0 0
    %2619 = vmatprep.subr.bf16.mxu0 0
    %2620 = vmatpush1.bf16.msra.mxu0 0
    %2621 = vmatprep.subr.bf16.mxu0 0
    %2622 = vmatpush1.bf16.msra.mxu0 0
    %2623 = vmatprep.subr.bf16.mxu0 0
    %2624 = vmatpush1.bf16.msra.mxu0 0
    %2625 = vmatprep.subr.bf16.mxu0 0
    %2626 = vmatpush1.bf16.msra.mxu0 0
    %2627 = vmatprep.subr.bf16.mxu0 0
    %2628 = vmatpush1.bf16.msra.mxu0 0
    %2629 = vmatprep.mubr.bf16.mxu0 0
    %2630 = vmatmul.mubr.bf16.gmra.mrb[0].mxu0 %v2595
    %v2631 = vpop.f32.mrb[0].mxu0
    %v2632 = vadd.f32 %v113, %v2631
    %v2633 = vpop.f32.mrb[0].mxu0
    %v2634 = vadd.f32 %v117, %v2633
    %v2635 = vpop.f32.mrb[0].mxu0
    %v2636 = vpop.f32.mrb[0].mxu0
    %2637 = vdwg.mxu0
    %2638 = vmatprep.subr.bf16.mxu0 0
    %2639 = vmatpush1.bf16.msra.mxu0 %v162
    %2640 = vmatprep.subr.bf16.mxu0 0
    %2641 = vmatpush1.bf16.msra.mxu0 %v165
    %2642 = vmatprep.subr.bf16.mxu0 0
    %2643 = vmatpush1.bf16.msra.mxu0 %v168
    %2644 = vmatprep.subr.bf16.mxu0 0
    %2645 = vmatpush1.bf16.msra.mxu0 %v193
    %2646 = vmatprep.subr.bf16.mxu0 0
    %2647 = vmatpush1.bf16.msra.mxu0 0
    %2648 = vmatprep.subr.bf16.mxu0 0
    %2649 = vmatpush1.bf16.msra.mxu0 0
    %2650 = vmatprep.subr.bf16.mxu0 0
    %2651 = vmatpush1.bf16.msra.mxu0 0
    %2652 = vmatprep.subr.bf16.mxu0 0
    %2653 = vmatpush1.bf16.msra.mxu0 0
    %2654 = vmatprep.subr.bf16.mxu0 0
    %2655 = vmatpush1.bf16.msra.mxu0 0
    %2656 = vmatprep.subr.bf16.mxu0 0
    %2657 = vmatpush1.bf16.msra.mxu0 0
    %2658 = vmatprep.subr.bf16.mxu0 0
    %2659 = vmatpush1.bf16.msra.mxu0 0
    %2660 = vmatprep.subr.bf16.mxu0 0
    %2661 = vmatpush1.bf16.msra.mxu0 0
    %2662 = vmatprep.subr.bf16.mxu0 0
    %2663 = vmatpush1.bf16.msra.mxu0 0
    %2664 = vmatprep.subr.bf16.mxu0 0
    %2665 = vmatpush1.bf16.msra.mxu0 0
    %2666 = vmatprep.subr.bf16.mxu0 0
    %2667 = vmatpush1.bf16.msra.mxu0 0
    %2668 = vmatprep.subr.bf16.mxu0 0
    %2669 = vmatpush1.bf16.msra.mxu0 0
    %2670 = vmatprep.mubr.bf16.mxu0 0
    %2671 = vmatmul.mubr.bf16.gmra.mrb[0].mxu0 %v2595
    %v2672 = vpop.f32.mrb[0].mxu0
    %v2673 = vadd.f32 %v121, %v2672
    %v2674 = vpop.f32.mrb[0].mxu0
    %v2675 = vpop.f32.mrb[0].mxu0
    %v2676 = vpop.f32.mrb[0].mxu0
    %2677 = vdwg.mxu0
    %v2678 = vmax.f32 %v2632, 0.0
    %v2679 = vmax.f32 %v2634, 0.0
    %v2680 = vmax.f32 %v2673, 0.0
    %v2681 = vpack.c.bf16 %v2678, %v2678
    %v2682 = vpack.c.bf16 %v2679, %v2679
    %v2683 = vpack.c.bf16 %v2680, %v2680
    %v2685 = vsel %vm420, %v2683, 0
    %2687 = vmatprep.subr.bf16.mxu0 0
    %2688 = vmatpush1.bf16.msra.mxu0 %v380
    %2689 = vmatprep.subr.bf16.mxu0 0
    %2690 = vmatpush1.bf16.msra.mxu0 %v381
    %2691 = vmatprep.subr.bf16.mxu0 0
    %2692 = vmatpush1.bf16.msra.mxu0 %v382
    %2693 = vmatprep.subr.bf16.mxu0 0
    %2694 = vmatpush1.bf16.msra.mxu0 %v383
    %2695 = vmatprep.subr.bf16.mxu0 0
    %2696 = vmatpush1.bf16.msra.mxu0 %v384
    %2697 = vmatprep.subr.bf16.mxu0 0
    %2698 = vmatpush1.bf16.msra.mxu0 %v385
    %2699 = vmatprep.subr.bf16.mxu0 0
    %2700 = vmatpush1.bf16.msra.mxu0 %v386
    %2701 = vmatprep.subr.bf16.mxu0 0
    %2702 = vmatpush1.bf16.msra.mxu0 %v387
    %2703 = vmatprep.subr.bf16.mxu0 0
    %2704 = vmatpush1.bf16.msra.mxu0 %v388
    %2705 = vmatprep.subr.bf16.mxu0 0
    %2706 = vmatpush1.bf16.msra.mxu0 %v389
    %2707 = vmatprep.subr.bf16.mxu0 0
    %2708 = vmatpush1.bf16.msra.mxu0 %v390
    %2709 = vmatprep.subr.bf16.mxu0 0
    %2710 = vmatpush1.bf16.msra.mxu0 %v391
    %2711 = vmatprep.subr.bf16.mxu0 0
    %2712 = vmatpush1.bf16.msra.mxu0 %v392
    %2713 = vmatprep.subr.bf16.mxu0 0
    %2714 = vmatpush1.bf16.msra.mxu0 %v393
    %2715 = vmatprep.subr.bf16.mxu0 0
    %2716 = vmatpush1.bf16.msra.mxu0 %v394
    %2717 = vmatprep.subr.bf16.mxu0 0
    %2718 = vmatpush1.bf16.msra.mxu0 %v395
    %2719 = vmatprep.mubr.bf16.mxu0 %v2682
    %2720 = vmatmul.mubr.bf16.gmra.mrb[0].mxu0 %v2681
    %v2721 = vpop.f32.mrb[0].mxu0
    %v2722 = vadd.f32 %v298, %v2721
    %v2723 = vpop.f32.mrb[0].mxu0
    %v2724 = vpop.f32.mrb[0].mxu0
    %v2725 = vpop.f32.mrb[0].mxu0
    %2726 = vdwg.mxu0
    %2727 = vmatprep.subr.bf16.mxu0 0
    %2728 = vmatpush1.bf16.msra.mxu0 %v396
    %2729 = vmatprep.subr.bf16.mxu0 0
    %2730 = vmatpush1.bf16.msra.mxu0 %v397
    %2731 = vmatprep.subr.bf16.mxu0 0
    %2732 = vmatpush1.bf16.msra.mxu0 %v398
    %2733 = vmatprep.subr.bf16.mxu0 0
    %2734 = vmatpush1.bf16.msra.mxu0 %v399
    %2735 = vmatprep.subr.bf16.mxu0 0
    %2736 = vmatpush1.bf16.msra.mxu0 0
    %2737 = vmatprep.subr.bf16.mxu0 0
    %2738 = vmatpush1.bf16.msra.mxu0 0
    %2739 = vmatprep.subr.bf16.mxu0 0
    %2740 = vmatpush1.bf16.msra.mxu0 0
    %2741 = vmatprep.subr.bf16.mxu0 0
    %2742 = vmatpush1.bf16.msra.mxu0 0
    %2743 = vmatprep.subr.bf16.mxu0 0
    %2744 = vmatpush1.bf16.msra.mxu0 0
    %2745 = vmatprep.subr.bf16.mxu0 0
    %2746 = vmatpush1.bf16.msra.mxu0 0
    %2747 = vmatprep.subr.bf16.mxu0 0
    %2748 = vmatpush1.bf16.msra.mxu0 0
    %2749 = vmatprep.subr.bf16.mxu0 0
    %2750 = vmatpush1.bf16.msra.mxu0 0
    %2751 = vmatprep.subr.bf16.mxu0 0
    %2752 = vmatpush1.bf16.msra.mxu0 0
    %2753 = vmatprep.subr.bf16.mxu0 0
    %2754 = vmatpush1.bf16.msra.mxu0 0
    %2755 = vmatprep.subr.bf16.mxu0 0
    %2756 = vmatpush1.bf16.msra.mxu0 0
    %2757 = vmatprep.subr.bf16.mxu0 0
    %2758 = vmatpush1.bf16.msra.mxu0 0
    %2759 = vmatprep.mubr.bf16.mxu0 0
    %2760 = vmatmul.mubr.bf16.gmra.mrb[0].mxu0 %v2685
    %v2761 = vpop.f32.mrb[0].mxu0
    %v2762 = vadd.f32 %v2722, %v2761
    %v2763 = vpop.f32.mrb[0].mxu0
    %v2764 = vpop.f32.mrb[0].mxu0
    %v2765 = vpop.f32.mrb[0].mxu0
    %2766 = vdwg.mxu0
    %v2767 = vmax.f32 %v2762, 0.0
    %v2768 = vpack.c.bf16 %v2767, %v2767
    %s2769 = scalar_lea.vmem [#allocation2], 512
    %v2770 = vld [vmem:[%s2769] sm:$0xf]
    %v2771 = vld [vmem:[%s2769 + $0x4] sm:$0xf]
    %v2772 = vld [vmem:[%s2769 + $0x8] sm:$0xf]
    %v2773 = vld [vmem:[%s2769 + $0xc] sm:$0xf]
    %v2774 = vld [vmem:[%s2769 + $0x10] sm:$0xf]
    %v2775 = vld [vmem:[%s2769 + $0x14] sm:$0xf]
    %v2776 = vld [vmem:[%s2769 + $0x18] sm:$0xf]
    %v2777 = vld [vmem:[%s2769 + $0x1c] sm:$0xf]
    %v2778 = vld [vmem:[%s2769 + $0x20] sm:$0xf]
    %v2779 = vld [vmem:[%s2769 + $0x24] sm:$0xf]
    %v2780 = vld [vmem:[%s2769 + $0x28] sm:$0xf]
    %v2781 = vld [vmem:[%s2769 + $0x2c] sm:$0xf]
    %v2782 = vld [vmem:[%s2769 + $0x30] sm:$0xf]
    %v2783 = vld [vmem:[%s2769 + $0x34] sm:$0xf]
    %v2784 = vld [vmem:[%s2769 + $0x38] sm:$0xf]
    %v2785 = vld [vmem:[%s2769 + $0x3c] sm:$0xf]
    %v2802 = vunpack.c.l.b16 %v2770
    %v2803 = vunpack.c.l.b16 %v2771
    %v2804 = vunpack.c.l.b16 %v2772
    %v2805 = vunpack.c.l.b16 %v2773
    %v2806 = vunpack.c.l.b16 %v2774
    %v2807 = vunpack.c.l.b16 %v2775
    %v2808 = vunpack.c.l.b16 %v2776
    %v2809 = vunpack.c.l.b16 %v2777
    %v2810 = vunpack.c.l.b16 %v2778
    %v2811 = vunpack.c.l.b16 %v2779
    %v2812 = vunpack.c.l.b16 %v2780
    %v2813 = vunpack.c.l.b16 %v2781
    %v2814 = vunpack.c.l.b16 %v2782
    %v2815 = vunpack.c.l.b16 %v2783
    %v2816 = vunpack.c.l.b16 %v2784
    %v2817 = vunpack.c.l.b16 %v2785
    %v2818 = vpack.c.b16 %v2803, %v2802
    %v2819 = vpack.c.b16 %v2805, %v2804
    %v2820 = vpack.c.b16 %v2807, %v2806
    %v2821 = vpack.c.b16 %v2809, %v2808
    %v2822 = vpack.c.b16 %v2811, %v2810
    %v2823 = vpack.c.b16 %v2813, %v2812
    %v2824 = vpack.c.b16 %v2815, %v2814
    %v2825 = vpack.c.b16 %v2817, %v2816
    %2834 = vmatprep.subr.bf16.mxu0 0
    %2835 = vmatpush1.bf16.msra.mxu0 %v2818
    %2836 = vmatprep.subr.bf16.mxu0 0
    %2837 = vmatpush1.bf16.msra.mxu0 %v2819
    %2838 = vmatprep.subr.bf16.mxu0 0
    %2839 = vmatpush1.bf16.msra.mxu0 %v2820
    %2840 = vmatprep.subr.bf16.mxu0 0
    %2841 = vmatpush1.bf16.msra.mxu0 %v2821
    %2842 = vmatprep.subr.bf16.mxu0 0
    %2843 = vmatpush1.bf16.msra.mxu0 %v2822
    %2844 = vmatprep.subr.bf16.mxu0 0
    %2845 = vmatpush1.bf16.msra.mxu0 %v2823
    %2846 = vmatprep.subr.bf16.mxu0 0
    %2847 = vmatpush1.bf16.msra.mxu0 %v2824
    %2848 = vmatprep.subr.bf16.mxu0 0
    %2849 = vmatpush1.bf16.msra.mxu0 %v2825
    %2850 = vmatprep.subr.bf16.mxu0 0
    %2851 = vmatpush1.bf16.msra.mxu0 0
    %2852 = vmatprep.subr.bf16.mxu0 0
    %2853 = vmatpush1.bf16.msra.mxu0 0
    %2854 = vmatprep.subr.bf16.mxu0 0
    %2855 = vmatpush1.bf16.msra.mxu0 0
    %2856 = vmatprep.subr.bf16.mxu0 0
    %2857 = vmatpush1.bf16.msra.mxu0 0
    %2858 = vmatprep.subr.bf16.mxu0 0
    %2859 = vmatpush1.bf16.msra.mxu0 0
    %2860 = vmatprep.subr.bf16.mxu0 0
    %2861 = vmatpush1.bf16.msra.mxu0 0
    %2862 = vmatprep.subr.bf16.mxu0 0
    %2863 = vmatpush1.bf16.msra.mxu0 0
    %2864 = vmatprep.subr.bf16.mxu0 0
    %2865 = vmatpush1.bf16.msra.mxu0 0
    %2866 = vmatprep.mubr.bf16.mxu0 0
    %2867 = vmatmul.mubr.bf16.gmra.mrb[0].mxu0 %v2768
    %v2868 = vpop.f32.mrb[0].mxu0
    %v2869 = vadd.f32 0.0, %v2868
    %v2870 = vpop.f32.mrb[0].mxu0
    %v2871 = vpop.f32.mrb[0].mxu0
    %v2872 = vpop.f32.mrb[0].mxu0
    %2873 = vdwg.mxu0
    %v2874 = vadd.f32 %v2591, %v2869
    %s2875 = scalar_lea.vmem %s0, 36
    %v2876 = vld [vmem:[%s2875] sm:$0xf]
    %v2878 = vsel %vm181, %v2876, 0
    %2880 = vmatprep.subr.bf16.mxu0 %v161
    %2881 = vmatpush1.bf16.msra.mxu0 %v160
    %2882 = vmatprep.subr.bf16.mxu0 %v164
    %2883 = vmatpush1.bf16.msra.mxu0 %v163
    %2884 = vmatprep.subr.bf16.mxu0 %v167
    %2885 = vmatpush1.bf16.msra.mxu0 %v166
    %2886 = vmatprep.subr.bf16.mxu0 %v190
    %2887 = vmatpush1.bf16.msra.mxu0 %v187
    %2888 = vmatprep.subr.bf16.mxu0 0
    %2889 = vmatpush1.bf16.msra.mxu0 0
    %2890 = vmatprep.subr.bf16.mxu0 0
    %2891 = vmatpush1.bf16.msra.mxu0 0
    %2892 = vmatprep.subr.bf16.mxu0 0
    %2893 = vmatpush1.bf16.msra.mxu0 0
    %2894 = vmatprep.subr.bf16.mxu0 0
    %2895 = vmatpush1.bf16.msra.mxu0 0
    %2896 = vmatprep.subr.bf16.mxu0 0
    %2897 = vmatpush1.bf16.msra.mxu0 0
    %2898 = vmatprep.subr.bf16.mxu0 0
    %2899 = vmatpush1.bf16.msra.mxu0 0
    %2900 = vmatprep.subr.bf16.mxu0 0
    %2901 = vmatpush1.bf16.msra.mxu0 0
    %2902 = vmatprep.subr.bf16.mxu0 0
    %2903 = vmatpush1.bf16.msra.mxu0 0
    %2904 = vmatprep.subr.bf16.mxu0 0
    %2905 = vmatpush1.bf16.msra.mxu0 0
    %2906 = vmatprep.subr.bf16.mxu0 0
    %2907 = vmatpush1.bf16.msra.mxu0 0
    %2908 = vmatprep.subr.bf16.mxu0 0
    %2909 = vmatpush1.bf16.msra.mxu0 0
    %2910 = vmatprep.subr.bf16.mxu0 0
    %2911 = vmatpush1.bf16.msra.mxu0 0
    %2912 = vmatprep.mubr.bf16.mxu0 0
    %2913 = vmatmul.mubr.bf16.gmra.mrb[0].mxu0 %v2878
    %v2914 = vpop.f32.mrb[0].mxu0
    %v2915 = vadd.f32 %v113, %v2914
    %v2916 = vpop.f32.mrb[0].mxu0
    %v2917 = vadd.f32 %v117, %v2916
    %v2918 = vpop.f32.mrb[0].mxu0
    %v2919 = vpop.f32.mrb[0].mxu0
    %2920 = vdwg.mxu0
    %2921 = vmatprep.subr.bf16.mxu0 0
    %2922 = vmatpush1.bf16.msra.mxu0 %v162
    %2923 = vmatprep.subr.bf16.mxu0 0
    %2924 = vmatpush1.bf16.msra.mxu0 %v165
    %2925 = vmatprep.subr.bf16.mxu0 0
    %2926 = vmatpush1.bf16.msra.mxu0 %v168
    %2927 = vmatprep.subr.bf16.mxu0 0
    %2928 = vmatpush1.bf16.msra.mxu0 %v193
    %2929 = vmatprep.subr.bf16.mxu0 0
    %2930 = vmatpush1.bf16.msra.mxu0 0
    %2931 = vmatprep.subr.bf16.mxu0 0
    %2932 = vmatpush1.bf16.msra.mxu0 0
    %2933 = vmatprep.subr.bf16.mxu0 0
    %2934 = vmatpush1.bf16.msra.mxu0 0
    %2935 = vmatprep.subr.bf16.mxu0 0
    %2936 = vmatpush1.bf16.msra.mxu0 0
    %2937 = vmatprep.subr.bf16.mxu0 0
    %2938 = vmatpush1.bf16.msra.mxu0 0
    %2939 = vmatprep.subr.bf16.mxu0 0
    %2940 = vmatpush1.bf16.msra.mxu0 0
    %2941 = vmatprep.subr.bf16.mxu0 0
    %2942 = vmatpush1.bf16.msra.mxu0 0
    %2943 = vmatprep.subr.bf16.mxu0 0
    %2944 = vmatpush1.bf16.msra.mxu0 0
    %2945 = vmatprep.subr.bf16.mxu0 0
    %2946 = vmatpush1.bf16.msra.mxu0 0
    %2947 = vmatprep.subr.bf16.mxu0 0
    %2948 = vmatpush1.bf16.msra.mxu0 0
    %2949 = vmatprep.subr.bf16.mxu0 0
    %2950 = vmatpush1.bf16.msra.mxu0 0
    %2951 = vmatprep.subr.bf16.mxu0 0
    %2952 = vmatpush1.bf16.msra.mxu0 0
    %2953 = vmatprep.mubr.bf16.mxu0 0
    %2954 = vmatmul.mubr.bf16.gmra.mrb[0].mxu0 %v2878
    %v2955 = vpop.f32.mrb[0].mxu0
    %v2956 = vadd.f32 %v121, %v2955
    %v2957 = vpop.f32.mrb[0].mxu0
    %v2958 = vpop.f32.mrb[0].mxu0
    %v2959 = vpop.f32.mrb[0].mxu0
    %2960 = vdwg.mxu0
    %v2961 = vmax.f32 %v2915, 0.0
    %v2962 = vmax.f32 %v2917, 0.0
    %v2963 = vmax.f32 %v2956, 0.0
    %v2964 = vpack.c.bf16 %v2961, %v2961
    %v2965 = vpack.c.bf16 %v2962, %v2962
    %v2966 = vpack.c.bf16 %v2963, %v2963
    %v2968 = vsel %vm420, %v2966, 0
    %2970 = vmatprep.subr.bf16.mxu0 0
    %2971 = vmatpush1.bf16.msra.mxu0 %v380
    %2972 = vmatprep.subr.bf16.mxu0 0
    %2973 = vmatpush1.bf16.msra.mxu0 %v381
    %2974 = vmatprep.subr.bf16.mxu0 0
    %2975 = vmatpush1.bf16.msra.mxu0 %v382
    %2976 = vmatprep.subr.bf16.mxu0 0
    %2977 = vmatpush1.bf16.msra.mxu0 %v383
    %2978 = vmatprep.subr.bf16.mxu0 0
    %2979 = vmatpush1.bf16.msra.mxu0 %v384
    %2980 = vmatprep.subr.bf16.mxu0 0
    %2981 = vmatpush1.bf16.msra.mxu0 %v385
    %2982 = vmatprep.subr.bf16.mxu0 0
    %2983 = vmatpush1.bf16.msra.mxu0 %v386
    %2984 = vmatprep.subr.bf16.mxu0 0
    %2985 = vmatpush1.bf16.msra.mxu0 %v387
    %2986 = vmatprep.subr.bf16.mxu0 0
    %2987 = vmatpush1.bf16.msra.mxu0 %v388
    %2988 = vmatprep.subr.bf16.mxu0 0
    %2989 = vmatpush1.bf16.msra.mxu0 %v389
    %2990 = vmatprep.subr.bf16.mxu0 0
    %2991 = vmatpush1.bf16.msra.mxu0 %v390
    %2992 = vmatprep.subr.bf16.mxu0 0
    %2993 = vmatpush1.bf16.msra.mxu0 %v391
    %2994 = vmatprep.subr.bf16.mxu0 0
    %2995 = vmatpush1.bf16.msra.mxu0 %v392
    %2996 = vmatprep.subr.bf16.mxu0 0
    %2997 = vmatpush1.bf16.msra.mxu0 %v393
    %2998 = vmatprep.subr.bf16.mxu0 0
    %2999 = vmatpush1.bf16.msra.mxu0 %v394
    %3000 = vmatprep.subr.bf16.mxu0 0
    %3001 = vmatpush1.bf16.msra.mxu0 %v395
    %3002 = vmatprep.mubr.bf16.mxu0 %v2965
    %3003 = vmatmul.mubr.bf16.gmra.mrb[0].mxu0 %v2964
    %v3004 = vpop.f32.mrb[0].mxu0
    %v3005 = vadd.f32 %v298, %v3004
    %v3006 = vpop.f32.mrb[0].mxu0
    %v3007 = vpop.f32.mrb[0].mxu0
    %v3008 = vpop.f32.mrb[0].mxu0
    %3009 = vdwg.mxu0
    %3010 = vmatprep.subr.bf16.mxu0 0
    %3011 = vmatpush1.bf16.msra.mxu0 %v396
    %3012 = vmatprep.subr.bf16.mxu0 0
    %3013 = vmatpush1.bf16.msra.mxu0 %v397
    %3014 = vmatprep.subr.bf16.mxu0 0
    %3015 = vmatpush1.bf16.msra.mxu0 %v398
    %3016 = vmatprep.subr.bf16.mxu0 0
    %3017 = vmatpush1.bf16.msra.mxu0 %v399
    %3018 = vmatprep.subr.bf16.mxu0 0
    %3019 = vmatpush1.bf16.msra.mxu0 0
    %3020 = vmatprep.subr.bf16.mxu0 0
    %3021 = vmatpush1.bf16.msra.mxu0 0
    %3022 = vmatprep.subr.bf16.mxu0 0
    %3023 = vmatpush1.bf16.msra.mxu0 0
    %3024 = vmatprep.subr.bf16.mxu0 0
    %3025 = vmatpush1.bf16.msra.mxu0 0
    %3026 = vmatprep.subr.bf16.mxu0 0
    %3027 = vmatpush1.bf16.msra.mxu0 0
    %3028 = vmatprep.subr.bf16.mxu0 0
    %3029 = vmatpush1.bf16.msra.mxu0 0
    %3030 = vmatprep.subr.bf16.mxu0 0
    %3031 = vmatpush1.bf16.msra.mxu0 0
    %3032 = vmatprep.subr.bf16.mxu0 0
    %3033 = vmatpush1.bf16.msra.mxu0 0
    %3034 = vmatprep.subr.bf16.mxu0 0
    %3035 = vmatpush1.bf16.msra.mxu0 0
    %3036 = vmatprep.subr.bf16.mxu0 0
    %3037 = vmatpush1.bf16.msra.mxu0 0
    %3038 = vmatprep.subr.bf16.mxu0 0
    %3039 = vmatpush1.bf16.msra.mxu0 0
    %3040 = vmatprep.subr.bf16.mxu0 0
    %3041 = vmatpush1.bf16.msra.mxu0 0
    %3042 = vmatprep.mubr.bf16.mxu0 0
    %3043 = vmatmul.mubr.bf16.gmra.mrb[0].mxu0 %v2968
    %v3044 = vpop.f32.mrb[0].mxu0
    %v3045 = vadd.f32 %v3005, %v3044
    %v3046 = vpop.f32.mrb[0].mxu0
    %v3047 = vpop.f32.mrb[0].mxu0
    %v3048 = vpop.f32.mrb[0].mxu0
    %3049 = vdwg.mxu0
    %v3050 = vmax.f32 %v3045, 0.0
    %v3051 = vpack.c.bf16 %v3050, %v3050
    %s3052 = scalar_lea.vmem [#allocation2], 576
    %v3053 = vld [vmem:[%s3052] sm:$0xf]
    %v3054 = vld [vmem:[%s3052 + $0x4] sm:$0xf]
    %v3055 = vld [vmem:[%s3052 + $0x8] sm:$0xf]
    %v3056 = vld [vmem:[%s3052 + $0xc] sm:$0xf]
    %v3057 = vld [vmem:[%s3052 + $0x10] sm:$0xf]
    %v3058 = vld [vmem:[%s3052 + $0x14] sm:$0xf]
    %v3059 = vld [vmem:[%s3052 + $0x18] sm:$0xf]
    %v3060 = vld [vmem:[%s3052 + $0x1c] sm:$0xf]
    %v3061 = vld [vmem:[%s3052 + $0x20] sm:$0xf]
    %v3062 = vld [vmem:[%s3052 + $0x24] sm:$0xf]
    %v3063 = vld [vmem:[%s3052 + $0x28] sm:$0xf]
    %v3064 = vld [vmem:[%s3052 + $0x2c] sm:$0xf]
    %v3065 = vld [vmem:[%s3052 + $0x30] sm:$0xf]
    %v3066 = vld [vmem:[%s3052 + $0x34] sm:$0xf]
    %v3067 = vld [vmem:[%s3052 + $0x38] sm:$0xf]
    %v3068 = vld [vmem:[%s3052 + $0x3c] sm:$0xf]
    %v3085 = vunpack.c.l.b16 %v3053
    %v3086 = vunpack.c.l.b16 %v3054
    %v3087 = vunpack.c.l.b16 %v3055
    %v3088 = vunpack.c.l.b16 %v3056
    %v3089 = vunpack.c.l.b16 %v3057
    %v3090 = vunpack.c.l.b16 %v3058
    %v3091 = vunpack.c.l.b16 %v3059
    %v3092 = vunpack.c.l.b16 %v3060
    %v3093 = vunpack.c.l.b16 %v3061
    %v3094 = vunpack.c.l.b16 %v3062
    %v3095 = vunpack.c.l.b16 %v3063
    %v3096 = vunpack.c.l.b16 %v3064
    %v3097 = vunpack.c.l.b16 %v3065
    %v3098 = vunpack.c.l.b16 %v3066
    %v3099 = vunpack.c.l.b16 %v3067
    %v3100 = vunpack.c.l.b16 %v3068
    %v3101 = vpack.c.b16 %v3086, %v3085
    %v3102 = vpack.c.b16 %v3088, %v3087
    %v3103 = vpack.c.b16 %v3090, %v3089
    %v3104 = vpack.c.b16 %v3092, %v3091
    %v3105 = vpack.c.b16 %v3094, %v3093
    %v3106 = vpack.c.b16 %v3096, %v3095
    %v3107 = vpack.c.b16 %v3098, %v3097
    %v3108 = vpack.c.b16 %v3100, %v3099
    %3117 = vmatprep.subr.bf16.mxu0 0
    %3118 = vmatpush1.bf16.msra.mxu0 %v3101
    %3119 = vmatprep.subr.bf16.mxu0 0
    %3120 = vmatpush1.bf16.msra.mxu0 %v3102
    %3121 = vmatprep.subr.bf16.mxu0 0
    %3122 = vmatpush1.bf16.msra.mxu0 %v3103
    %3123 = vmatprep.subr.bf16.mxu0 0
    %3124 = vmatpush1.bf16.msra.mxu0 %v3104
    %3125 = vmatprep.subr.bf16.mxu0 0
    %3126 = vmatpush1.bf16.msra.mxu0 %v3105
    %3127 = vmatprep.subr.bf16.mxu0 0
    %3128 = vmatpush1.bf16.msra.mxu0 %v3106
    %3129 = vmatprep.subr.bf16.mxu0 0
    %3130 = vmatpush1.bf16.msra.mxu0 %v3107
    %3131 = vmatprep.subr.bf16.mxu0 0
    %3132 = vmatpush1.bf16.msra.mxu0 %v3108
    %3133 = vmatprep.subr.bf16.mxu0 0
    %3134 = vmatpush1.bf16.msra.mxu0 0
    %3135 = vmatprep.subr.bf16.mxu0 0
    %3136 = vmatpush1.bf16.msra.mxu0 0
    %3137 = vmatprep.subr.bf16.mxu0 0
    %3138 = vmatpush1.bf16.msra.mxu0 0
    %3139 = vmatprep.subr.bf16.mxu0 0
    %3140 = vmatpush1.bf16.msra.mxu0 0
    %3141 = vmatprep.subr.bf16.mxu0 0
    %3142 = vmatpush1.bf16.msra.mxu0 0
    %3143 = vmatprep.subr.bf16.mxu0 0
    %3144 = vmatpush1.bf16.msra.mxu0 0
    %3145 = vmatprep.subr.bf16.mxu0 0
    %3146 = vmatpush1.bf16.msra.mxu0 0
    %3147 = vmatprep.subr.bf16.mxu0 0
    %3148 = vmatpush1.bf16.msra.mxu0 0
    %3149 = vmatprep.mubr.bf16.mxu0 0
    %3150 = vmatmul.mubr.bf16.gmra.mrb[0].mxu0 %v3051
    %v3151 = vpop.f32.mrb[0].mxu0
    %v3152 = vadd.f32 0.0, %v3151
    %v3153 = vpop.f32.mrb[0].mxu0
    %v3154 = vpop.f32.mrb[0].mxu0
    %v3155 = vpop.f32.mrb[0].mxu0
    %3156 = vdwg.mxu0
    %v3157 = vadd.f32 %v2874, %v3152
    %3158 = vst [vmem:[%s7] sm:$0xff] %v3157
    // Predicated region
    $region34: #{music_rhythm_embedding.1} parent=1 // pred_check
      _
    $region35: #{music_rhythm_embedding.1} parent=1 // pred_check_branch
      %3160 = sbr.rel (0) target = $region37
    $region36: #{music_rhythm_embedding.1} parent=1 // pred_region
      _
    $region37: #{music_rhythm_embedding.1} parent=1 // pred_fallthru
      _
    // Predicated region
    $region38: #{music_rhythm_embedding.1} parent=1 // pred_check
      _
    $region39: #{music_rhythm_embedding.1} parent=1 // pred_check_branch
      %3162 = sbr.rel (0) target = $region41
    $region40: #{music_rhythm_embedding.1} parent=1 // pred_region
      _
    $region41: #{music_rhythm_embedding.1} parent=1 // pred_fallthru
      _
    %3163 = vsyncpa [#allocation3], 1

</llo_original>
